<compile_context>
chip_gen: v5e
topology: v5e:2x2
jax: 0.10.0
libtpu: 0.0.40
codegen_flags: <defaults>
</compile_context>

<pallas_src>
import functools
import math

import jax
import jax.numpy as jnp
from jax.experimental import pallas as pl
from jax.experimental.pallas import tpu as pltpu

LEAKY_SLOPE = 0.2
BN_EPS = 1e-5
OUTPUT_SIZE = 32
# Safely below v7x's 64 MiB physical VMEM; plenty of headroom on v5e/v6e too.
VMEM_LIMIT = 48 * 1024 * 1024


def _row_tile(h, w):
    """Output-row tile size: ~1024 output pixels per matmul, >=2 tiles when possible."""
    t = max(8, min(1024 // w, h // 2 if h >= 16 else h))
    t = min(t, h)
    while h % t:
        t -= 1
    return t


# ----------------------------- Pallas kernels ------------------------------

def _conv3x3_kernel(xc_ref, w_ref, b_ref, o_ref, *, th):
    """3x3 'same' conv; kx already folded into the contraction dim.

    xc_ref: (1, H+2, W, 3*Cin) bf16   xc[., h, w, kx*Cin+c] = xpad[., h, w+kx, c]
    w_ref : (3, 3*Cin, Cout)   bf16
    b_ref : (1, Cout)          f32
    o_ref : (1, TH, W, Cout)   f32    output rows [t*TH, (t+1)*TH)
    """
    _, _, w, k = xc_ref.shape
    cout = o_ref.shape[-1]
    r0 = pl.multiple_of(pl.program_id(1) * th, th)
    acc = None
    for ky in range(3):
        patch = xc_ref[0, pl.ds(r0 + ky, th), :, :].reshape(th * w, k)
        part = jnp.dot(patch, w_ref[ky], preferred_element_type=jnp.float32)
        acc = part if acc is None else acc + part
    acc = acc + b_ref[...]
    o_ref[0] = acc.reshape(th, w, cout)


def _conv3x3_pool2_kernel(xe_ref, xo_ref, w_ref, b_ref, o_ref, *, th):
    """3x3 conv fused with 2x2 average pool (== bilinear 0.5x, align_corners=False).

    Expressed as a stride-2 conv with an effective 4x4 kernel; column taps are
    folded into the contraction and row taps come from even/odd row streams so
    every in-kernel slice is unit-stride along H.

    xe_ref, xo_ref: (1, Ho+1, Wo, 4*Cin) bf16   (even / odd padded input rows)
    w_ref         : (4, 4*Cin, Cout)     bf16
    b_ref         : (1, Cout)            f32
    o_ref         : (1, TH, Wo, Cout)    f32
    """
    _, _, wo, k = xe_ref.shape
    cout = o_ref.shape[-1]
    r0 = pl.multiple_of(pl.program_id(1) * th, th)

    def tap(ref, off, a):
        p = ref[0, pl.ds(r0 + off, th), :, :].reshape(th * wo, k)
        return jnp.dot(p, w_ref[a], preferred_element_type=jnp.float32)

    acc = tap(xe_ref, 0, 0)          # input row 2i
    acc = acc + tap(xo_ref, 0, 1)    # input row 2i+1
    acc = acc + tap(xe_ref, 1, 2)    # input row 2i+2
    acc = acc + tap(xo_ref, 1, 3)    # input row 2i+3
    acc = acc + b_ref[...]
    o_ref[0] = acc.reshape(th, wo, cout)


def _bn_act_kernel(x_ref, g_ref, b_ref, o_ref, *, slope):
    """Training-mode BatchNorm over rows (rows = B*H*W), optional LeakyReLU."""
    x = x_ref[...]                                               # (N, C) f32
    mean = jnp.mean(x, axis=0, keepdims=True)
    var = jnp.mean(jnp.square(x - mean), axis=0, keepdims=True)  # biased (torch training BN)
    y = (x - mean) * jax.lax.rsqrt(var + BN_EPS) * g_ref[...] + b_ref[...]
    if slope is not None:
        y = jnp.where(y >= 0, y, slope * y)
    o_ref[...] = y


def _bn_add_act_kernel(x_ref, r_ref, g_ref, b_ref, o_ref, *, slope):
    """BatchNorm fused with residual add + LeakyReLU (end of a ResBlock)."""
    x = x_ref[...]
    mean = jnp.mean(x, axis=0, keepdims=True)
    var = jnp.mean(jnp.square(x - mean), axis=0, keepdims=True)
    y = (x - mean) * jax.lax.rsqrt(var + BN_EPS) * g_ref[...] + b_ref[...] + r_ref[...]
    o_ref[...] = jnp.where(y >= 0, y, slope * y)


def _head_kernel(logits_ref, coord_ref, prob_ref, kp_ref):
    """Softmax over the spatial dim + coordinate-weighted keypoint sum."""
    x = logits_ref[...]                                   # (B*P, S*S) f32
    m = jnp.max(x, axis=-1, keepdims=True)
    e = jnp.exp(x - m)
    s = jnp.sum(e, axis=-1, keepdims=True)
    p = e / s
    prob_ref[...] = p
    kp_ref[...] = jnp.dot(p, coord_ref[...], preferred_element_type=jnp.float32)


# ------------------------------ kernel wrappers -----------------------------

def conv3x3(x, w, b):
    """x: (B,H,W,Cin) f32, w: (3,3,Cin,Cout), b: (Cout,) -> (B,H,W,Cout) f32."""
    B, H, W, Cin = x.shape
    Cout = w.shape[-1]
    xp = jnp.pad(x.astype(jnp.bfloat16), ((0, 0), (1, 1), (1, 1), (0, 0)))
    # Fold the kx tap into the channel/contraction dim -> only H-shifts in-kernel.
    xc = jnp.concatenate([xp[:, :, kx:kx + W, :] for kx in range(3)], axis=-1)
    wc = w.reshape(3, 3 * Cin, Cout).astype(jnp.bfloat16)
    bf = b.reshape(1, Cout).astype(jnp.float32)
    th = _row_tile(H, W)
    return pl.pallas_call(
        functools.partial(_conv3x3_kernel, th=th),
        out_shape=jax.ShapeDtypeStruct((B, H, W, Cout), jnp.float32),
        grid=(B, H // th),
        in_specs=[
            pl.BlockSpec((1, H + 2, W, 3 * Cin), lambda bi, ti: (bi, 0, 0, 0)),
            pl.BlockSpec((3, 3 * Cin, Cout), lambda bi, ti: (0, 0, 0)),
            pl.BlockSpec((1, Cout), lambda bi, ti: (0, 0)),
        ],
        out_specs=pl.BlockSpec((1, th, W, Cout), lambda bi, ti: (bi, ti, 0, 0)),
        compiler_params=pltpu.CompilerParams(
            dimension_semantics=("parallel", "parallel"),
            vmem_limit_bytes=VMEM_LIMIT),
    )(xc, wc, bf)


def conv3x3_pool2(x, w, b):
    """3x3 conv (padding=1) fused with the 0.5x bilinear resize (2x2 avg pool)."""
    B, H, W, Cin = x.shape
    Cout = w.shape[-1]
    Ho, Wo = H // 2, W // 2
    xp = jnp.pad(x.astype(jnp.bfloat16), ((0, 0), (1, 1), (1, 1), (0, 0)))
    # Fold the 4 column taps of the effective stride-2 4x4 kernel into channels.
    xc = jnp.concatenate([xp[:, :, c:c + W:2, :] for c in range(4)], axis=-1)  # (B,H+2,Wo,4Cin)
    xe = xc[:, 0::2]   # even padded rows: (B, Ho+1, Wo, 4*Cin)
    xo = xc[:, 1::2]   # odd  padded rows: (B, Ho+1, Wo, 4*Cin)
    # Effective 4x4 kernel = 3x3 conv kernel convolved with the 2x2 mean filter.
    wp = jnp.pad(w.astype(jnp.float32), ((0, 1), (0, 1), (0, 0), (0, 0)))      # (4,4,Cin,Cout)
    w4 = 0.25 * (wp + jnp.roll(wp, 1, 0) + jnp.roll(wp, 1, 1)
                 + jnp.roll(jnp.roll(wp, 1, 0), 1, 1))
    w4 = w4.reshape(4, 4 * Cin, Cout).astype(jnp.bfloat16)
    bf = b.reshape(1, Cout).astype(jnp.float32)
    th = _row_tile(Ho, Wo)
    return pl.pallas_call(
        functools.partial(_conv3x3_pool2_kernel, th=th),
        out_shape=jax.ShapeDtypeStruct((B, Ho, Wo, Cout), jnp.float32),
        grid=(B, Ho // th),
        in_specs=[
            pl.BlockSpec((1, Ho + 1, Wo, 4 * Cin), lambda bi, ti: (bi, 0, 0, 0)),
            pl.BlockSpec((1, Ho + 1, Wo, 4 * Cin), lambda bi, ti: (bi, 0, 0, 0)),
            pl.BlockSpec((4, 4 * Cin, Cout), lambda bi, ti: (0, 0, 0)),
            pl.BlockSpec((1, Cout), lambda bi, ti: (0, 0)),
        ],
        out_specs=pl.BlockSpec((1, th, Wo, Cout), lambda bi, ti: (bi, ti, 0, 0)),
        compiler_params=pltpu.CompilerParams(
            dimension_semantics=("parallel", "parallel"),
            vmem_limit_bytes=VMEM_LIMIT),
    )(xe, xo, w4, bf)


def batchnorm2d(x, gamma, beta, slope=None, residual=None):
    """Training-mode BatchNorm2d on NHWC, optionally fused with residual add + LeakyReLU."""
    # TODO(synk): tile the row dim (two-pass stats) if B*H*W grows beyond a few MB.
    B, H, W, C = x.shape
    N = B * H * W
    x2 = x.reshape(N, C)
    g = gamma.reshape(1, C)
    bt = beta.reshape(1, C)
    row_spec = pl.BlockSpec((N, C), lambda i: (0, 0))
    par_spec = pl.BlockSpec((1, C), lambda i: (0, 0))
    if residual is None:
        out = pl.pallas_call(
            functools.partial(_bn_act_kernel, slope=slope),
            out_shape=jax.ShapeDtypeStruct((N, C), jnp.float32),
            grid=(1,),
            in_specs=[row_spec, par_spec, par_spec],
            out_specs=row_spec,
        )(x2, g, bt)
    else:
        out = pl.pallas_call(
            functools.partial(_bn_add_act_kernel, slope=slope),
            out_shape=jax.ShapeDtypeStruct((N, C), jnp.float32),
            grid=(1,),
            in_specs=[row_spec, row_spec, par_spec, par_spec],
            out_specs=row_spec,
        )(x2, residual.reshape(N, C), g, bt)
    return out.reshape(B, H, W, C)


def detector_head(logits, coord):
    """logits: (B, P, S*S), coord: (S*S, 2) -> keypoints (B,P,2), prob (B,P,S*S)."""
    B, P, N = logits.shape
    prob, kp = pl.pallas_call(
        _head_kernel,
        out_shape=(jax.ShapeDtypeStruct((B * P, N), jnp.float32),
                   jax.ShapeDtypeStruct((B * P, 2), jnp.float32)),
        grid=(1,),
        in_specs=[pl.BlockSpec((B * P, N), lambda i: (0, 0)),
                  pl.BlockSpec((N, 2), lambda i: (0, 0))],
        out_specs=(pl.BlockSpec((B * P, N), lambda i: (0, 0)),
                   pl.BlockSpec((B * P, 2), lambda i: (0, 0))),
    )(logits.reshape(B * P, N), coord)
    return kp.reshape(B, P, 2), prob.reshape(B, P, N)


# --------------------------- plain-JAX glue ops -----------------------------

def _resize_axis_weights(in_size, out_size):
    scale = in_size / out_size
    src = (jnp.arange(out_size, dtype=jnp.float32) + 0.5) * scale - 0.5
    src = jnp.maximum(src, 0.0)                      # torch clamps negatives to 0
    i0 = jnp.minimum(jnp.floor(src).astype(jnp.int32), in_size - 1)
    i1 = jnp.minimum(i0 + 1, in_size - 1)
    w1 = src - i0.astype(jnp.float32)
    return i0, i1, w1


def resize_bilinear(x, out_h, out_w):
    """NHWC bilinear resize matching F.interpolate(..., align_corners=False)."""
    # TODO(synk): resampling is index-gather glue; kept in plain JAX (not Pallas).
    hi0, hi1, hw = _resize_axis_weights(x.shape[1], out_h)
    wi0, wi1, ww = _resize_axis_weights(x.shape[2], out_w)
    rows = (x[:, hi0] * (1.0 - hw)[None, :, None, None]
            + x[:, hi1] * hw[None, :, None, None])
    return (rows[:, :, wi0] * (1.0 - ww)[None, None, :, None]
            + rows[:, :, wi1] * ww[None, None, :, None])


# ------------------------------ model blocks --------------------------------

def res_block(p, x):
    # residual branch: Conv -> 0.5x bilinear (fused as 2x2 avg pool) -> BN
    r = conv3x3_pool2(x, p["conv_res"]["w"], p["conv_res"]["b"])
    r = batchnorm2d(r, p["bn_res"]["gamma"], p["bn_res"]["beta"])
    # main branch: Conv+pool -> BN+LeakyReLU -> Conv -> BN (+residual +LeakyReLU fused)
    y = conv3x3_pool2(x, p["conv1"]["w"], p["conv1"]["b"])
    y = batchnorm2d(y, p["bn1"]["gamma"], p["bn1"]["beta"], slope=LEAKY_SLOPE)
    y = conv3x3(y, p["conv2"]["w"], p["conv2"]["b"])
    return batchnorm2d(y, p["bn2"]["gamma"], p["bn2"]["beta"],
                       slope=LEAKY_SLOPE, residual=r)


def transposed_block(p, x):
    y = resize_bilinear(x, x.shape[1] * 2, x.shape[2] * 2)
    y = conv3x3(y, p["conv"]["w"], p["conv"]["b"])
    return batchnorm2d(y, p["bn"]["gamma"], p["bn"]["beta"], slope=LEAKY_SLOPE)


def detector_forward(params, img_nchw):
    x = jnp.transpose(img_nchw, (0, 2, 3, 1)).astype(jnp.float32)   # NCHW -> NHWC
    x = resize_bilinear(x, 128, 128)                                 # F.interpolate to 128x128
    for rb in params["res_blocks"]:
        x = res_block(rb, x)
    for tb in params["transposed_blocks"]:
        x = transposed_block(tb, x)
    x = conv3x3(x, params["final_conv"]["w"], params["final_conv"]["b"])  # (B,32,32,P)
    B, _, _, P = x.shape
    logits = jnp.transpose(x, (0, 3, 1, 2)).reshape(B, P, OUTPUT_SIZE * OUTPUT_SIZE)
    kp, prob = detector_head(logits, params["coord"])
    prob_map = prob.reshape(B, P, OUTPUT_SIZE, OUTPUT_SIZE)
    return {"keypoints": kp, "prob_map": prob_map}


def encoder_forward(params, input_dict, need_masked_img=False, rng=None):
    out = detector_forward(params, input_dict["img"])
    if need_masked_img:
        img = input_dict["img"]
        B, _, _, W = img.shape
        mask = (jax.random.uniform(rng, (B, 1, 16, 16)) > 0.8).astype(img.dtype)
        blk = W // 16
        mask = jnp.repeat(jnp.repeat(mask, blk, axis=2), blk, axis=3)  # nearest upsample
        out["damaged_img"] = img * mask
    return out


# ---------------------------- parameter init --------------------------------

def _kaiming_std(fan_in, a=LEAKY_SLOPE):
    gain = math.sqrt(2.0 / (1.0 + a * a))
    return gain / math.sqrt(fan_in)


def init_conv(key, cin, cout):
    std = _kaiming_std(cin * 9)
    w = jax.random.normal(key, (3, 3, cin, cout), jnp.float32) * std
    return {"w": w, "b": jnp.zeros((cout,), jnp.float32)}


def init_bn(c):
    return {"gamma": jnp.ones((c,), jnp.float32), "beta": jnp.zeros((c,), jnp.float32)}


def gen_grid2d(grid_size, left_end=-1.0, right_end=1.0):
    lin = jnp.linspace(left_end, right_end, grid_size)
    gx, gy = jnp.meshgrid(lin, lin, indexing="ij")
    return jnp.stack([gx.reshape(-1), gy.reshape(-1)], axis=-1).astype(jnp.float32)  # (S*S, 2)


def init_encoder_params(key, n_parts):
    rb_channels = [(3, 64), (64, 128), (128, 256), (256, 512)]
    tb_channels = [(512, 256), (256, 128)]
    keys = iter(jax.random.split(key, 3 * len(rb_channels) + len(tb_channels) + 1))
    res_blocks = []
    for cin, cout in rb_channels:
        res_blocks.append({
            "conv_res": init_conv(next(keys), cin, cout), "bn_res": init_bn(cout),
            "conv1": init_conv(next(keys), cin, cout), "bn1": init_bn(cout),
            "conv2": init_conv(next(keys), cout, cout), "bn2": init_bn(cout),
        })
    transposed_blocks = [{"conv": init_conv(next(keys), cin, cout), "bn": init_bn(cout)}
                         for cin, cout in tb_channels]
    final_conv = init_conv(next(keys), 128, n_parts)
    return {"res_blocks": res_blocks,
            "transposed_blocks": transposed_blocks,
            "final_conv": final_conv,
            "coord": gen_grid2d(OUTPUT_SIZE)}


# ---------------------------------- main -------------------------------------

if __name__ == "__main__":
    n_parts = 4
    key = jax.random.PRNGKey(0)
    k_params, k_img = jax.random.split(key)
    params = init_encoder_params(k_params, n_parts)

    img = jax.random.normal(k_img, (2, 3, 64, 64), jnp.float32)     # NCHW like torch
    out = encoder_forward(params, {"img": img}, need_masked_img=False)

    kp = jax.block_until_ready(out["keypoints"])
    pm = jax.block_until_ready(out["prob_map"])

    assert kp.shape == (2, n_parts, 2)
    assert pm.shape == (2, n_parts, OUTPUT_SIZE, OUTPUT_SIZE)
    assert bool(jnp.all(jnp.isfinite(kp))) and bool(jnp.all(jnp.isfinite(pm)))
    # softmax normalization sanity check
    assert bool(jnp.allclose(pm.sum(axis=(2, 3)), 1.0, atol=1e-4))

    print("KERNEL_OK")
</pallas_src>

<mosaic_0001>
module attributes {stable_mosaic.version = 11 : i64} {
  func.func @_conv3x3_pool2_kernel(%arg0: i32, %arg1: i32, %arg2: memref<1x65x64x12xbf16, #tpu.memory_space<vmem>>, %arg3: memref<1x65x64x12xbf16, #tpu.memory_space<vmem>>, %arg4: memref<4x12x64xbf16, #tpu.memory_space<vmem>>, %arg5: memref<1x64xf32, #tpu.memory_space<vmem>>, %arg6: memref<1x16x64x64xf32, #tpu.memory_space<vmem>>) attributes {dimension_semantics = [#tpu.dimension_semantics<parallel>, #tpu.dimension_semantics<parallel>], iteration_bounds = array<i64: 2, 4>, scalar_prefetch = 0 : i64, scratch_operands = 0 : i64, tpu.core_type = #tpu.core_type<tc>, window_params = [{transform_indices = @transform_0, window_bounds = array<i64: 1, 65, 64, 12>}, {transform_indices = @transform_1, window_bounds = array<i64: 1, 65, 64, 12>}, {pipeline_mode = #tpu.pipeline_mode<synchronous>, transform_indices = @transform_2, window_bounds = array<i64: 4, 12, 64>}, {pipeline_mode = #tpu.pipeline_mode<synchronous>, transform_indices = @transform_3, window_bounds = array<i64: 1, 64>}, {transform_indices = @transform_4, window_bounds = array<i64: 1, 16, 64, 64>}]} {
    %c16_i32 = arith.constant 16 : i32
    %0 = arith.muli %arg1, %c16_i32 : i32
    %1 = tpu.assume_multiple %0, 16 : i32
    %c0_i32 = arith.constant 0 : i32
    %2 = arith.addi %1, %c0_i32 : i32
    %c0 = arith.constant 0 : index
    %3 = arith.index_cast %2 : i32 to index
    %c0_0 = arith.constant 0 : index
    %c0_1 = arith.constant 0 : index
    %4 = vector.load %arg2[%c0, %3, %c0_0, %c0_1] : memref<1x65x64x12xbf16, #tpu.memory_space<vmem>>, vector<1x16x64x12xbf16>
    %5 = vector.shape_cast %4 : vector<1x16x64x12xbf16> to vector<16x64x12xbf16>
    %6 = vector.shape_cast %5 : vector<16x64x12xbf16> to vector<1024x12xbf16>
    %c0_2 = arith.constant 0 : index
    %c0_3 = arith.constant 0 : index
    %c0_4 = arith.constant 0 : index
    %7 = vector.load %arg4[%c0_2, %c0_3, %c0_4] : memref<4x12x64xbf16, #tpu.memory_space<vmem>>, vector<1x12x64xbf16>
    %8 = vector.shape_cast %7 : vector<1x12x64xbf16> to vector<12x64xbf16>
    %cst = arith.constant dense<0.000000e+00> : vector<1024x64xf32>
    %9 = tpu.matmul %6, %8, %cst {dimension_numbers = #tpu.dot_dimension_numbers<[1], [0], [0], [1], [0, 0, 1, 1], [], []>} : vector<1024x12xbf16>, vector<12x64xbf16>, vector<1024x64xf32> -> vector<1024x64xf32>
    %c0_i32_5 = arith.constant 0 : i32
    %10 = arith.addi %1, %c0_i32_5 : i32
    %c0_6 = arith.constant 0 : index
    %11 = arith.index_cast %10 : i32 to index
    %c0_7 = arith.constant 0 : index
    %c0_8 = arith.constant 0 : index
    %12 = vector.load %arg3[%c0_6, %11, %c0_7, %c0_8] : memref<1x65x64x12xbf16, #tpu.memory_space<vmem>>, vector<1x16x64x12xbf16>
    %13 = vector.shape_cast %12 : vector<1x16x64x12xbf16> to vector<16x64x12xbf16>
    %14 = vector.shape_cast %13 : vector<16x64x12xbf16> to vector<1024x12xbf16>
    %c1 = arith.constant 1 : index
    %c0_9 = arith.constant 0 : index
    %c0_10 = arith.constant 0 : index
    %15 = vector.load %arg4[%c1, %c0_9, %c0_10] : memref<4x12x64xbf16, #tpu.memory_space<vmem>>, vector<1x12x64xbf16>
    %16 = vector.shape_cast %15 : vector<1x12x64xbf16> to vector<12x64xbf16>
    %cst_11 = arith.constant dense<0.000000e+00> : vector<1024x64xf32>
    %17 = tpu.matmul %14, %16, %cst_11 {dimension_numbers = #tpu.dot_dimension_numbers<[1], [0], [0], [1], [0, 0, 1, 1], [], []>} : vector<1024x12xbf16>, vector<12x64xbf16>, vector<1024x64xf32> -> vector<1024x64xf32>
    %18 = arith.addf %9, %17 : vector<1024x64xf32>
    %c1_i32 = arith.constant 1 : i32
    %19 = arith.addi %1, %c1_i32 : i32
    %c0_12 = arith.constant 0 : index
    %20 = arith.index_cast %19 : i32 to index
    %c0_13 = arith.constant 0 : index
    %c0_14 = arith.constant 0 : index
    %21 = vector.load %arg2[%c0_12, %20, %c0_13, %c0_14] : memref<1x65x64x12xbf16, #tpu.memory_space<vmem>>, vector<1x16x64x12xbf16>
    %22 = vector.shape_cast %21 : vector<1x16x64x12xbf16> to vector<16x64x12xbf16>
    %23 = vector.shape_cast %22 : vector<16x64x12xbf16> to vector<1024x12xbf16>
    %c2 = arith.constant 2 : index
    %c0_15 = arith.constant 0 : index
    %c0_16 = arith.constant 0 : index
    %24 = vector.load %arg4[%c2, %c0_15, %c0_16] : memref<4x12x64xbf16, #tpu.memory_space<vmem>>, vector<1x12x64xbf16>
    %25 = vector.shape_cast %24 : vector<1x12x64xbf16> to vector<12x64xbf16>
    %cst_17 = arith.constant dense<0.000000e+00> : vector<1024x64xf32>
    %26 = tpu.matmul %23, %25, %cst_17 {dimension_numbers = #tpu.dot_dimension_numbers<[1], [0], [0], [1], [0, 0, 1, 1], [], []>} : vector<1024x12xbf16>, vector<12x64xbf16>, vector<1024x64xf32> -> vector<1024x64xf32>
    %27 = arith.addf %18, %26 : vector<1024x64xf32>
    %c1_i32_18 = arith.constant 1 : i32
    %28 = arith.addi %1, %c1_i32_18 : i32
    %c0_19 = arith.constant 0 : index
    %29 = arith.index_cast %28 : i32 to index
    %c0_20 = arith.constant 0 : index
    %c0_21 = arith.constant 0 : index
    %30 = vector.load %arg3[%c0_19, %29, %c0_20, %c0_21] : memref<1x65x64x12xbf16, #tpu.memory_space<vmem>>, vector<1x16x64x12xbf16>
    %31 = vector.shape_cast %30 : vector<1x16x64x12xbf16> to vector<16x64x12xbf16>
    %32 = vector.shape_cast %31 : vector<16x64x12xbf16> to vector<1024x12xbf16>
    %c3 = arith.constant 3 : index
    %c0_22 = arith.constant 0 : index
    %c0_23 = arith.constant 0 : index
    %33 = vector.load %arg4[%c3, %c0_22, %c0_23] : memref<4x12x64xbf16, #tpu.memory_space<vmem>>, vector<1x12x64xbf16>
    %34 = vector.shape_cast %33 : vector<1x12x64xbf16> to vector<12x64xbf16>
    %cst_24 = arith.constant dense<0.000000e+00> : vector<1024x64xf32>
    %35 = tpu.matmul %32, %34, %cst_24 {dimension_numbers = #tpu.dot_dimension_numbers<[1], [0], [0], [1], [0, 0, 1, 1], [], []>} : vector<1024x12xbf16>, vector<12x64xbf16>, vector<1024x64xf32> -> vector<1024x64xf32>
    %36 = arith.addf %27, %35 : vector<1024x64xf32>
    %c0_25 = arith.constant 0 : index
    %c0_26 = arith.constant 0 : index
    %37 = vector.load %arg5[%c0_25, %c0_26] : memref<1x64xf32, #tpu.memory_space<vmem>>, vector<1x64xf32>
    %38 = vector.broadcast %37 : vector<1x64xf32> to vector<1024x64xf32>
    %39 = arith.addf %36, %38 : vector<1024x64xf32>
    %40 = vector.shape_cast %39 : vector<1024x64xf32> to vector<16x64x64xf32>
    %c0_27 = arith.constant 0 : index
    %c0_28 = arith.constant 0 : index
    %c0_29 = arith.constant 0 : index
    %c0_30 = arith.constant 0 : index
    %41 = vector.load %arg6[%c0_27, %c0_28, %c0_29, %c0_30] : memref<1x16x64x64xf32, #tpu.memory_space<vmem>>, vector<1x16x64x64xf32>
    %42 = vector.shape_cast %41 : vector<1x16x64x64xf32> to vector<16x64x64xf32>
    %43 = vector.shape_cast %40 : vector<16x64x64xf32> to vector<1x16x64x64xf32>
    tpu.vector_store %arg6[%c0_27, %c0_28, %c0_29, %c0_30], %43 {strides = array<i32>} : memref<1x16x64x64xf32, #tpu.memory_space<vmem>>, vector<1x16x64x64xf32>,
    return
  }
  func.func @transform_0(%arg0: i32, %arg1: i32) -> (i32, i32, i32, i32) {
    %c0_i32 = arith.constant 0 : i32
    %c0_i32_0 = arith.constant 0 : i32
    %c0_i32_1 = arith.constant 0 : i32
    %c0_i32_2 = arith.constant 0 : i32
    return %arg0, %c0_i32, %c0_i32_0, %c0_i32_1 : i32, i32, i32, i32
  }
  func.func @transform_1(%arg0: i32, %arg1: i32) -> (i32, i32, i32, i32) {
    %c0_i32 = arith.constant 0 : i32
    %c0_i32_0 = arith.constant 0 : i32
    %c0_i32_1 = arith.constant 0 : i32
    %c0_i32_2 = arith.constant 0 : i32
    return %arg0, %c0_i32, %c0_i32_0, %c0_i32_1 : i32, i32, i32, i32
  }
  func.func @transform_2(%arg0: i32, %arg1: i32) -> (i32, i32, i32) {
    %c0_i32 = arith.constant 0 : i32
    %c0_i32_0 = arith.constant 0 : i32
    %c0_i32_1 = arith.constant 0 : i32
    %c0_i32_2 = arith.constant 0 : i32
    return %c0_i32, %c0_i32_0, %c0_i32_1 : i32, i32, i32
  }
  func.func @transform_3(%arg0: i32, %arg1: i32) -> (i32, i32) {
    %c0_i32 = arith.constant 0 : i32
    %c0_i32_0 = arith.constant 0 : i32
    %c0_i32_1 = arith.constant 0 : i32
    return %c0_i32, %c0_i32_0 : i32, i32
  }
  func.func @transform_4(%arg0: i32, %arg1: i32) -> (i32, i32, i32, i32) {
    %c0_i32 = arith.constant 0 : i32
    %c0_i32_0 = arith.constant 0 : i32
    %c0_i32_1 = arith.constant 0 : i32
    return %arg0, %arg1, %c0_i32, %c0_i32_0 : i32, i32, i32, i32
  }
}

</mosaic_0001>

<llo_original>
// kernel: tpu_custom_call.1
$region0: #{tpu_custom_call.1}
  #allocation0 [shape = 'u32[]', space=smem, size = 0x4, offset = 0x4, fixed_abs, tag = 'smem constant byte address 0x4 - core index']
  #allocation1 [shape = 'u32[72,128]{1,0:T(1,128)}', space=vmem, size = 0x9000, scoped, tag = 'internal scratch']
  %s0 = inlined_call_operand.vmem [shape: bf16[2,65,64,12], index: 0, kind: input, shape index: {}]
  %s1 = inlined_call_operand.vmem [shape: bf16[2,65,64,12], index: 1, kind: input, shape index: {}]
  %s2 = inlined_call_operand.vmem [shape: bf16[4,12,64], index: 2, kind: input, shape index: {}]
  %s3 = inlined_call_operand.vmem [shape: f32[1,64], index: 3, kind: input, shape index: {}]
  %s4 = inlined_call_operand.hbm [shape: f32[2,64,64,64], index: 4, kind: output, shape index: {}]
  %s5 = sld [smem:[#allocation0]]
  $region49: #{tpu_custom_call.1} parent=0
    _
  %s7 = ssub.s32 1, %s5
  %s8 = scalar_select 0, %s7, %s5
  $region1: #{tpu_custom_call.1} parent=0
    #allocation2 [shape = 'u8[1048576]{0}', space=vmem, size = 0x100000, scoped, tag = 'output window, operand 0']
    #allocation3 [shape = 's32[2]{0}', space=sflag, size = 0x8, scoped, tag = 'scoped memory for tpu_custom_call.1']
    %9 = vsyncpa [#allocation3], 0
    %s10 = scalar_lea.sflag [#allocation3], 1
    %11 = vsyncpa %s10, 0
    loop: start=0, step=1, limit=10
    $region2: #{tpu_custom_call.1} parent=1 // loop_pre_header
      _
    $region3: #{tpu_custom_call.1} parent=1 // loop_header
      %s13 = sphi 0, %s17
      %p14 = scmp.ge.s32.totalorder %s13, 10
      %s20 = sphi 0, %s32
      %s21 = sphi 0, %s28
      %s22 = sphi 0, %s20
      %s23 = sphi 0, %s21
      %s24 = sphi 0, %s22
      %s25 = sphi 0, %s23
      %s35 = sphi 0, %s37
      %s38 = sphi 0, %s35
      %s39 = sphi 0, %s38
      %s55 = sphi 0, %s39
      %s61 = sphi 0, %s63
      %s64 = sphi 0, %s61
      %s65 = sphi 0, %s64
      %s81 = sphi 0, %s65
      %s85 = sphi 0, %s85
      %s87 = sphi 0, %s85
      %s88 = sphi 0, %s87
      %s102 = sphi 0, %s88
      %s106 = sphi 0, %s106
      %s108 = sphi 0, %s106
      %s109 = sphi 0, %s108
      %s123 = sphi 0, %s109
      %s131 = sphi 0, %s133
      %s134 = sphi 0, %s131
      %s135 = sphi 0, %s134
      %s151 = sphi 0, %s135
    $region4: #{tpu_custom_call.1} parent=1 // loop_header_branch
      %16 = sbr.rel (%p14) target = $region8
    $region5: #{tpu_custom_call.1} parent=1 // loop_body
      %s18 = ssub.s32 %s13, 1
      %s19 = ssub.s32 %s13, 2
      %s26 = sadd.s32 1, %s21
      %p27 = scmp.ge.s32.totalorder %s26, 4
      %s28 = scalar_select %p27, 0, %s26
      %s29 = sadd.s32 1, %s20
      %s30 = scalar_select %p27, %s29, %s20
      %p31 = scmp.ge.s32.totalorder %s30, 2
      %s32 = scalar_select %p31, 0, %s30
      %s33 = ssub.s32 %s20, %s32
      %p34 = scmp.eq.s32.totalorder %s33, 0
      %s36 = sadd.s32 %s35, 1
      %s37 = scalar_select %p34, %s35, %s36
      %p40 = pneg %p34
      %p41 = scmp.eq.s32.totalorder %s13, 7
      %p42 = por %p40, %p41
      %p43 = scmp.ne.s32.totalorder %s35, %s38
      %p44 = scmp.eq.s32.totalorder %s13, 0
      %p45 = por %p43, %p44
      %p46 = scmp.ne.s32.totalorder %s35, %s38
      %p47 = scmp.eq.s32.totalorder %s18, 7
      %p48 = por %p46, %p47
      %p49 = scmp.ne.s32.totalorder %s38, %s39
      %p50 = scmp.eq.s32.totalorder %s18, 0
      %p51 = por %p49, %p50
      %p52 = scmp.ne.s32.totalorder %s38, %s39
      %p53 = scmp.eq.s32.totalorder %s19, 7
      %p54 = por %p52, %p53
      %p56 = scmp.ne.s32.totalorder %s39, %s55
      %p57 = scmp.eq.s32.totalorder %s19, 0
      %p58 = por %p56, %p57
      %s59 = ssub.s32 %s20, %s32
      %p60 = scmp.eq.s32.totalorder %s59, 0
      %s62 = sadd.s32 %s61, 1
      %s63 = scalar_select %p60, %s61, %s62
      %p66 = pneg %p60
      %p67 = scmp.eq.s32.totalorder %s13, 7
      %p68 = por %p66, %p67
      %p69 = scmp.ne.s32.totalorder %s61, %s64
      %p70 = scmp.eq.s32.totalorder %s13, 0
      %p71 = por %p69, %p70
      %p72 = scmp.ne.s32.totalorder %s61, %s64
      %p73 = scmp.eq.s32.totalorder %s18, 7
      %p74 = por %p72, %p73
      %p75 = scmp.ne.s32.totalorder %s64, %s65
      %p76 = scmp.eq.s32.totalorder %s18, 0
      %p77 = por %p75, %p76
      %p78 = scmp.ne.s32.totalorder %s64, %s65
      %p79 = scmp.eq.s32.totalorder %s19, 7
      %p80 = por %p78, %p79
      %p82 = scmp.ne.s32.totalorder %s65, %s81
      %p83 = scmp.eq.s32.totalorder %s19, 0
      %p84 = por %p82, %p83
      %s86 = sadd.s32 %s85, 1
      %p89 = scmp.eq.s32.totalorder %s13, 7
      %p90 = scmp.ne.s32.totalorder %s85, %s87
      %p91 = scmp.eq.s32.totalorder %s13, 0
      %p92 = por %p90, %p91
      %p93 = scmp.ne.s32.totalorder %s85, %s87
      %p94 = scmp.eq.s32.totalorder %s18, 7
      %p95 = por %p93, %p94
      %p96 = scmp.ne.s32.totalorder %s87, %s88
      %p97 = scmp.eq.s32.totalorder %s18, 0
      %p98 = por %p96, %p97
      %p99 = scmp.ne.s32.totalorder %s87, %s88
      %p100 = scmp.eq.s32.totalorder %s19, 7
      %p101 = por %p99, %p100
      %p103 = scmp.ne.s32.totalorder %s88, %s102
      %p104 = scmp.eq.s32.totalorder %s19, 0
      %p105 = por %p103, %p104
      %s107 = sadd.s32 %s106, 1
      %p110 = scmp.eq.s32.totalorder %s13, 7
      %p111 = scmp.ne.s32.totalorder %s106, %s108
      %p112 = scmp.eq.s32.totalorder %s13, 0
      %p113 = por %p111, %p112
      %p114 = scmp.ne.s32.totalorder %s106, %s108
      %p115 = scmp.eq.s32.totalorder %s18, 7
      %p116 = por %p114, %p115
      %p117 = scmp.ne.s32.totalorder %s108, %s109
      %p118 = scmp.eq.s32.totalorder %s18, 0
      %p119 = por %p117, %p118
      %p120 = scmp.ne.s32.totalorder %s108, %s109
      %p121 = scmp.eq.s32.totalorder %s19, 7
      %p122 = por %p120, %p121
      %p124 = scmp.ne.s32.totalorder %s109, %s123
      %p125 = scmp.eq.s32.totalorder %s19, 0
      %p126 = por %p124, %p125
      %s127 = ssub.s32 %s20, %s32
      %s128 = ssub.s32 %s21, %s28
      %s129 = sor.u32 %s127, %s128
      %p130 = scmp.eq.s32.totalorder %s129, 0
      %s132 = sadd.s32 %s131, 1
      %s133 = scalar_select %p130, %s131, %s132
      %p136 = pneg %p130
      %p137 = scmp.eq.s32.totalorder %s13, 7
      %p138 = por %p136, %p137
      %p139 = scmp.ne.s32.totalorder %s131, %s134
      %p140 = scmp.eq.s32.totalorder %s13, 0
      %p141 = por %p139, %p140
      %p142 = scmp.ne.s32.totalorder %s131, %s134
      %p143 = scmp.eq.s32.totalorder %s18, 7
      %p144 = por %p142, %p143
      %p145 = scmp.ne.s32.totalorder %s134, %s135
      %p146 = scmp.eq.s32.totalorder %s18, 0
      %p147 = por %p145, %p146
      %p148 = scmp.ne.s32.totalorder %s134, %s135
      %p149 = scmp.eq.s32.totalorder %s19, 7
      %p150 = por %p148, %p149
      %p152 = scmp.ne.s32.totalorder %s135, %s151
      %p153 = scmp.eq.s32.totalorder %s19, 0
      %p154 = por %p152, %p153
      %p155 = scmp.le.s32.totalorder 1, %s13
      %p156 = scmp.lt.s32.totalorder %s13, 9
      %p157 = pnand %p155, %p156
      %p158 = pneg %p157
      // Predicated region
      $region9: #{tpu_custom_call.1} parent=5 // pred_check
        _
      $region10: #{tpu_custom_call.1} parent=5 // pred_check_branch
        %160 = sbr.rel (%p157) target = $region12
      $region11: #{tpu_custom_call.1} parent=5 // pred_region
        %s161 = ssub.s32 %s13, 1
        // Predicated region
        $region13: #{tpu_custom_call.1} parent=11 // pred_check
          %p162 = pneg %p98
        $region14: #{tpu_custom_call.1} parent=11 // pred_check_branch
          %164 = sbr.rel (%p162) target = $region16
        $region15: #{tpu_custom_call.1} parent=11 // pred_region
          _
        $region16: #{tpu_custom_call.1} parent=11 // pred_fallthru
          _
        // Predicated region
        $region17: #{tpu_custom_call.1} parent=11 // pred_check
          %p165 = pneg %p119
        $region18: #{tpu_custom_call.1} parent=11 // pred_check_branch
          %167 = sbr.rel (%p165) target = $region20
        $region19: #{tpu_custom_call.1} parent=11 // pred_region
          _
        $region20: #{tpu_custom_call.1} parent=11 // pred_fallthru
          _
      $region12: #{tpu_custom_call.1} parent=5 // pred_fallthru
        _
      %p168 = scmp.lt.s32.totalorder %s13, 8
      // Predicated region
      $region21: #{tpu_custom_call.1} parent=5 // pred_check
        %p169 = pneg %p168
      $region22: #{tpu_custom_call.1} parent=5 // pred_check_branch
        %171 = sbr.rel (%p169) target = $region24
      $region23: #{tpu_custom_call.1} parent=5 // pred_region
        // Predicated region
        $region25: #{tpu_custom_call.1} parent=23 // pred_check
          %p172 = pneg %p45
        $region26: #{tpu_custom_call.1} parent=23 // pred_check_branch
          %174 = sbr.rel (%p172) target = $region28
        $region27: #{tpu_custom_call.1} parent=23 // pred_region
          %p175 = scmp.lt.s32.totalorder %s20, 1
          %s176 = scalar_select %p175, %s20, 1
          %s177 = smul.addr %s176, 520
          %s178 = smul.addr %s177, 4
          %s179 = scalar_lea.vmem %s0, %s178
        $region28: #{tpu_custom_call.1} parent=23 // pred_fallthru
          _
        // Predicated region
        $region29: #{tpu_custom_call.1} parent=23 // pred_check
          %p180 = pneg %p71
        $region30: #{tpu_custom_call.1} parent=23 // pred_check_branch
          %182 = sbr.rel (%p180) target = $region32
        $region31: #{tpu_custom_call.1} parent=23 // pred_region
          %p183 = scmp.lt.s32.totalorder %s20, 1
          %s184 = scalar_select %p183, %s20, 1
          %s185 = smul.addr %s184, 520
          %s186 = smul.addr %s185, 4
          %s187 = scalar_lea.vmem %s1, %s186
        $region32: #{tpu_custom_call.1} parent=23 // pred_fallthru
          _
      $region24: #{tpu_custom_call.1} parent=5 // pred_fallthru
        _
      %p188 = scmp.le.s32.totalorder 1, %s13
      %p189 = scmp.lt.s32.totalorder %s13, 9
      %p190 = pnand %p188, %p189
      %p191 = pneg %p190
      // Predicated region
      $region33: #{tpu_custom_call.1} parent=5 // pred_check
        _
      $region34: #{tpu_custom_call.1} parent=5 // pred_check_branch
        %193 = sbr.rel (%p190) target = $region36
      $region35: #{tpu_custom_call.1} parent=5 // pred_region
        %s194 = ssub.s32 %s13, 1
        %p195 = scmp.lt.s32.totalorder %s22, 1
        %s196 = scalar_select %p195, %s22, 1
        %s197 = smul.addr %s196, 520
        %s198 = smul.addr %s197, 4
        %s199 = scalar_lea.vmem %s0, %s198
        %p200 = pneg %p51
        %p201 = pneg %p48
        %p202 = scmp.lt.s32.totalorder %s22, 1
        %s203 = scalar_select %p202, %s22, 1
        %s204 = smul.addr %s203, 520
        %s205 = smul.addr %s204, 4
        %s206 = scalar_lea.vmem %s1, %s205
        %p207 = pneg %p77
        %p208 = pneg %p74
        %p209 = pneg %p98
        %p210 = pneg %p95
        %p211 = pneg %p119
        %p212 = pneg %p116
        %p213 = pneg %p147
        %p214 = pneg %p144
        %s215 = sand.u32 %s134, 1
        %s216 = scalar_lea.sflag [#allocation3], %s215
        %s217 = sand.u32 %s134, 1
        %s218 = smul.addr %s217, 1024
        %s219 = scalar_lea.vmem [#allocation2], %s218
        %p220 = scmp.lt.s32.totalorder %s22, 1
        %s221 = scalar_select %p220, %s22, 1
        %s222 = smul.addr %s221, 520
        %s223 = smul.addr %s222, 4
        %s224 = scalar_lea.vmem %s0, %s223
        %p225 = scmp.lt.s32.totalorder %s22, 1
        %s226 = scalar_select %p225, %s22, 1
        %s227 = smul.addr %s226, 520
        %s228 = smul.addr %s227, 4
        %s229 = scalar_lea.vmem %s1, %s228
        %s230 = smul.u32 16, %s23
        %s232 = smul.u32 %s23, 16
        %s233 = smul.u32 %s232, 8
        %s234 = smul.addr %s233, 4
        %s235 = scalar_lea.vmem %s224, %s234
        %v236 = vld [vmem:[%s235] sm:$0xf]
        %v237 = vld [vmem:[%s235 + $0x4] sm:$0xf]
        %v238 = vld [vmem:[%s235 + $0x8] sm:$0xf]
        %v239 = vld [vmem:[%s235 + $0xc] sm:$0xf]
        %v240 = vld [vmem:[%s235 + $0x10] sm:$0xf]
        %v241 = vld [vmem:[%s235 + $0x14] sm:$0xf]
        %v242 = vld [vmem:[%s235 + $0x18] sm:$0xf]
        %v243 = vld [vmem:[%s235 + $0x1c] sm:$0xf]
        %v244 = vld [vmem:[%s235 + $0x20] sm:$0xf]
        %v245 = vld [vmem:[%s235 + $0x24] sm:$0xf]
        %v246 = vld [vmem:[%s235 + $0x28] sm:$0xf]
        %v247 = vld [vmem:[%s235 + $0x2c] sm:$0xf]
        %v248 = vld [vmem:[%s235 + $0x30] sm:$0xf]
        %v249 = vld [vmem:[%s235 + $0x34] sm:$0xf]
        %v250 = vld [vmem:[%s235 + $0x38] sm:$0xf]
        %v251 = vld [vmem:[%s235 + $0x3c] sm:$0xf]
        %v252 = vld [vmem:[%s235 + $0x40] sm:$0xf]
        %v253 = vld [vmem:[%s235 + $0x44] sm:$0xf]
        %v254 = vld [vmem:[%s235 + $0x48] sm:$0xf]
        %v255 = vld [vmem:[%s235 + $0x4c] sm:$0xf]
        %v256 = vld [vmem:[%s235 + $0x50] sm:$0xf]
        %v257 = vld [vmem:[%s235 + $0x54] sm:$0xf]
        %v258 = vld [vmem:[%s235 + $0x58] sm:$0xf]
        %v259 = vld [vmem:[%s235 + $0x5c] sm:$0xf]
        %v260 = vld [vmem:[%s235 + $0x60] sm:$0xf]
        %v261 = vld [vmem:[%s235 + $0x64] sm:$0xf]
        %v262 = vld [vmem:[%s235 + $0x68] sm:$0xf]
        %v263 = vld [vmem:[%s235 + $0x6c] sm:$0xf]
        %v264 = vld [vmem:[%s235 + $0x70] sm:$0xf]
        %v265 = vld [vmem:[%s235 + $0x74] sm:$0xf]
        %v266 = vld [vmem:[%s235 + $0x78] sm:$0xf]
        %v267 = vld [vmem:[%s235 + $0x7c] sm:$0xf]
        %v268 = vld [vmem:[%s235 + $0x80] sm:$0xf]
        %v269 = vld [vmem:[%s235 + $0x84] sm:$0xf]
        %v270 = vld [vmem:[%s235 + $0x88] sm:$0xf]
        %v271 = vld [vmem:[%s235 + $0x8c] sm:$0xf]
        %v272 = vld [vmem:[%s235 + $0x90] sm:$0xf]
        %v273 = vld [vmem:[%s235 + $0x94] sm:$0xf]
        %v274 = vld [vmem:[%s235 + $0x98] sm:$0xf]
        %v275 = vld [vmem:[%s235 + $0x9c] sm:$0xf]
        %v276 = vld [vmem:[%s235 + $0xa0] sm:$0xf]
        %v277 = vld [vmem:[%s235 + $0xa4] sm:$0xf]
        %v278 = vld [vmem:[%s235 + $0xa8] sm:$0xf]
        %v279 = vld [vmem:[%s235 + $0xac] sm:$0xf]
        %v280 = vld [vmem:[%s235 + $0xb0] sm:$0xf]
        %v281 = vld [vmem:[%s235 + $0xb4] sm:$0xf]
        %v282 = vld [vmem:[%s235 + $0xb8] sm:$0xf]
        %v283 = vld [vmem:[%s235 + $0xbc] sm:$0xf]
        %v284 = vld [vmem:[%s235 + $0xc0] sm:$0xf]
        %v285 = vld [vmem:[%s235 + $0xc4] sm:$0xf]
        %v286 = vld [vmem:[%s235 + $0xc8] sm:$0xf]
        %v287 = vld [vmem:[%s235 + $0xcc] sm:$0xf]
        %v288 = vld [vmem:[%s235 + $0xd0] sm:$0xf]
        %v289 = vld [vmem:[%s235 + $0xd4] sm:$0xf]
        %v290 = vld [vmem:[%s235 + $0xd8] sm:$0xf]
        %v291 = vld [vmem:[%s235 + $0xdc] sm:$0xf]
        %v292 = vld [vmem:[%s235 + $0xe0] sm:$0xf]
        %v293 = vld [vmem:[%s235 + $0xe4] sm:$0xf]
        %v294 = vld [vmem:[%s235 + $0xe8] sm:$0xf]
        %v295 = vld [vmem:[%s235 + $0xec] sm:$0xf]
        %v296 = vld [vmem:[%s235 + $0xf0] sm:$0xf]
        %v297 = vld [vmem:[%s235 + $0xf4] sm:$0xf]
        %v298 = vld [vmem:[%s235 + $0xf8] sm:$0xf]
        %v299 = vld [vmem:[%s235 + $0xfc] sm:$0xf]
        %v300 = vld [vmem:[%s235 + $0x100] sm:$0xf]
        %v301 = vld [vmem:[%s235 + $0x104] sm:$0xf]
        %v302 = vld [vmem:[%s235 + $0x108] sm:$0xf]
        %v303 = vld [vmem:[%s235 + $0x10c] sm:$0xf]
        %v304 = vld [vmem:[%s235 + $0x110] sm:$0xf]
        %v305 = vld [vmem:[%s235 + $0x114] sm:$0xf]
        %v306 = vld [vmem:[%s235 + $0x118] sm:$0xf]
        %v307 = vld [vmem:[%s235 + $0x11c] sm:$0xf]
        %v308 = vld [vmem:[%s235 + $0x120] sm:$0xf]
        %v309 = vld [vmem:[%s235 + $0x124] sm:$0xf]
        %v310 = vld [vmem:[%s235 + $0x128] sm:$0xf]
        %v311 = vld [vmem:[%s235 + $0x12c] sm:$0xf]
        %v312 = vld [vmem:[%s235 + $0x130] sm:$0xf]
        %v313 = vld [vmem:[%s235 + $0x134] sm:$0xf]
        %v314 = vld [vmem:[%s235 + $0x138] sm:$0xf]
        %v315 = vld [vmem:[%s235 + $0x13c] sm:$0xf]
        %v316 = vld [vmem:[%s235 + $0x140] sm:$0xf]
        %v317 = vld [vmem:[%s235 + $0x144] sm:$0xf]
        %v318 = vld [vmem:[%s235 + $0x148] sm:$0xf]
        %v319 = vld [vmem:[%s235 + $0x14c] sm:$0xf]
        %v320 = vld [vmem:[%s235 + $0x150] sm:$0xf]
        %v321 = vld [vmem:[%s235 + $0x154] sm:$0xf]
        %v322 = vld [vmem:[%s235 + $0x158] sm:$0xf]
        %v323 = vld [vmem:[%s235 + $0x15c] sm:$0xf]
        %v324 = vld [vmem:[%s235 + $0x160] sm:$0xf]
        %v325 = vld [vmem:[%s235 + $0x164] sm:$0xf]
        %v326 = vld [vmem:[%s235 + $0x168] sm:$0xf]
        %v327 = vld [vmem:[%s235 + $0x16c] sm:$0xf]
        %v328 = vld [vmem:[%s235 + $0x170] sm:$0xf]
        %v329 = vld [vmem:[%s235 + $0x174] sm:$0xf]
        %v330 = vld [vmem:[%s235 + $0x178] sm:$0xf]
        %v331 = vld [vmem:[%s235 + $0x17c] sm:$0xf]
        %v332 = vld [vmem:[%s235 + $0x180] sm:$0xf]
        %v333 = vld [vmem:[%s235 + $0x184] sm:$0xf]
        %v334 = vld [vmem:[%s235 + $0x188] sm:$0xf]
        %v335 = vld [vmem:[%s235 + $0x18c] sm:$0xf]
        %v336 = vld [vmem:[%s235 + $0x190] sm:$0xf]
        %v337 = vld [vmem:[%s235 + $0x194] sm:$0xf]
        %v338 = vld [vmem:[%s235 + $0x198] sm:$0xf]
        %v339 = vld [vmem:[%s235 + $0x19c] sm:$0xf]
        %v340 = vld [vmem:[%s235 + $0x1a0] sm:$0xf]
        %v341 = vld [vmem:[%s235 + $0x1a4] sm:$0xf]
        %v342 = vld [vmem:[%s235 + $0x1a8] sm:$0xf]
        %v343 = vld [vmem:[%s235 + $0x1ac] sm:$0xf]
        %v344 = vld [vmem:[%s235 + $0x1b0] sm:$0xf]
        %v345 = vld [vmem:[%s235 + $0x1b4] sm:$0xf]
        %v346 = vld [vmem:[%s235 + $0x1b8] sm:$0xf]
        %v347 = vld [vmem:[%s235 + $0x1bc] sm:$0xf]
        %v348 = vld [vmem:[%s235 + $0x1c0] sm:$0xf]
        %v349 = vld [vmem:[%s235 + $0x1c4] sm:$0xf]
        %v350 = vld [vmem:[%s235 + $0x1c8] sm:$0xf]
        %v351 = vld [vmem:[%s235 + $0x1cc] sm:$0xf]
        %v352 = vld [vmem:[%s235 + $0x1d0] sm:$0xf]
        %v353 = vld [vmem:[%s235 + $0x1d4] sm:$0xf]
        %v354 = vld [vmem:[%s235 + $0x1d8] sm:$0xf]
        %v355 = vld [vmem:[%s235 + $0x1dc] sm:$0xf]
        %v356 = vld [vmem:[%s235 + $0x1e0] sm:$0xf]
        %v357 = vld [vmem:[%s235 + $0x1e4] sm:$0xf]
        %v358 = vld [vmem:[%s235 + $0x1e8] sm:$0xf]
        %v359 = vld [vmem:[%s235 + $0x1ec] sm:$0xf]
        %v360 = vld [vmem:[%s235 + $0x1f0] sm:$0xf]
        %v361 = vld [vmem:[%s235 + $0x1f4] sm:$0xf]
        %v362 = vld [vmem:[%s235 + $0x1f8] sm:$0xf]
        %v363 = vld [vmem:[%s235 + $0x1fc] sm:$0xf]
        %v364 = vld [vmem:[%s2] sm:$0xf]
        %v365 = vld [vmem:[%s2 + $0x4] sm:$0x3]
        %s366 = smul.addr %s233, 4
        %s367 = scalar_lea.vmem %s229, %s366
        %v368 = vld [vmem:[%s367] sm:$0xf]
        %v369 = vld [vmem:[%s367 + $0x4] sm:$0xf]
        %v370 = vld [vmem:[%s367 + $0x8] sm:$0xf]
        %v371 = vld [vmem:[%s367 + $0xc] sm:$0xf]
        %v372 = vld [vmem:[%s367 + $0x10] sm:$0xf]
        %v373 = vld [vmem:[%s367 + $0x14] sm:$0xf]
        %v374 = vld [vmem:[%s367 + $0x18] sm:$0xf]
        %v375 = vld [vmem:[%s367 + $0x1c] sm:$0xf]
        %v376 = vld [vmem:[%s367 + $0x20] sm:$0xf]
        %v377 = vld [vmem:[%s367 + $0x24] sm:$0xf]
        %v378 = vld [vmem:[%s367 + $0x28] sm:$0xf]
        %v379 = vld [vmem:[%s367 + $0x2c] sm:$0xf]
        %v380 = vld [vmem:[%s367 + $0x30] sm:$0xf]
        %v381 = vld [vmem:[%s367 + $0x34] sm:$0xf]
        %v382 = vld [vmem:[%s367 + $0x38] sm:$0xf]
        %v383 = vld [vmem:[%s367 + $0x3c] sm:$0xf]
        %v384 = vld [vmem:[%s367 + $0x40] sm:$0xf]
        %v385 = vld [vmem:[%s367 + $0x44] sm:$0xf]
        %v386 = vld [vmem:[%s367 + $0x48] sm:$0xf]
        %v387 = vld [vmem:[%s367 + $0x4c] sm:$0xf]
        %v388 = vld [vmem:[%s367 + $0x50] sm:$0xf]
        %v389 = vld [vmem:[%s367 + $0x54] sm:$0xf]
        %v390 = vld [vmem:[%s367 + $0x58] sm:$0xf]
        %v391 = vld [vmem:[%s367 + $0x5c] sm:$0xf]
        %v392 = vld [vmem:[%s367 + $0x60] sm:$0xf]
        %v393 = vld [vmem:[%s367 + $0x64] sm:$0xf]
        %v394 = vld [vmem:[%s367 + $0x68] sm:$0xf]
        %v395 = vld [vmem:[%s367 + $0x6c] sm:$0xf]
        %v396 = vld [vmem:[%s367 + $0x70] sm:$0xf]
        %v397 = vld [vmem:[%s367 + $0x74] sm:$0xf]
        %v398 = vld [vmem:[%s367 + $0x78] sm:$0xf]
        %v399 = vld [vmem:[%s367 + $0x7c] sm:$0xf]
        %v400 = vld [vmem:[%s367 + $0x80] sm:$0xf]
        %v401 = vld [vmem:[%s367 + $0x84] sm:$0xf]
        %v402 = vld [vmem:[%s367 + $0x88] sm:$0xf]
        %v403 = vld [vmem:[%s367 + $0x8c] sm:$0xf]
        %v404 = vld [vmem:[%s367 + $0x90] sm:$0xf]
        %v405 = vld [vmem:[%s367 + $0x94] sm:$0xf]
        %v406 = vld [vmem:[%s367 + $0x98] sm:$0xf]
        %v407 = vld [vmem:[%s367 + $0x9c] sm:$0xf]
        %v408 = vld [vmem:[%s367 + $0xa0] sm:$0xf]
        %v409 = vld [vmem:[%s367 + $0xa4] sm:$0xf]
        %v410 = vld [vmem:[%s367 + $0xa8] sm:$0xf]
        %v411 = vld [vmem:[%s367 + $0xac] sm:$0xf]
        %v412 = vld [vmem:[%s367 + $0xb0] sm:$0xf]
        %v413 = vld [vmem:[%s367 + $0xb4] sm:$0xf]
        %v414 = vld [vmem:[%s367 + $0xb8] sm:$0xf]
        %v415 = vld [vmem:[%s367 + $0xbc] sm:$0xf]
        %v416 = vld [vmem:[%s367 + $0xc0] sm:$0xf]
        %v417 = vld [vmem:[%s367 + $0xc4] sm:$0xf]
        %v418 = vld [vmem:[%s367 + $0xc8] sm:$0xf]
        %v419 = vld [vmem:[%s367 + $0xcc] sm:$0xf]
        %v420 = vld [vmem:[%s367 + $0xd0] sm:$0xf]
        %v421 = vld [vmem:[%s367 + $0xd4] sm:$0xf]
        %v422 = vld [vmem:[%s367 + $0xd8] sm:$0xf]
        %v423 = vld [vmem:[%s367 + $0xdc] sm:$0xf]
        %v424 = vld [vmem:[%s367 + $0xe0] sm:$0xf]
        %v425 = vld [vmem:[%s367 + $0xe4] sm:$0xf]
        %v426 = vld [vmem:[%s367 + $0xe8] sm:$0xf]
        %v427 = vld [vmem:[%s367 + $0xec] sm:$0xf]
        %v428 = vld [vmem:[%s367 + $0xf0] sm:$0xf]
        %v429 = vld [vmem:[%s367 + $0xf4] sm:$0xf]
        %v430 = vld [vmem:[%s367 + $0xf8] sm:$0xf]
        %v431 = vld [vmem:[%s367 + $0xfc] sm:$0xf]
        %v432 = vld [vmem:[%s367 + $0x100] sm:$0xf]
        %v433 = vld [vmem:[%s367 + $0x104] sm:$0xf]
        %v434 = vld [vmem:[%s367 + $0x108] sm:$0xf]
        %v435 = vld [vmem:[%s367 + $0x10c] sm:$0xf]
        %v436 = vld [vmem:[%s367 + $0x110] sm:$0xf]
        %v437 = vld [vmem:[%s367 + $0x114] sm:$0xf]
        %v438 = vld [vmem:[%s367 + $0x118] sm:$0xf]
        %v439 = vld [vmem:[%s367 + $0x11c] sm:$0xf]
        %v440 = vld [vmem:[%s367 + $0x120] sm:$0xf]
        %v441 = vld [vmem:[%s367 + $0x124] sm:$0xf]
        %v442 = vld [vmem:[%s367 + $0x128] sm:$0xf]
        %v443 = vld [vmem:[%s367 + $0x12c] sm:$0xf]
        %v444 = vld [vmem:[%s367 + $0x130] sm:$0xf]
        %v445 = vld [vmem:[%s367 + $0x134] sm:$0xf]
        %v446 = vld [vmem:[%s367 + $0x138] sm:$0xf]
        %v447 = vld [vmem:[%s367 + $0x13c] sm:$0xf]
        %v448 = vld [vmem:[%s367 + $0x140] sm:$0xf]
        %v449 = vld [vmem:[%s367 + $0x144] sm:$0xf]
        %v450 = vld [vmem:[%s367 + $0x148] sm:$0xf]
        %v451 = vld [vmem:[%s367 + $0x14c] sm:$0xf]
        %v452 = vld [vmem:[%s367 + $0x150] sm:$0xf]
        %v453 = vld [vmem:[%s367 + $0x154] sm:$0xf]
        %v454 = vld [vmem:[%s367 + $0x158] sm:$0xf]
        %v455 = vld [vmem:[%s367 + $0x15c] sm:$0xf]
        %v456 = vld [vmem:[%s367 + $0x160] sm:$0xf]
        %v457 = vld [vmem:[%s367 + $0x164] sm:$0xf]
        %v458 = vld [vmem:[%s367 + $0x168] sm:$0xf]
        %v459 = vld [vmem:[%s367 + $0x16c] sm:$0xf]
        %v460 = vld [vmem:[%s367 + $0x170] sm:$0xf]
        %v461 = vld [vmem:[%s367 + $0x174] sm:$0xf]
        %v462 = vld [vmem:[%s367 + $0x178] sm:$0xf]
        %v463 = vld [vmem:[%s367 + $0x17c] sm:$0xf]
        %v464 = vld [vmem:[%s367 + $0x180] sm:$0xf]
        %v465 = vld [vmem:[%s367 + $0x184] sm:$0xf]
        %v466 = vld [vmem:[%s367 + $0x188] sm:$0xf]
        %v467 = vld [vmem:[%s367 + $0x18c] sm:$0xf]
        %v468 = vld [vmem:[%s367 + $0x190] sm:$0xf]
        %v469 = vld [vmem:[%s367 + $0x194] sm:$0xf]
        %v470 = vld [vmem:[%s367 + $0x198] sm:$0xf]
        %v471 = vld [vmem:[%s367 + $0x19c] sm:$0xf]
        %v472 = vld [vmem:[%s367 + $0x1a0] sm:$0xf]
        %v473 = vld [vmem:[%s367 + $0x1a4] sm:$0xf]
        %v474 = vld [vmem:[%s367 + $0x1a8] sm:$0xf]
        %v475 = vld [vmem:[%s367 + $0x1ac] sm:$0xf]
        %v476 = vld [vmem:[%s367 + $0x1b0] sm:$0xf]
        %v477 = vld [vmem:[%s367 + $0x1b4] sm:$0xf]
        %v478 = vld [vmem:[%s367 + $0x1b8] sm:$0xf]
        %v479 = vld [vmem:[%s367 + $0x1bc] sm:$0xf]
        %v480 = vld [vmem:[%s367 + $0x1c0] sm:$0xf]
        %v481 = vld [vmem:[%s367 + $0x1c4] sm:$0xf]
        %v482 = vld [vmem:[%s367 + $0x1c8] sm:$0xf]
        %v483 = vld [vmem:[%s367 + $0x1cc] sm:$0xf]
        %v484 = vld [vmem:[%s367 + $0x1d0] sm:$0xf]
        %v485 = vld [vmem:[%s367 + $0x1d4] sm:$0xf]
        %v486 = vld [vmem:[%s367 + $0x1d8] sm:$0xf]
        %v487 = vld [vmem:[%s367 + $0x1dc] sm:$0xf]
        %v488 = vld [vmem:[%s367 + $0x1e0] sm:$0xf]
        %v489 = vld [vmem:[%s367 + $0x1e4] sm:$0xf]
        %v490 = vld [vmem:[%s367 + $0x1e8] sm:$0xf]
        %v491 = vld [vmem:[%s367 + $0x1ec] sm:$0xf]
        %v492 = vld [vmem:[%s367 + $0x1f0] sm:$0xf]
        %v493 = vld [vmem:[%s367 + $0x1f4] sm:$0xf]
        %v494 = vld [vmem:[%s367 + $0x1f8] sm:$0xf]
        %v495 = vld [vmem:[%s367 + $0x1fc] sm:$0xf]
        %s496 = scalar_lea.vmem %s2, 8
        %v497 = vld [vmem:[%s496] sm:$0xf]
        %v498 = vld [vmem:[%s496 + $0x4] sm:$0x3]
        %v627 = vunpack.c.l.b16 %v368
        %v628 = vunpack.c.l.b16 %v369
        %v629 = vunpack.c.l.b16 %v370
        %v630 = vunpack.c.l.b16 %v371
        %v631 = vunpack.c.l.b16 %v372
        %v632 = vunpack.c.l.b16 %v373
        %v633 = vunpack.c.l.b16 %v374
        %v634 = vunpack.c.l.b16 %v375
        %v635 = vunpack.c.l.b16 %v376
        %v636 = vunpack.c.l.b16 %v377
        %v637 = vunpack.c.l.b16 %v378
        %v638 = vunpack.c.l.b16 %v379
        %v639 = vunpack.c.l.b16 %v380
        %v640 = vunpack.c.l.b16 %v381
        %v641 = vunpack.c.l.b16 %v382
        %v642 = vunpack.c.l.b16 %v383
        %v643 = vunpack.c.l.b16 %v384
        %v644 = vunpack.c.l.b16 %v385
        %v645 = vunpack.c.l.b16 %v386
        %v646 = vunpack.c.l.b16 %v387
        %v647 = vunpack.c.l.b16 %v388
        %v648 = vunpack.c.l.b16 %v389
        %v649 = vunpack.c.l.b16 %v390
        %v650 = vunpack.c.l.b16 %v391
        %v651 = vunpack.c.l.b16 %v392
        %v652 = vunpack.c.l.b16 %v393
        %v653 = vunpack.c.l.b16 %v394
        %v654 = vunpack.c.l.b16 %v395
        %v655 = vunpack.c.l.b16 %v396
        %v656 = vunpack.c.l.b16 %v397
        %v657 = vunpack.c.l.b16 %v398
        %v658 = vunpack.c.l.b16 %v399
        %v659 = vunpack.c.l.b16 %v400
        %v660 = vunpack.c.l.b16 %v401
        %v661 = vunpack.c.l.b16 %v402
        %v662 = vunpack.c.l.b16 %v403
        %v663 = vunpack.c.l.b16 %v404
        %v664 = vunpack.c.l.b16 %v405
        %v665 = vunpack.c.l.b16 %v406
        %v666 = vunpack.c.l.b16 %v407
        %v667 = vunpack.c.l.b16 %v408
        %v668 = vunpack.c.l.b16 %v409
        %v669 = vunpack.c.l.b16 %v410
        %v670 = vunpack.c.l.b16 %v411
        %v671 = vunpack.c.l.b16 %v412
        %v672 = vunpack.c.l.b16 %v413
        %v673 = vunpack.c.l.b16 %v414
        %v674 = vunpack.c.l.b16 %v415
        %v675 = vunpack.c.l.b16 %v416
        %v676 = vunpack.c.l.b16 %v417
        %v677 = vunpack.c.l.b16 %v418
        %v678 = vunpack.c.l.b16 %v419
        %v679 = vunpack.c.l.b16 %v420
        %v680 = vunpack.c.l.b16 %v421
        %v681 = vunpack.c.l.b16 %v422
        %v682 = vunpack.c.l.b16 %v423
        %v683 = vunpack.c.l.b16 %v424
        %v684 = vunpack.c.l.b16 %v425
        %v685 = vunpack.c.l.b16 %v426
        %v686 = vunpack.c.l.b16 %v427
        %v687 = vunpack.c.l.b16 %v428
        %v688 = vunpack.c.l.b16 %v429
        %v689 = vunpack.c.l.b16 %v430
        %v690 = vunpack.c.l.b16 %v431
        %v691 = vunpack.c.l.b16 %v432
        %v692 = vunpack.c.l.b16 %v433
        %v693 = vunpack.c.l.b16 %v434
        %v694 = vunpack.c.l.b16 %v435
        %v695 = vunpack.c.l.b16 %v436
        %v696 = vunpack.c.l.b16 %v437
        %v697 = vunpack.c.l.b16 %v438
        %v698 = vunpack.c.l.b16 %v439
        %v699 = vunpack.c.l.b16 %v440
        %v700 = vunpack.c.l.b16 %v441
        %v701 = vunpack.c.l.b16 %v442
        %v702 = vunpack.c.l.b16 %v443
        %v703 = vunpack.c.l.b16 %v444
        %v704 = vunpack.c.l.b16 %v445
        %v705 = vunpack.c.l.b16 %v446
        %v706 = vunpack.c.l.b16 %v447
        %v707 = vunpack.c.l.b16 %v448
        %v708 = vunpack.c.l.b16 %v449
        %v709 = vunpack.c.l.b16 %v450
        %v710 = vunpack.c.l.b16 %v451
        %v711 = vunpack.c.l.b16 %v452
        %v712 = vunpack.c.l.b16 %v453
        %v713 = vunpack.c.l.b16 %v454
        %v714 = vunpack.c.l.b16 %v455
        %v715 = vunpack.c.l.b16 %v456
        %v716 = vunpack.c.l.b16 %v457
        %v717 = vunpack.c.l.b16 %v458
        %v718 = vunpack.c.l.b16 %v459
        %v719 = vunpack.c.l.b16 %v460
        %v720 = vunpack.c.l.b16 %v461
        %v721 = vunpack.c.l.b16 %v462
        %v722 = vunpack.c.l.b16 %v463
        %v723 = vunpack.c.l.b16 %v464
        %v724 = vunpack.c.l.b16 %v465
        %v725 = vunpack.c.l.b16 %v466
        %v726 = vunpack.c.l.b16 %v467
        %v727 = vunpack.c.l.b16 %v468
        %v728 = vunpack.c.l.b16 %v469
        %v729 = vunpack.c.l.b16 %v470
        %v730 = vunpack.c.l.b16 %v471
        %v731 = vunpack.c.l.b16 %v472
        %v732 = vunpack.c.l.b16 %v473
        %v733 = vunpack.c.l.b16 %v474
        %v734 = vunpack.c.l.b16 %v475
        %v735 = vunpack.c.l.b16 %v476
        %v736 = vunpack.c.l.b16 %v477
        %v737 = vunpack.c.l.b16 %v478
        %v738 = vunpack.c.l.b16 %v479
        %v739 = vunpack.c.l.b16 %v480
        %v740 = vunpack.c.l.b16 %v481
        %v741 = vunpack.c.l.b16 %v482
        %v742 = vunpack.c.l.b16 %v483
        %v743 = vunpack.c.l.b16 %v484
        %v744 = vunpack.c.l.b16 %v485
        %v745 = vunpack.c.l.b16 %v486
        %v746 = vunpack.c.l.b16 %v487
        %v747 = vunpack.c.l.b16 %v488
        %v748 = vunpack.c.l.b16 %v489
        %v749 = vunpack.c.l.b16 %v490
        %v750 = vunpack.c.l.b16 %v491
        %v751 = vunpack.c.l.b16 %v492
        %v752 = vunpack.c.l.b16 %v493
        %v753 = vunpack.c.l.b16 %v494
        %v754 = vunpack.c.l.b16 %v495
        %v755 = vpack.c.b16 %v628, %v627
        %v756 = vpack.c.b16 %v630, %v629
        %v757 = vpack.c.b16 %v632, %v631
        %v758 = vpack.c.b16 %v634, %v633
        %v759 = vpack.c.b16 %v636, %v635
        %v760 = vpack.c.b16 %v638, %v637
        %v761 = vpack.c.b16 %v640, %v639
        %v762 = vpack.c.b16 %v642, %v641
        %v763 = vpack.c.b16 %v644, %v643
        %v764 = vpack.c.b16 %v646, %v645
        %v765 = vpack.c.b16 %v648, %v647
        %v766 = vpack.c.b16 %v650, %v649
        %v767 = vpack.c.b16 %v652, %v651
        %v768 = vpack.c.b16 %v654, %v653
        %v769 = vpack.c.b16 %v656, %v655
        %v770 = vpack.c.b16 %v658, %v657
        %v771 = vpack.c.b16 %v660, %v659
        %v772 = vpack.c.b16 %v662, %v661
        %v773 = vpack.c.b16 %v664, %v663
        %v774 = vpack.c.b16 %v666, %v665
        %v775 = vpack.c.b16 %v668, %v667
        %v776 = vpack.c.b16 %v670, %v669
        %v777 = vpack.c.b16 %v672, %v671
        %v778 = vpack.c.b16 %v674, %v673
        %v779 = vpack.c.b16 %v676, %v675
        %v780 = vpack.c.b16 %v678, %v677
        %v781 = vpack.c.b16 %v680, %v679
        %v782 = vpack.c.b16 %v682, %v681
        %v783 = vpack.c.b16 %v684, %v683
        %v784 = vpack.c.b16 %v686, %v685
        %v785 = vpack.c.b16 %v688, %v687
        %v786 = vpack.c.b16 %v690, %v689
        %v787 = vpack.c.b16 %v692, %v691
        %v788 = vpack.c.b16 %v694, %v693
        %v789 = vpack.c.b16 %v696, %v695
        %v790 = vpack.c.b16 %v698, %v697
        %v791 = vpack.c.b16 %v700, %v699
        %v792 = vpack.c.b16 %v702, %v701
        %v793 = vpack.c.b16 %v704, %v703
        %v794 = vpack.c.b16 %v706, %v705
        %v795 = vpack.c.b16 %v708, %v707
        %v796 = vpack.c.b16 %v710, %v709
        %v797 = vpack.c.b16 %v712, %v711
        %v798 = vpack.c.b16 %v714, %v713
        %v799 = vpack.c.b16 %v716, %v715
        %v800 = vpack.c.b16 %v718, %v717
        %v801 = vpack.c.b16 %v720, %v719
        %v802 = vpack.c.b16 %v722, %v721
        %v803 = vpack.c.b16 %v724, %v723
        %v804 = vpack.c.b16 %v726, %v725
        %v805 = vpack.c.b16 %v728, %v727
        %v806 = vpack.c.b16 %v730, %v729
        %v807 = vpack.c.b16 %v732, %v731
        %v808 = vpack.c.b16 %v734, %v733
        %v809 = vpack.c.b16 %v736, %v735
        %v810 = vpack.c.b16 %v738, %v737
        %v811 = vpack.c.b16 %v740, %v739
        %v812 = vpack.c.b16 %v742, %v741
        %v813 = vpack.c.b16 %v744, %v743
        %v814 = vpack.c.b16 %v746, %v745
        %v815 = vpack.c.b16 %v748, %v747
        %v816 = vpack.c.b16 %v750, %v749
        %v817 = vpack.c.b16 %v752, %v751
        %v818 = vpack.c.b16 %v754, %v753
        %v821 = vunpack.c.l.b16 %v497
        %v822 = vunpack.c.l.b16 %v498
        %v823 = vpack.c.b16 %v822, %v821
        %vm824 = vcmask 97280
        %v826 = vsel %vm824, %v755, 0
        %v829 = vsel %vm824, %v756, 0
        %v832 = vsel %vm824, %v757, 0
        %v835 = vsel %vm824, %v758, 0
        %v838 = vsel %vm824, %v759, 0
        %v841 = vsel %vm824, %v760, 0
        %v844 = vsel %vm824, %v761, 0
        %v847 = vsel %vm824, %v762, 0
        %v850 = vsel %vm824, %v763, 0
        %v853 = vsel %vm824, %v764, 0
        %v856 = vsel %vm824, %v765, 0
        %v859 = vsel %vm824, %v766, 0
        %v862 = vsel %vm824, %v767, 0
        %v865 = vsel %vm824, %v768, 0
        %v868 = vsel %vm824, %v769, 0
        %v871 = vsel %vm824, %v770, 0
        %v874 = vsel %vm824, %v771, 0
        %v877 = vsel %vm824, %v772, 0
        %v880 = vsel %vm824, %v773, 0
        %v883 = vsel %vm824, %v774, 0
        %v886 = vsel %vm824, %v775, 0
        %v889 = vsel %vm824, %v776, 0
        %v892 = vsel %vm824, %v777, 0
        %v895 = vsel %vm824, %v778, 0
        %v898 = vsel %vm824, %v779, 0
        %v901 = vsel %vm824, %v780, 0
        %v904 = vsel %vm824, %v781, 0
        %v907 = vsel %vm824, %v782, 0
        %v910 = vsel %vm824, %v783, 0
        %v913 = vsel %vm824, %v784, 0
        %v916 = vsel %vm824, %v785, 0
        %v919 = vsel %vm824, %v786, 0
        %v922 = vsel %vm824, %v787, 0
        %v925 = vsel %vm824, %v788, 0
        %v928 = vsel %vm824, %v789, 0
        %v931 = vsel %vm824, %v790, 0
        %v934 = vsel %vm824, %v791, 0
        %v937 = vsel %vm824, %v792, 0
        %v940 = vsel %vm824, %v793, 0
        %v943 = vsel %vm824, %v794, 0
        %v946 = vsel %vm824, %v795, 0
        %v949 = vsel %vm824, %v796, 0
        %v952 = vsel %vm824, %v797, 0
        %v955 = vsel %vm824, %v798, 0
        %v958 = vsel %vm824, %v799, 0
        %v961 = vsel %vm824, %v800, 0
        %v964 = vsel %vm824, %v801, 0
        %v967 = vsel %vm824, %v802, 0
        %v970 = vsel %vm824, %v803, 0
        %v973 = vsel %vm824, %v804, 0
        %v976 = vsel %vm824, %v805, 0
        %v979 = vsel %vm824, %v806, 0
        %v982 = vsel %vm824, %v807, 0
        %v985 = vsel %vm824, %v808, 0
        %v988 = vsel %vm824, %v809, 0
        %v991 = vsel %vm824, %v810, 0
        %v994 = vsel %vm824, %v811, 0
        %v997 = vsel %vm824, %v812, 0
        %v1000 = vsel %vm824, %v813, 0
        %v1003 = vsel %vm824, %v814, 0
        %v1006 = vsel %vm824, %v815, 0
        %v1009 = vsel %vm824, %v816, 0
        %v1012 = vsel %vm824, %v817, 0
        %v1015 = vsel %vm824, %v818, 0
        %vm1017 = vcmask 1045504
        %v1019 = vsel %vm1017, %v823, 0
        %1021 = vmatpush.bf16.msra.mxu0 0
        %1022 = vmatpush.bf16.msra.mxu0 0
        %1023 = vmatpush.bf16.msra.mxu0 0
        %1024 = vmatpush.bf16.msra.mxu0 0
        %1025 = vmatpush.bf16.msra.mxu0 0
        %1026 = vmatpush.bf16.msra.mxu0 0
        %1027 = vmatpush.bf16.msra.mxu0 0
        %1028 = vmatpush.bf16.msra.mxu0 %v1019
        %1029 = vmatmul.bf16.gmra.mxu0 %v826
        %v1030 = vpop.f32.mrf.mxu0
        %v1031 = vadd.f32 0.0, %v1030
        %v1032 = vpop.f32.mrf.mxu0
        %v1033 = vadd.f32 0.0, %v1032
        %1034 = vmatmul.bf16.gmra.mxu0 %v829
        %v1035 = vpop.f32.mrf.mxu0
        %v1036 = vadd.f32 0.0, %v1035
        %v1037 = vpop.f32.mrf.mxu0
        %v1038 = vadd.f32 0.0, %v1037
        %1039 = vmatmul.bf16.gmra.mxu0 %v832
        %v1040 = vpop.f32.mrf.mxu0
        %v1041 = vadd.f32 0.0, %v1040
        %v1042 = vpop.f32.mrf.mxu0
        %v1043 = vadd.f32 0.0, %v1042
        %1044 = vmatmul.bf16.gmra.mxu0 %v835
        %v1045 = vpop.f32.mrf.mxu0
        %v1046 = vadd.f32 0.0, %v1045
        %v1047 = vpop.f32.mrf.mxu0
        %v1048 = vadd.f32 0.0, %v1047
        %1049 = vmatmul.bf16.gmra.mxu0 %v838
        %v1050 = vpop.f32.mrf.mxu0
        %v1051 = vadd.f32 0.0, %v1050
        %v1052 = vpop.f32.mrf.mxu0
        %v1053 = vadd.f32 0.0, %v1052
        %1054 = vmatmul.bf16.gmra.mxu0 %v841
        %v1055 = vpop.f32.mrf.mxu0
        %v1056 = vadd.f32 0.0, %v1055
        %v1057 = vpop.f32.mrf.mxu0
        %v1058 = vadd.f32 0.0, %v1057
        %1059 = vmatmul.bf16.gmra.mxu0 %v844
        %v1060 = vpop.f32.mrf.mxu0
        %v1061 = vadd.f32 0.0, %v1060
        %v1062 = vpop.f32.mrf.mxu0
        %v1063 = vadd.f32 0.0, %v1062
        %1064 = vmatmul.bf16.gmra.mxu0 %v847
        %v1065 = vpop.f32.mrf.mxu0
        %v1066 = vadd.f32 0.0, %v1065
        %v1067 = vpop.f32.mrf.mxu0
        %v1068 = vadd.f32 0.0, %v1067
        %1069 = vmatmul.bf16.gmra.mxu0 %v850
        %v1070 = vpop.f32.mrf.mxu0
        %v1071 = vadd.f32 0.0, %v1070
        %v1072 = vpop.f32.mrf.mxu0
        %v1073 = vadd.f32 0.0, %v1072
        %1074 = vmatmul.bf16.gmra.mxu0 %v853
        %v1075 = vpop.f32.mrf.mxu0
        %v1076 = vadd.f32 0.0, %v1075
        %v1077 = vpop.f32.mrf.mxu0
        %v1078 = vadd.f32 0.0, %v1077
        %1079 = vmatmul.bf16.gmra.mxu0 %v856
        %v1080 = vpop.f32.mrf.mxu0
        %v1081 = vadd.f32 0.0, %v1080
        %v1082 = vpop.f32.mrf.mxu0
        %v1083 = vadd.f32 0.0, %v1082
        %1084 = vmatmul.bf16.gmra.mxu0 %v859
        %v1085 = vpop.f32.mrf.mxu0
        %v1086 = vadd.f32 0.0, %v1085
        %v1087 = vpop.f32.mrf.mxu0
        %v1088 = vadd.f32 0.0, %v1087
        %1089 = vmatmul.bf16.gmra.mxu0 %v862
        %v1090 = vpop.f32.mrf.mxu0
        %v1091 = vadd.f32 0.0, %v1090
        %v1092 = vpop.f32.mrf.mxu0
        %v1093 = vadd.f32 0.0, %v1092
        %1094 = vmatmul.bf16.gmra.mxu0 %v865
        %v1095 = vpop.f32.mrf.mxu0
        %v1096 = vadd.f32 0.0, %v1095
        %v1097 = vpop.f32.mrf.mxu0
        %v1098 = vadd.f32 0.0, %v1097
        %1099 = vmatmul.bf16.gmra.mxu0 %v868
        %v1100 = vpop.f32.mrf.mxu0
        %v1101 = vadd.f32 0.0, %v1100
        %v1102 = vpop.f32.mrf.mxu0
        %v1103 = vadd.f32 0.0, %v1102
        %1104 = vmatmul.bf16.gmra.mxu0 %v871
        %v1105 = vpop.f32.mrf.mxu0
        %v1106 = vadd.f32 0.0, %v1105
        %v1107 = vpop.f32.mrf.mxu0
        %v1108 = vadd.f32 0.0, %v1107
        %1109 = vmatmul.bf16.gmra.mxu0 %v874
        %v1110 = vpop.f32.mrf.mxu0
        %v1111 = vadd.f32 0.0, %v1110
        %v1112 = vpop.f32.mrf.mxu0
        %v1113 = vadd.f32 0.0, %v1112
        %1114 = vmatmul.bf16.gmra.mxu0 %v877
        %v1115 = vpop.f32.mrf.mxu0
        %v1116 = vadd.f32 0.0, %v1115
        %v1117 = vpop.f32.mrf.mxu0
        %v1118 = vadd.f32 0.0, %v1117
        %1119 = vmatmul.bf16.gmra.mxu0 %v880
        %v1120 = vpop.f32.mrf.mxu0
        %v1121 = vadd.f32 0.0, %v1120
        %v1122 = vpop.f32.mrf.mxu0
        %v1123 = vadd.f32 0.0, %v1122
        %1124 = vmatmul.bf16.gmra.mxu0 %v883
        %v1125 = vpop.f32.mrf.mxu0
        %v1126 = vadd.f32 0.0, %v1125
        %v1127 = vpop.f32.mrf.mxu0
        %v1128 = vadd.f32 0.0, %v1127
        %1129 = vmatmul.bf16.gmra.mxu0 %v886
        %v1130 = vpop.f32.mrf.mxu0
        %v1131 = vadd.f32 0.0, %v1130
        %v1132 = vpop.f32.mrf.mxu0
        %v1133 = vadd.f32 0.0, %v1132
        %1134 = vmatmul.bf16.gmra.mxu0 %v889
        %v1135 = vpop.f32.mrf.mxu0
        %v1136 = vadd.f32 0.0, %v1135
        %v1137 = vpop.f32.mrf.mxu0
        %v1138 = vadd.f32 0.0, %v1137
        %1139 = vmatmul.bf16.gmra.mxu0 %v892
        %v1140 = vpop.f32.mrf.mxu0
        %v1141 = vadd.f32 0.0, %v1140
        %v1142 = vpop.f32.mrf.mxu0
        %v1143 = vadd.f32 0.0, %v1142
        %1144 = vmatmul.bf16.gmra.mxu0 %v895
        %v1145 = vpop.f32.mrf.mxu0
        %v1146 = vadd.f32 0.0, %v1145
        %v1147 = vpop.f32.mrf.mxu0
        %v1148 = vadd.f32 0.0, %v1147
        %1149 = vmatmul.bf16.gmra.mxu0 %v898
        %v1150 = vpop.f32.mrf.mxu0
        %v1151 = vadd.f32 0.0, %v1150
        %v1152 = vpop.f32.mrf.mxu0
        %v1153 = vadd.f32 0.0, %v1152
        %1154 = vmatmul.bf16.gmra.mxu0 %v901
        %v1155 = vpop.f32.mrf.mxu0
        %v1156 = vadd.f32 0.0, %v1155
        %v1157 = vpop.f32.mrf.mxu0
        %v1158 = vadd.f32 0.0, %v1157
        %1159 = vmatmul.bf16.gmra.mxu0 %v904
        %v1160 = vpop.f32.mrf.mxu0
        %v1161 = vadd.f32 0.0, %v1160
        %v1162 = vpop.f32.mrf.mxu0
        %v1163 = vadd.f32 0.0, %v1162
        %1164 = vmatmul.bf16.gmra.mxu0 %v907
        %v1165 = vpop.f32.mrf.mxu0
        %v1166 = vadd.f32 0.0, %v1165
        %v1167 = vpop.f32.mrf.mxu0
        %v1168 = vadd.f32 0.0, %v1167
        %1169 = vmatmul.bf16.gmra.mxu0 %v910
        %v1170 = vpop.f32.mrf.mxu0
        %v1171 = vadd.f32 0.0, %v1170
        %v1172 = vpop.f32.mrf.mxu0
        %v1173 = vadd.f32 0.0, %v1172
        %1174 = vmatmul.bf16.gmra.mxu0 %v913
        %v1175 = vpop.f32.mrf.mxu0
        %v1176 = vadd.f32 0.0, %v1175
        %v1177 = vpop.f32.mrf.mxu0
        %v1178 = vadd.f32 0.0, %v1177
        %1179 = vmatmul.bf16.gmra.mxu0 %v916
        %v1180 = vpop.f32.mrf.mxu0
        %v1181 = vadd.f32 0.0, %v1180
        %v1182 = vpop.f32.mrf.mxu0
        %v1183 = vadd.f32 0.0, %v1182
        %1184 = vmatmul.bf16.gmra.mxu0 %v919
        %v1185 = vpop.f32.mrf.mxu0
        %v1186 = vadd.f32 0.0, %v1185
        %v1187 = vpop.f32.mrf.mxu0
        %v1188 = vadd.f32 0.0, %v1187
        %1189 = vmatmul.bf16.gmra.mxu0 %v922
        %v1190 = vpop.f32.mrf.mxu0
        %v1191 = vadd.f32 0.0, %v1190
        %v1192 = vpop.f32.mrf.mxu0
        %v1193 = vadd.f32 0.0, %v1192
        %1194 = vmatmul.bf16.gmra.mxu0 %v925
        %v1195 = vpop.f32.mrf.mxu0
        %v1196 = vadd.f32 0.0, %v1195
        %v1197 = vpop.f32.mrf.mxu0
        %v1198 = vadd.f32 0.0, %v1197
        %1199 = vmatmul.bf16.gmra.mxu0 %v928
        %v1200 = vpop.f32.mrf.mxu0
        %v1201 = vadd.f32 0.0, %v1200
        %v1202 = vpop.f32.mrf.mxu0
        %v1203 = vadd.f32 0.0, %v1202
        %1204 = vmatmul.bf16.gmra.mxu0 %v931
        %v1205 = vpop.f32.mrf.mxu0
        %v1206 = vadd.f32 0.0, %v1205
        %v1207 = vpop.f32.mrf.mxu0
        %v1208 = vadd.f32 0.0, %v1207
        %1209 = vmatmul.bf16.gmra.mxu0 %v934
        %v1210 = vpop.f32.mrf.mxu0
        %v1211 = vadd.f32 0.0, %v1210
        %v1212 = vpop.f32.mrf.mxu0
        %v1213 = vadd.f32 0.0, %v1212
        %1214 = vmatmul.bf16.gmra.mxu0 %v937
        %v1215 = vpop.f32.mrf.mxu0
        %v1216 = vadd.f32 0.0, %v1215
        %v1217 = vpop.f32.mrf.mxu0
        %v1218 = vadd.f32 0.0, %v1217
        %1219 = vmatmul.bf16.gmra.mxu0 %v940
        %v1220 = vpop.f32.mrf.mxu0
        %v1221 = vadd.f32 0.0, %v1220
        %v1222 = vpop.f32.mrf.mxu0
        %v1223 = vadd.f32 0.0, %v1222
        %1224 = vmatmul.bf16.gmra.mxu0 %v943
        %v1225 = vpop.f32.mrf.mxu0
        %v1226 = vadd.f32 0.0, %v1225
        %v1227 = vpop.f32.mrf.mxu0
        %v1228 = vadd.f32 0.0, %v1227
        %1229 = vmatmul.bf16.gmra.mxu0 %v946
        %v1230 = vpop.f32.mrf.mxu0
        %v1231 = vadd.f32 0.0, %v1230
        %v1232 = vpop.f32.mrf.mxu0
        %v1233 = vadd.f32 0.0, %v1232
        %1234 = vmatmul.bf16.gmra.mxu0 %v949
        %v1235 = vpop.f32.mrf.mxu0
        %v1236 = vadd.f32 0.0, %v1235
        %v1237 = vpop.f32.mrf.mxu0
        %v1238 = vadd.f32 0.0, %v1237
        %1239 = vmatmul.bf16.gmra.mxu0 %v952
        %v1240 = vpop.f32.mrf.mxu0
        %v1241 = vadd.f32 0.0, %v1240
        %v1242 = vpop.f32.mrf.mxu0
        %v1243 = vadd.f32 0.0, %v1242
        %1244 = vmatmul.bf16.gmra.mxu0 %v955
        %v1245 = vpop.f32.mrf.mxu0
        %v1246 = vadd.f32 0.0, %v1245
        %v1247 = vpop.f32.mrf.mxu0
        %v1248 = vadd.f32 0.0, %v1247
        %1249 = vmatmul.bf16.gmra.mxu0 %v958
        %v1250 = vpop.f32.mrf.mxu0
        %v1251 = vadd.f32 0.0, %v1250
        %v1252 = vpop.f32.mrf.mxu0
        %v1253 = vadd.f32 0.0, %v1252
        %1254 = vmatmul.bf16.gmra.mxu0 %v961
        %v1255 = vpop.f32.mrf.mxu0
        %v1256 = vadd.f32 0.0, %v1255
        %v1257 = vpop.f32.mrf.mxu0
        %v1258 = vadd.f32 0.0, %v1257
        %1259 = vmatmul.bf16.gmra.mxu0 %v964
        %v1260 = vpop.f32.mrf.mxu0
        %v1261 = vadd.f32 0.0, %v1260
        %v1262 = vpop.f32.mrf.mxu0
        %v1263 = vadd.f32 0.0, %v1262
        %1264 = vmatmul.bf16.gmra.mxu0 %v967
        %v1265 = vpop.f32.mrf.mxu0
        %v1266 = vadd.f32 0.0, %v1265
        %v1267 = vpop.f32.mrf.mxu0
        %v1268 = vadd.f32 0.0, %v1267
        %1269 = vmatmul.bf16.gmra.mxu0 %v970
        %v1270 = vpop.f32.mrf.mxu0
        %v1271 = vadd.f32 0.0, %v1270
        %v1272 = vpop.f32.mrf.mxu0
        %v1273 = vadd.f32 0.0, %v1272
        %1274 = vmatmul.bf16.gmra.mxu0 %v973
        %v1275 = vpop.f32.mrf.mxu0
        %v1276 = vadd.f32 0.0, %v1275
        %v1277 = vpop.f32.mrf.mxu0
        %v1278 = vadd.f32 0.0, %v1277
        %1279 = vmatmul.bf16.gmra.mxu0 %v976
        %v1280 = vpop.f32.mrf.mxu0
        %v1281 = vadd.f32 0.0, %v1280
        %v1282 = vpop.f32.mrf.mxu0
        %v1283 = vadd.f32 0.0, %v1282
        %1284 = vmatmul.bf16.gmra.mxu0 %v979
        %v1285 = vpop.f32.mrf.mxu0
        %v1286 = vadd.f32 0.0, %v1285
        %v1287 = vpop.f32.mrf.mxu0
        %v1288 = vadd.f32 0.0, %v1287
        %1289 = vmatmul.bf16.gmra.mxu0 %v982
        %v1290 = vpop.f32.mrf.mxu0
        %v1291 = vadd.f32 0.0, %v1290
        %v1292 = vpop.f32.mrf.mxu0
        %v1293 = vadd.f32 0.0, %v1292
        %1294 = vmatmul.bf16.gmra.mxu0 %v985
        %v1295 = vpop.f32.mrf.mxu0
        %v1296 = vadd.f32 0.0, %v1295
        %v1297 = vpop.f32.mrf.mxu0
        %v1298 = vadd.f32 0.0, %v1297
        %1299 = vmatmul.bf16.gmra.mxu0 %v988
        %v1300 = vpop.f32.mrf.mxu0
        %v1301 = vadd.f32 0.0, %v1300
        %v1302 = vpop.f32.mrf.mxu0
        %v1303 = vadd.f32 0.0, %v1302
        %1304 = vmatmul.bf16.gmra.mxu0 %v991
        %v1305 = vpop.f32.mrf.mxu0
        %v1306 = vadd.f32 0.0, %v1305
        %v1307 = vpop.f32.mrf.mxu0
        %v1308 = vadd.f32 0.0, %v1307
        %1309 = vmatmul.bf16.gmra.mxu0 %v994
        %v1310 = vpop.f32.mrf.mxu0
        %v1311 = vadd.f32 0.0, %v1310
        %v1312 = vpop.f32.mrf.mxu0
        %v1313 = vadd.f32 0.0, %v1312
        %1314 = vmatmul.bf16.gmra.mxu0 %v997
        %v1315 = vpop.f32.mrf.mxu0
        %v1316 = vadd.f32 0.0, %v1315
        %v1317 = vpop.f32.mrf.mxu0
        %v1318 = vadd.f32 0.0, %v1317
        %1319 = vmatmul.bf16.gmra.mxu0 %v1000
        %v1320 = vpop.f32.mrf.mxu0
        %v1321 = vadd.f32 0.0, %v1320
        %v1322 = vpop.f32.mrf.mxu0
        %v1323 = vadd.f32 0.0, %v1322
        %1324 = vmatmul.bf16.gmra.mxu0 %v1003
        %v1325 = vpop.f32.mrf.mxu0
        %v1326 = vadd.f32 0.0, %v1325
        %v1327 = vpop.f32.mrf.mxu0
        %v1328 = vadd.f32 0.0, %v1327
        %1329 = vmatmul.bf16.gmra.mxu0 %v1006
        %v1330 = vpop.f32.mrf.mxu0
        %v1331 = vadd.f32 0.0, %v1330
        %v1332 = vpop.f32.mrf.mxu0
        %v1333 = vadd.f32 0.0, %v1332
        %1334 = vmatmul.bf16.gmra.mxu0 %v1009
        %v1335 = vpop.f32.mrf.mxu0
        %v1336 = vadd.f32 0.0, %v1335
        %v1337 = vpop.f32.mrf.mxu0
        %v1338 = vadd.f32 0.0, %v1337
        %1339 = vmatmul.bf16.gmra.mxu0 %v1012
        %v1340 = vpop.f32.mrf.mxu0
        %v1341 = vadd.f32 0.0, %v1340
        %v1342 = vpop.f32.mrf.mxu0
        %v1343 = vadd.f32 0.0, %v1342
        %1344 = vmatmul.bf16.gmra.mxu0 %v1015
        %v1345 = vpop.f32.mrf.mxu0
        %v1346 = vadd.f32 0.0, %v1345
        %v1347 = vpop.f32.mrf.mxu0
        %v1348 = vadd.f32 0.0, %v1347
        %1349 = vdwg.mxu0
        %v1478 = vunpack.c.l.b16 %v236
        %v1479 = vunpack.c.l.b16 %v237
        %v1480 = vunpack.c.l.b16 %v238
        %v1481 = vunpack.c.l.b16 %v239
        %v1482 = vunpack.c.l.b16 %v240
        %v1483 = vunpack.c.l.b16 %v241
        %v1484 = vunpack.c.l.b16 %v242
        %v1485 = vunpack.c.l.b16 %v243
        %v1486 = vunpack.c.l.b16 %v244
        %v1487 = vunpack.c.l.b16 %v245
        %v1488 = vunpack.c.l.b16 %v246
        %v1489 = vunpack.c.l.b16 %v247
        %v1490 = vunpack.c.l.b16 %v248
        %v1491 = vunpack.c.l.b16 %v249
        %v1492 = vunpack.c.l.b16 %v250
        %v1493 = vunpack.c.l.b16 %v251
        %v1494 = vunpack.c.l.b16 %v252
        %v1495 = vunpack.c.l.b16 %v253
        %v1496 = vunpack.c.l.b16 %v254
        %v1497 = vunpack.c.l.b16 %v255
        %v1498 = vunpack.c.l.b16 %v256
        %v1499 = vunpack.c.l.b16 %v257
        %v1500 = vunpack.c.l.b16 %v258
        %v1501 = vunpack.c.l.b16 %v259
        %v1502 = vunpack.c.l.b16 %v260
        %v1503 = vunpack.c.l.b16 %v261
        %v1504 = vunpack.c.l.b16 %v262
        %v1505 = vunpack.c.l.b16 %v263
        %v1506 = vunpack.c.l.b16 %v264
        %v1507 = vunpack.c.l.b16 %v265
        %v1508 = vunpack.c.l.b16 %v266
        %v1509 = vunpack.c.l.b16 %v267
        %v1510 = vunpack.c.l.b16 %v268
        %v1511 = vunpack.c.l.b16 %v269
        %v1512 = vunpack.c.l.b16 %v270
        %v1513 = vunpack.c.l.b16 %v271
        %v1514 = vunpack.c.l.b16 %v272
        %v1515 = vunpack.c.l.b16 %v273
        %v1516 = vunpack.c.l.b16 %v274
        %v1517 = vunpack.c.l.b16 %v275
        %v1518 = vunpack.c.l.b16 %v276
        %v1519 = vunpack.c.l.b16 %v277
        %v1520 = vunpack.c.l.b16 %v278
        %v1521 = vunpack.c.l.b16 %v279
        %v1522 = vunpack.c.l.b16 %v280
        %v1523 = vunpack.c.l.b16 %v281
        %v1524 = vunpack.c.l.b16 %v282
        %v1525 = vunpack.c.l.b16 %v283
        %v1526 = vunpack.c.l.b16 %v284
        %v1527 = vunpack.c.l.b16 %v285
        %v1528 = vunpack.c.l.b16 %v286
        %v1529 = vunpack.c.l.b16 %v287
        %v1530 = vunpack.c.l.b16 %v288
        %v1531 = vunpack.c.l.b16 %v289
        %v1532 = vunpack.c.l.b16 %v290
        %v1533 = vunpack.c.l.b16 %v291
        %v1534 = vunpack.c.l.b16 %v292
        %v1535 = vunpack.c.l.b16 %v293
        %v1536 = vunpack.c.l.b16 %v294
        %v1537 = vunpack.c.l.b16 %v295
        %v1538 = vunpack.c.l.b16 %v296
        %v1539 = vunpack.c.l.b16 %v297
        %v1540 = vunpack.c.l.b16 %v298
        %v1541 = vunpack.c.l.b16 %v299
        %v1542 = vunpack.c.l.b16 %v300
        %v1543 = vunpack.c.l.b16 %v301
        %v1544 = vunpack.c.l.b16 %v302
        %v1545 = vunpack.c.l.b16 %v303
        %v1546 = vunpack.c.l.b16 %v304
        %v1547 = vunpack.c.l.b16 %v305
        %v1548 = vunpack.c.l.b16 %v306
        %v1549 = vunpack.c.l.b16 %v307
        %v1550 = vunpack.c.l.b16 %v308
        %v1551 = vunpack.c.l.b16 %v309
        %v1552 = vunpack.c.l.b16 %v310
        %v1553 = vunpack.c.l.b16 %v311
        %v1554 = vunpack.c.l.b16 %v312
        %v1555 = vunpack.c.l.b16 %v313
        %v1556 = vunpack.c.l.b16 %v314
        %v1557 = vunpack.c.l.b16 %v315
        %v1558 = vunpack.c.l.b16 %v316
        %v1559 = vunpack.c.l.b16 %v317
        %v1560 = vunpack.c.l.b16 %v318
        %v1561 = vunpack.c.l.b16 %v319
        %v1562 = vunpack.c.l.b16 %v320
        %v1563 = vunpack.c.l.b16 %v321
        %v1564 = vunpack.c.l.b16 %v322
        %v1565 = vunpack.c.l.b16 %v323
        %v1566 = vunpack.c.l.b16 %v324
        %v1567 = vunpack.c.l.b16 %v325
        %v1568 = vunpack.c.l.b16 %v326
        %v1569 = vunpack.c.l.b16 %v327
        %v1570 = vunpack.c.l.b16 %v328
        %v1571 = vunpack.c.l.b16 %v329
        %v1572 = vunpack.c.l.b16 %v330
        %v1573 = vunpack.c.l.b16 %v331
        %v1574 = vunpack.c.l.b16 %v332
        %v1575 = vunpack.c.l.b16 %v333
        %v1576 = vunpack.c.l.b16 %v334
        %v1577 = vunpack.c.l.b16 %v335
        %v1578 = vunpack.c.l.b16 %v336
        %v1579 = vunpack.c.l.b16 %v337
        %v1580 = vunpack.c.l.b16 %v338
        %v1581 = vunpack.c.l.b16 %v339
        %v1582 = vunpack.c.l.b16 %v340
        %v1583 = vunpack.c.l.b16 %v341
        %v1584 = vunpack.c.l.b16 %v342
        %v1585 = vunpack.c.l.b16 %v343
        %v1586 = vunpack.c.l.b16 %v344
        %v1587 = vunpack.c.l.b16 %v345
        %v1588 = vunpack.c.l.b16 %v346
        %v1589 = vunpack.c.l.b16 %v347
        %v1590 = vunpack.c.l.b16 %v348
        %v1591 = vunpack.c.l.b16 %v349
        %v1592 = vunpack.c.l.b16 %v350
        %v1593 = vunpack.c.l.b16 %v351
        %v1594 = vunpack.c.l.b16 %v352
        %v1595 = vunpack.c.l.b16 %v353
        %v1596 = vunpack.c.l.b16 %v354
        %v1597 = vunpack.c.l.b16 %v355
        %v1598 = vunpack.c.l.b16 %v356
        %v1599 = vunpack.c.l.b16 %v357
        %v1600 = vunpack.c.l.b16 %v358
        %v1601 = vunpack.c.l.b16 %v359
        %v1602 = vunpack.c.l.b16 %v360
        %v1603 = vunpack.c.l.b16 %v361
        %v1604 = vunpack.c.l.b16 %v362
        %v1605 = vunpack.c.l.b16 %v363
        %v1606 = vpack.c.b16 %v1479, %v1478
        %v1607 = vpack.c.b16 %v1481, %v1480
        %v1608 = vpack.c.b16 %v1483, %v1482
        %v1609 = vpack.c.b16 %v1485, %v1484
        %v1610 = vpack.c.b16 %v1487, %v1486
        %v1611 = vpack.c.b16 %v1489, %v1488
        %v1612 = vpack.c.b16 %v1491, %v1490
        %v1613 = vpack.c.b16 %v1493, %v1492
        %v1614 = vpack.c.b16 %v1495, %v1494
        %v1615 = vpack.c.b16 %v1497, %v1496
        %v1616 = vpack.c.b16 %v1499, %v1498
        %v1617 = vpack.c.b16 %v1501, %v1500
        %v1618 = vpack.c.b16 %v1503, %v1502
        %v1619 = vpack.c.b16 %v1505, %v1504
        %v1620 = vpack.c.b16 %v1507, %v1506
        %v1621 = vpack.c.b16 %v1509, %v1508
        %v1622 = vpack.c.b16 %v1511, %v1510
        %v1623 = vpack.c.b16 %v1513, %v1512
        %v1624 = vpack.c.b16 %v1515, %v1514
        %v1625 = vpack.c.b16 %v1517, %v1516
        %v1626 = vpack.c.b16 %v1519, %v1518
        %v1627 = vpack.c.b16 %v1521, %v1520
        %v1628 = vpack.c.b16 %v1523, %v1522
        %v1629 = vpack.c.b16 %v1525, %v1524
        %v1630 = vpack.c.b16 %v1527, %v1526
        %v1631 = vpack.c.b16 %v1529, %v1528
        %v1632 = vpack.c.b16 %v1531, %v1530
        %v1633 = vpack.c.b16 %v1533, %v1532
        %v1634 = vpack.c.b16 %v1535, %v1534
        %v1635 = vpack.c.b16 %v1537, %v1536
        %v1636 = vpack.c.b16 %v1539, %v1538
        %v1637 = vpack.c.b16 %v1541, %v1540
        %v1638 = vpack.c.b16 %v1543, %v1542
        %v1639 = vpack.c.b16 %v1545, %v1544
        %v1640 = vpack.c.b16 %v1547, %v1546
        %v1641 = vpack.c.b16 %v1549, %v1548
        %v1642 = vpack.c.b16 %v1551, %v1550
        %v1643 = vpack.c.b16 %v1553, %v1552
        %v1644 = vpack.c.b16 %v1555, %v1554
        %v1645 = vpack.c.b16 %v1557, %v1556
        %v1646 = vpack.c.b16 %v1559, %v1558
        %v1647 = vpack.c.b16 %v1561, %v1560
        %v1648 = vpack.c.b16 %v1563, %v1562
        %v1649 = vpack.c.b16 %v1565, %v1564
        %v1650 = vpack.c.b16 %v1567, %v1566
        %v1651 = vpack.c.b16 %v1569, %v1568
        %v1652 = vpack.c.b16 %v1571, %v1570
        %v1653 = vpack.c.b16 %v1573, %v1572
        %v1654 = vpack.c.b16 %v1575, %v1574
        %v1655 = vpack.c.b16 %v1577, %v1576
        %v1656 = vpack.c.b16 %v1579, %v1578
        %v1657 = vpack.c.b16 %v1581, %v1580
        %v1658 = vpack.c.b16 %v1583, %v1582
        %v1659 = vpack.c.b16 %v1585, %v1584
        %v1660 = vpack.c.b16 %v1587, %v1586
        %v1661 = vpack.c.b16 %v1589, %v1588
        %v1662 = vpack.c.b16 %v1591, %v1590
        %v1663 = vpack.c.b16 %v1593, %v1592
        %v1664 = vpack.c.b16 %v1595, %v1594
        %v1665 = vpack.c.b16 %v1597, %v1596
        %v1666 = vpack.c.b16 %v1599, %v1598
        %v1667 = vpack.c.b16 %v1601, %v1600
        %v1668 = vpack.c.b16 %v1603, %v1602
        %v1669 = vpack.c.b16 %v1605, %v1604
        %v1672 = vunpack.c.l.b16 %v364
        %v1673 = vunpack.c.l.b16 %v365
        %v1674 = vpack.c.b16 %v1673, %v1672
        %v1676 = vsel %vm824, %v1606, 0
        %v1679 = vsel %vm824, %v1607, 0
        %v1682 = vsel %vm824, %v1608, 0
        %v1685 = vsel %vm824, %v1609, 0
        %v1688 = vsel %vm824, %v1610, 0
        %v1691 = vsel %vm824, %v1611, 0
        %v1694 = vsel %vm824, %v1612, 0
        %v1697 = vsel %vm824, %v1613, 0
        %v1700 = vsel %vm824, %v1614, 0
        %v1703 = vsel %vm824, %v1615, 0
        %v1706 = vsel %vm824, %v1616, 0
        %v1709 = vsel %vm824, %v1617, 0
        %v1712 = vsel %vm824, %v1618, 0
        %v1715 = vsel %vm824, %v1619, 0
        %v1718 = vsel %vm824, %v1620, 0
        %v1721 = vsel %vm824, %v1621, 0
        %v1724 = vsel %vm824, %v1622, 0
        %v1727 = vsel %vm824, %v1623, 0
        %v1730 = vsel %vm824, %v1624, 0
        %v1733 = vsel %vm824, %v1625, 0
        %v1736 = vsel %vm824, %v1626, 0
        %v1739 = vsel %vm824, %v1627, 0
        %v1742 = vsel %vm824, %v1628, 0
        %v1745 = vsel %vm824, %v1629, 0
        %v1748 = vsel %vm824, %v1630, 0
        %v1751 = vsel %vm824, %v1631, 0
        %v1754 = vsel %vm824, %v1632, 0
        %v1757 = vsel %vm824, %v1633, 0
        %v1760 = vsel %vm824, %v1634, 0
        %v1763 = vsel %vm824, %v1635, 0
        %v1766 = vsel %vm824, %v1636, 0
        %v1769 = vsel %vm824, %v1637, 0
        %v1772 = vsel %vm824, %v1638, 0
        %v1775 = vsel %vm824, %v1639, 0
        %v1778 = vsel %vm824, %v1640, 0
        %v1781 = vsel %vm824, %v1641, 0
        %v1784 = vsel %vm824, %v1642, 0
        %v1787 = vsel %vm824, %v1643, 0
        %v1790 = vsel %vm824, %v1644, 0
        %v1793 = vsel %vm824, %v1645, 0
        %v1796 = vsel %vm824, %v1646, 0
        %v1799 = vsel %vm824, %v1647, 0
        %v1802 = vsel %vm824, %v1648, 0
        %v1805 = vsel %vm824, %v1649, 0
        %v1808 = vsel %vm824, %v1650, 0
        %v1811 = vsel %vm824, %v1651, 0
        %v1814 = vsel %vm824, %v1652, 0
        %v1817 = vsel %vm824, %v1653, 0
        %v1820 = vsel %vm824, %v1654, 0
        %v1823 = vsel %vm824, %v1655, 0
        %v1826 = vsel %vm824, %v1656, 0
        %v1829 = vsel %vm824, %v1657, 0
        %v1832 = vsel %vm824, %v1658, 0
        %v1835 = vsel %vm824, %v1659, 0
        %v1838 = vsel %vm824, %v1660, 0
        %v1841 = vsel %vm824, %v1661, 0
        %v1844 = vsel %vm824, %v1662, 0
        %v1847 = vsel %vm824, %v1663, 0
        %v1850 = vsel %vm824, %v1664, 0
        %v1853 = vsel %vm824, %v1665, 0
        %v1856 = vsel %vm824, %v1666, 0
        %v1859 = vsel %vm824, %v1667, 0
        %v1862 = vsel %vm824, %v1668, 0
        %v1865 = vsel %vm824, %v1669, 0
        %v1868 = vsel %vm1017, %v1674, 0
        %1870 = vmatpush.bf16.msra.mxu0 0
        %1871 = vmatpush.bf16.msra.mxu0 0
        %1872 = vmatpush.bf16.msra.mxu0 0
        %1873 = vmatpush.bf16.msra.mxu0 0
        %1874 = vmatpush.bf16.msra.mxu0 0
        %1875 = vmatpush.bf16.msra.mxu0 0
        %1876 = vmatpush.bf16.msra.mxu0 0
        %1877 = vmatpush.bf16.msra.mxu0 %v1868
        %1878 = vmatmul.bf16.gmra.mxu0 %v1676
        %v1879 = vpop.f32.mrf.mxu0
        %v1880 = vadd.f32 %v1031, %v1879
        %v1881 = vpop.f32.mrf.mxu0
        %v1882 = vadd.f32 %v1033, %v1881
        %1883 = vmatmul.bf16.gmra.mxu0 %v1679
        %v1884 = vpop.f32.mrf.mxu0
        %v1885 = vadd.f32 %v1036, %v1884
        %v1886 = vpop.f32.mrf.mxu0
        %v1887 = vadd.f32 %v1038, %v1886
        %1888 = vmatmul.bf16.gmra.mxu0 %v1682
        %v1889 = vpop.f32.mrf.mxu0
        %v1890 = vadd.f32 %v1041, %v1889
        %v1891 = vpop.f32.mrf.mxu0
        %v1892 = vadd.f32 %v1043, %v1891
        %1893 = vmatmul.bf16.gmra.mxu0 %v1685
        %v1894 = vpop.f32.mrf.mxu0
        %v1895 = vadd.f32 %v1046, %v1894
        %v1896 = vpop.f32.mrf.mxu0
        %v1897 = vadd.f32 %v1048, %v1896
        %1898 = vmatmul.bf16.gmra.mxu0 %v1688
        %v1899 = vpop.f32.mrf.mxu0
        %v1900 = vadd.f32 %v1051, %v1899
        %v1901 = vpop.f32.mrf.mxu0
        %v1902 = vadd.f32 %v1053, %v1901
        %1903 = vmatmul.bf16.gmra.mxu0 %v1691
        %v1904 = vpop.f32.mrf.mxu0
        %v1905 = vadd.f32 %v1056, %v1904
        %v1906 = vpop.f32.mrf.mxu0
        %v1907 = vadd.f32 %v1058, %v1906
        %1908 = vmatmul.bf16.gmra.mxu0 %v1694
        %v1909 = vpop.f32.mrf.mxu0
        %v1910 = vadd.f32 %v1061, %v1909
        %v1911 = vpop.f32.mrf.mxu0
        %v1912 = vadd.f32 %v1063, %v1911
        %1913 = vmatmul.bf16.gmra.mxu0 %v1697
        %v1914 = vpop.f32.mrf.mxu0
        %v1915 = vadd.f32 %v1066, %v1914
        %v1916 = vpop.f32.mrf.mxu0
        %v1917 = vadd.f32 %v1068, %v1916
        %1918 = vmatmul.bf16.gmra.mxu0 %v1700
        %v1919 = vpop.f32.mrf.mxu0
        %v1920 = vadd.f32 %v1071, %v1919
        %v1921 = vpop.f32.mrf.mxu0
        %v1922 = vadd.f32 %v1073, %v1921
        %1923 = vmatmul.bf16.gmra.mxu0 %v1703
        %v1924 = vpop.f32.mrf.mxu0
        %v1925 = vadd.f32 %v1076, %v1924
        %v1926 = vpop.f32.mrf.mxu0
        %v1927 = vadd.f32 %v1078, %v1926
        %1928 = vmatmul.bf16.gmra.mxu0 %v1706
        %v1929 = vpop.f32.mrf.mxu0
        %v1930 = vadd.f32 %v1081, %v1929
        %v1931 = vpop.f32.mrf.mxu0
        %v1932 = vadd.f32 %v1083, %v1931
        %1933 = vmatmul.bf16.gmra.mxu0 %v1709
        %v1934 = vpop.f32.mrf.mxu0
        %v1935 = vadd.f32 %v1086, %v1934
        %v1936 = vpop.f32.mrf.mxu0
        %v1937 = vadd.f32 %v1088, %v1936
        %1938 = vmatmul.bf16.gmra.mxu0 %v1712
        %v1939 = vpop.f32.mrf.mxu0
        %v1940 = vadd.f32 %v1091, %v1939
        %v1941 = vpop.f32.mrf.mxu0
        %v1942 = vadd.f32 %v1093, %v1941
        %1943 = vmatmul.bf16.gmra.mxu0 %v1715
        %v1944 = vpop.f32.mrf.mxu0
        %v1945 = vadd.f32 %v1096, %v1944
        %v1946 = vpop.f32.mrf.mxu0
        %v1947 = vadd.f32 %v1098, %v1946
        %1948 = vmatmul.bf16.gmra.mxu0 %v1718
        %v1949 = vpop.f32.mrf.mxu0
        %v1950 = vadd.f32 %v1101, %v1949
        %v1951 = vpop.f32.mrf.mxu0
        %v1952 = vadd.f32 %v1103, %v1951
        %1953 = vmatmul.bf16.gmra.mxu0 %v1721
        %v1954 = vpop.f32.mrf.mxu0
        %v1955 = vadd.f32 %v1106, %v1954
        %v1956 = vpop.f32.mrf.mxu0
        %v1957 = vadd.f32 %v1108, %v1956
        %1958 = vmatmul.bf16.gmra.mxu0 %v1724
        %v1959 = vpop.f32.mrf.mxu0
        %v1960 = vadd.f32 %v1111, %v1959
        %v1961 = vpop.f32.mrf.mxu0
        %v1962 = vadd.f32 %v1113, %v1961
        %1963 = vmatmul.bf16.gmra.mxu0 %v1727
        %v1964 = vpop.f32.mrf.mxu0
        %v1965 = vadd.f32 %v1116, %v1964
        %v1966 = vpop.f32.mrf.mxu0
        %v1967 = vadd.f32 %v1118, %v1966
        %1968 = vmatmul.bf16.gmra.mxu0 %v1730
        %v1969 = vpop.f32.mrf.mxu0
        %v1970 = vadd.f32 %v1121, %v1969
        %v1971 = vpop.f32.mrf.mxu0
        %v1972 = vadd.f32 %v1123, %v1971
        %1973 = vmatmul.bf16.gmra.mxu0 %v1733
        %v1974 = vpop.f32.mrf.mxu0
        %v1975 = vadd.f32 %v1126, %v1974
        %v1976 = vpop.f32.mrf.mxu0
        %v1977 = vadd.f32 %v1128, %v1976
        %1978 = vmatmul.bf16.gmra.mxu0 %v1736
        %v1979 = vpop.f32.mrf.mxu0
        %v1980 = vadd.f32 %v1131, %v1979
        %v1981 = vpop.f32.mrf.mxu0
        %v1982 = vadd.f32 %v1133, %v1981
        %1983 = vmatmul.bf16.gmra.mxu0 %v1739
        %v1984 = vpop.f32.mrf.mxu0
        %v1985 = vadd.f32 %v1136, %v1984
        %v1986 = vpop.f32.mrf.mxu0
        %v1987 = vadd.f32 %v1138, %v1986
        %1988 = vmatmul.bf16.gmra.mxu0 %v1742
        %v1989 = vpop.f32.mrf.mxu0
        %v1990 = vadd.f32 %v1141, %v1989
        %v1991 = vpop.f32.mrf.mxu0
        %v1992 = vadd.f32 %v1143, %v1991
        %1993 = vmatmul.bf16.gmra.mxu0 %v1745
        %v1994 = vpop.f32.mrf.mxu0
        %v1995 = vadd.f32 %v1146, %v1994
        %v1996 = vpop.f32.mrf.mxu0
        %v1997 = vadd.f32 %v1148, %v1996
        %1998 = vmatmul.bf16.gmra.mxu0 %v1748
        %v1999 = vpop.f32.mrf.mxu0
        %v2000 = vadd.f32 %v1151, %v1999
        %v2001 = vpop.f32.mrf.mxu0
        %v2002 = vadd.f32 %v1153, %v2001
        %2003 = vmatmul.bf16.gmra.mxu0 %v1751
        %v2004 = vpop.f32.mrf.mxu0
        %v2005 = vadd.f32 %v1156, %v2004
        %v2006 = vpop.f32.mrf.mxu0
        %v2007 = vadd.f32 %v1158, %v2006
        %2008 = vmatmul.bf16.gmra.mxu0 %v1754
        %v2009 = vpop.f32.mrf.mxu0
        %v2010 = vadd.f32 %v1161, %v2009
        %v2011 = vpop.f32.mrf.mxu0
        %v2012 = vadd.f32 %v1163, %v2011
        %2013 = vmatmul.bf16.gmra.mxu0 %v1757
        %v2014 = vpop.f32.mrf.mxu0
        %v2015 = vadd.f32 %v1166, %v2014
        %v2016 = vpop.f32.mrf.mxu0
        %v2017 = vadd.f32 %v1168, %v2016
        %2018 = vmatmul.bf16.gmra.mxu0 %v1760
        %v2019 = vpop.f32.mrf.mxu0
        %v2020 = vadd.f32 %v1171, %v2019
        %v2021 = vpop.f32.mrf.mxu0
        %v2022 = vadd.f32 %v1173, %v2021
        %2023 = vmatmul.bf16.gmra.mxu0 %v1763
        %v2024 = vpop.f32.mrf.mxu0
        %v2025 = vadd.f32 %v1176, %v2024
        %v2026 = vpop.f32.mrf.mxu0
        %v2027 = vadd.f32 %v1178, %v2026
        %2028 = vmatmul.bf16.gmra.mxu0 %v1766
        %v2029 = vpop.f32.mrf.mxu0
        %v2030 = vadd.f32 %v1181, %v2029
        %v2031 = vpop.f32.mrf.mxu0
        %v2032 = vadd.f32 %v1183, %v2031
        %2033 = vmatmul.bf16.gmra.mxu0 %v1769
        %v2034 = vpop.f32.mrf.mxu0
        %v2035 = vadd.f32 %v1186, %v2034
        %v2036 = vpop.f32.mrf.mxu0
        %v2037 = vadd.f32 %v1188, %v2036
        %2038 = vmatmul.bf16.gmra.mxu0 %v1772
        %v2039 = vpop.f32.mrf.mxu0
        %v2040 = vadd.f32 %v1191, %v2039
        %v2041 = vpop.f32.mrf.mxu0
        %v2042 = vadd.f32 %v1193, %v2041
        %2043 = vmatmul.bf16.gmra.mxu0 %v1775
        %v2044 = vpop.f32.mrf.mxu0
        %v2045 = vadd.f32 %v1196, %v2044
        %v2046 = vpop.f32.mrf.mxu0
        %v2047 = vadd.f32 %v1198, %v2046
        %2048 = vmatmul.bf16.gmra.mxu0 %v1778
        %v2049 = vpop.f32.mrf.mxu0
        %v2050 = vadd.f32 %v1201, %v2049
        %v2051 = vpop.f32.mrf.mxu0
        %v2052 = vadd.f32 %v1203, %v2051
        %2053 = vmatmul.bf16.gmra.mxu0 %v1781
        %v2054 = vpop.f32.mrf.mxu0
        %v2055 = vadd.f32 %v1206, %v2054
        %v2056 = vpop.f32.mrf.mxu0
        %v2057 = vadd.f32 %v1208, %v2056
        %2058 = vmatmul.bf16.gmra.mxu0 %v1784
        %v2059 = vpop.f32.mrf.mxu0
        %v2060 = vadd.f32 %v1211, %v2059
        %v2061 = vpop.f32.mrf.mxu0
        %v2062 = vadd.f32 %v1213, %v2061
        %2063 = vmatmul.bf16.gmra.mxu0 %v1787
        %v2064 = vpop.f32.mrf.mxu0
        %v2065 = vadd.f32 %v1216, %v2064
        %v2066 = vpop.f32.mrf.mxu0
        %v2067 = vadd.f32 %v1218, %v2066
        %2068 = vmatmul.bf16.gmra.mxu0 %v1790
        %v2069 = vpop.f32.mrf.mxu0
        %v2070 = vadd.f32 %v1221, %v2069
        %v2071 = vpop.f32.mrf.mxu0
        %v2072 = vadd.f32 %v1223, %v2071
        %2073 = vmatmul.bf16.gmra.mxu0 %v1793
        %v2074 = vpop.f32.mrf.mxu0
        %v2075 = vadd.f32 %v1226, %v2074
        %v2076 = vpop.f32.mrf.mxu0
        %v2077 = vadd.f32 %v1228, %v2076
        %2078 = vmatmul.bf16.gmra.mxu0 %v1796
        %v2079 = vpop.f32.mrf.mxu0
        %v2080 = vadd.f32 %v1231, %v2079
        %v2081 = vpop.f32.mrf.mxu0
        %v2082 = vadd.f32 %v1233, %v2081
        %2083 = vmatmul.bf16.gmra.mxu0 %v1799
        %v2084 = vpop.f32.mrf.mxu0
        %v2085 = vadd.f32 %v1236, %v2084
        %v2086 = vpop.f32.mrf.mxu0
        %v2087 = vadd.f32 %v1238, %v2086
        %2088 = vmatmul.bf16.gmra.mxu0 %v1802
        %v2089 = vpop.f32.mrf.mxu0
        %v2090 = vadd.f32 %v1241, %v2089
        %v2091 = vpop.f32.mrf.mxu0
        %v2092 = vadd.f32 %v1243, %v2091
        %2093 = vmatmul.bf16.gmra.mxu0 %v1805
        %v2094 = vpop.f32.mrf.mxu0
        %v2095 = vadd.f32 %v1246, %v2094
        %v2096 = vpop.f32.mrf.mxu0
        %v2097 = vadd.f32 %v1248, %v2096
        %2098 = vmatmul.bf16.gmra.mxu0 %v1808
        %v2099 = vpop.f32.mrf.mxu0
        %v2100 = vadd.f32 %v1251, %v2099
        %v2101 = vpop.f32.mrf.mxu0
        %v2102 = vadd.f32 %v1253, %v2101
        %2103 = vmatmul.bf16.gmra.mxu0 %v1811
        %v2104 = vpop.f32.mrf.mxu0
        %v2105 = vadd.f32 %v1256, %v2104
        %v2106 = vpop.f32.mrf.mxu0
        %v2107 = vadd.f32 %v1258, %v2106
        %2108 = vmatmul.bf16.gmra.mxu0 %v1814
        %v2109 = vpop.f32.mrf.mxu0
        %v2110 = vadd.f32 %v1261, %v2109
        %v2111 = vpop.f32.mrf.mxu0
        %v2112 = vadd.f32 %v1263, %v2111
        %2113 = vmatmul.bf16.gmra.mxu0 %v1817
        %v2114 = vpop.f32.mrf.mxu0
        %v2115 = vadd.f32 %v1266, %v2114
        %v2116 = vpop.f32.mrf.mxu0
        %v2117 = vadd.f32 %v1268, %v2116
        %2118 = vmatmul.bf16.gmra.mxu0 %v1820
        %v2119 = vpop.f32.mrf.mxu0
        %v2120 = vadd.f32 %v1271, %v2119
        %v2121 = vpop.f32.mrf.mxu0
        %v2122 = vadd.f32 %v1273, %v2121
        %2123 = vmatmul.bf16.gmra.mxu0 %v1823
        %v2124 = vpop.f32.mrf.mxu0
        %v2125 = vadd.f32 %v1276, %v2124
        %v2126 = vpop.f32.mrf.mxu0
        %v2127 = vadd.f32 %v1278, %v2126
        %2128 = vmatmul.bf16.gmra.mxu0 %v1826
        %v2129 = vpop.f32.mrf.mxu0
        %v2130 = vadd.f32 %v1281, %v2129
        %v2131 = vpop.f32.mrf.mxu0
        %v2132 = vadd.f32 %v1283, %v2131
        %2133 = vmatmul.bf16.gmra.mxu0 %v1829
        %v2134 = vpop.f32.mrf.mxu0
        %v2135 = vadd.f32 %v1286, %v2134
        %v2136 = vpop.f32.mrf.mxu0
        %v2137 = vadd.f32 %v1288, %v2136
        %2138 = vmatmul.bf16.gmra.mxu0 %v1832
        %v2139 = vpop.f32.mrf.mxu0
        %v2140 = vadd.f32 %v1291, %v2139
        %v2141 = vpop.f32.mrf.mxu0
        %v2142 = vadd.f32 %v1293, %v2141
        %2143 = vmatmul.bf16.gmra.mxu0 %v1835
        %v2144 = vpop.f32.mrf.mxu0
        %v2145 = vadd.f32 %v1296, %v2144
        %v2146 = vpop.f32.mrf.mxu0
        %v2147 = vadd.f32 %v1298, %v2146
        %2148 = vmatmul.bf16.gmra.mxu0 %v1838
        %v2149 = vpop.f32.mrf.mxu0
        %v2150 = vadd.f32 %v1301, %v2149
        %v2151 = vpop.f32.mrf.mxu0
        %v2152 = vadd.f32 %v1303, %v2151
        %2153 = vmatmul.bf16.gmra.mxu0 %v1841
        %v2154 = vpop.f32.mrf.mxu0
        %v2155 = vadd.f32 %v1306, %v2154
        %v2156 = vpop.f32.mrf.mxu0
        %v2157 = vadd.f32 %v1308, %v2156
        %2158 = vmatmul.bf16.gmra.mxu0 %v1844
        %v2159 = vpop.f32.mrf.mxu0
        %v2160 = vadd.f32 %v1311, %v2159
        %v2161 = vpop.f32.mrf.mxu0
        %v2162 = vadd.f32 %v1313, %v2161
        %2163 = vmatmul.bf16.gmra.mxu0 %v1847
        %v2164 = vpop.f32.mrf.mxu0
        %v2165 = vadd.f32 %v1316, %v2164
        %v2166 = vpop.f32.mrf.mxu0
        %v2167 = vadd.f32 %v1318, %v2166
        %2168 = vmatmul.bf16.gmra.mxu0 %v1850
        %v2169 = vpop.f32.mrf.mxu0
        %v2170 = vadd.f32 %v1321, %v2169
        %v2171 = vpop.f32.mrf.mxu0
        %v2172 = vadd.f32 %v1323, %v2171
        %2173 = vmatmul.bf16.gmra.mxu0 %v1853
        %v2174 = vpop.f32.mrf.mxu0
        %v2175 = vadd.f32 %v1326, %v2174
        %v2176 = vpop.f32.mrf.mxu0
        %v2177 = vadd.f32 %v1328, %v2176
        %2178 = vmatmul.bf16.gmra.mxu0 %v1856
        %v2179 = vpop.f32.mrf.mxu0
        %v2180 = vadd.f32 %v1331, %v2179
        %v2181 = vpop.f32.mrf.mxu0
        %v2182 = vadd.f32 %v1333, %v2181
        %2183 = vmatmul.bf16.gmra.mxu0 %v1859
        %v2184 = vpop.f32.mrf.mxu0
        %v2185 = vadd.f32 %v1336, %v2184
        %v2186 = vpop.f32.mrf.mxu0
        %v2187 = vadd.f32 %v1338, %v2186
        %2188 = vmatmul.bf16.gmra.mxu0 %v1862
        %v2189 = vpop.f32.mrf.mxu0
        %v2190 = vadd.f32 %v1341, %v2189
        %v2191 = vpop.f32.mrf.mxu0
        %v2192 = vadd.f32 %v1343, %v2191
        %2193 = vmatmul.bf16.gmra.mxu0 %v1865
        %v2194 = vpop.f32.mrf.mxu0
        %v2195 = vadd.f32 %v1346, %v2194
        %v2196 = vpop.f32.mrf.mxu0
        %v2197 = vadd.f32 %v1348, %v2196
        %2198 = vdwg.mxu0
        %s2199 = sadd.s32 %s232, 1
        %s2200 = smul.u32 %s2199, 8
        %s2201 = smul.addr %s2200, 4
        %s2202 = scalar_lea.vmem %s224, %s2201
        %v2203 = vld [vmem:[%s2202] sm:$0xf]
        %v2204 = vld [vmem:[%s2202 + $0x4] sm:$0xf]
        %v2205 = vld [vmem:[%s2202 + $0x8] sm:$0xf]
        %v2206 = vld [vmem:[%s2202 + $0xc] sm:$0xf]
        %v2207 = vld [vmem:[%s2202 + $0x10] sm:$0xf]
        %v2208 = vld [vmem:[%s2202 + $0x14] sm:$0xf]
        %v2209 = vld [vmem:[%s2202 + $0x18] sm:$0xf]
        %v2210 = vld [vmem:[%s2202 + $0x1c] sm:$0xf]
        %v2211 = vld [vmem:[%s2202 + $0x20] sm:$0xf]
        %v2212 = vld [vmem:[%s2202 + $0x24] sm:$0xf]
        %v2213 = vld [vmem:[%s2202 + $0x28] sm:$0xf]
        %v2214 = vld [vmem:[%s2202 + $0x2c] sm:$0xf]
        %v2215 = vld [vmem:[%s2202 + $0x30] sm:$0xf]
        %v2216 = vld [vmem:[%s2202 + $0x34] sm:$0xf]
        %v2217 = vld [vmem:[%s2202 + $0x38] sm:$0xf]
        %v2218 = vld [vmem:[%s2202 + $0x3c] sm:$0xf]
        %v2219 = vld [vmem:[%s2202 + $0x40] sm:$0xf]
        %v2220 = vld [vmem:[%s2202 + $0x44] sm:$0xf]
        %v2221 = vld [vmem:[%s2202 + $0x48] sm:$0xf]
        %v2222 = vld [vmem:[%s2202 + $0x4c] sm:$0xf]
        %v2223 = vld [vmem:[%s2202 + $0x50] sm:$0xf]
        %v2224 = vld [vmem:[%s2202 + $0x54] sm:$0xf]
        %v2225 = vld [vmem:[%s2202 + $0x58] sm:$0xf]
        %v2226 = vld [vmem:[%s2202 + $0x5c] sm:$0xf]
        %v2227 = vld [vmem:[%s2202 + $0x60] sm:$0xf]
        %v2228 = vld [vmem:[%s2202 + $0x64] sm:$0xf]
        %v2229 = vld [vmem:[%s2202 + $0x68] sm:$0xf]
        %v2230 = vld [vmem:[%s2202 + $0x6c] sm:$0xf]
        %v2231 = vld [vmem:[%s2202 + $0x70] sm:$0xf]
        %v2232 = vld [vmem:[%s2202 + $0x74] sm:$0xf]
        %v2233 = vld [vmem:[%s2202 + $0x78] sm:$0xf]
        %v2234 = vld [vmem:[%s2202 + $0x7c] sm:$0xf]
        %v2235 = vld [vmem:[%s2202 + $0x80] sm:$0xf]
        %v2236 = vld [vmem:[%s2202 + $0x84] sm:$0xf]
        %v2237 = vld [vmem:[%s2202 + $0x88] sm:$0xf]
        %v2238 = vld [vmem:[%s2202 + $0x8c] sm:$0xf]
        %v2239 = vld [vmem:[%s2202 + $0x90] sm:$0xf]
        %v2240 = vld [vmem:[%s2202 + $0x94] sm:$0xf]
        %v2241 = vld [vmem:[%s2202 + $0x98] sm:$0xf]
        %v2242 = vld [vmem:[%s2202 + $0x9c] sm:$0xf]
        %v2243 = vld [vmem:[%s2202 + $0xa0] sm:$0xf]
        %v2244 = vld [vmem:[%s2202 + $0xa4] sm:$0xf]
        %v2245 = vld [vmem:[%s2202 + $0xa8] sm:$0xf]
        %v2246 = vld [vmem:[%s2202 + $0xac] sm:$0xf]
        %v2247 = vld [vmem:[%s2202 + $0xb0] sm:$0xf]
        %v2248 = vld [vmem:[%s2202 + $0xb4] sm:$0xf]
        %v2249 = vld [vmem:[%s2202 + $0xb8] sm:$0xf]
        %v2250 = vld [vmem:[%s2202 + $0xbc] sm:$0xf]
        %v2251 = vld [vmem:[%s2202 + $0xc0] sm:$0xf]
        %v2252 = vld [vmem:[%s2202 + $0xc4] sm:$0xf]
        %v2253 = vld [vmem:[%s2202 + $0xc8] sm:$0xf]
        %v2254 = vld [vmem:[%s2202 + $0xcc] sm:$0xf]
        %v2255 = vld [vmem:[%s2202 + $0xd0] sm:$0xf]
        %v2256 = vld [vmem:[%s2202 + $0xd4] sm:$0xf]
        %v2257 = vld [vmem:[%s2202 + $0xd8] sm:$0xf]
        %v2258 = vld [vmem:[%s2202 + $0xdc] sm:$0xf]
        %v2259 = vld [vmem:[%s2202 + $0xe0] sm:$0xf]
        %v2260 = vld [vmem:[%s2202 + $0xe4] sm:$0xf]
        %v2261 = vld [vmem:[%s2202 + $0xe8] sm:$0xf]
        %v2262 = vld [vmem:[%s2202 + $0xec] sm:$0xf]
        %v2263 = vld [vmem:[%s2202 + $0xf0] sm:$0xf]
        %v2264 = vld [vmem:[%s2202 + $0xf4] sm:$0xf]
        %v2265 = vld [vmem:[%s2202 + $0xf8] sm:$0xf]
        %v2266 = vld [vmem:[%s2202 + $0xfc] sm:$0xf]
        %v2267 = vld [vmem:[%s2202 + $0x100] sm:$0xf]
        %v2268 = vld [vmem:[%s2202 + $0x104] sm:$0xf]
        %v2269 = vld [vmem:[%s2202 + $0x108] sm:$0xf]
        %v2270 = vld [vmem:[%s2202 + $0x10c] sm:$0xf]
        %v2271 = vld [vmem:[%s2202 + $0x110] sm:$0xf]
        %v2272 = vld [vmem:[%s2202 + $0x114] sm:$0xf]
        %v2273 = vld [vmem:[%s2202 + $0x118] sm:$0xf]
        %v2274 = vld [vmem:[%s2202 + $0x11c] sm:$0xf]
        %v2275 = vld [vmem:[%s2202 + $0x120] sm:$0xf]
        %v2276 = vld [vmem:[%s2202 + $0x124] sm:$0xf]
        %v2277 = vld [vmem:[%s2202 + $0x128] sm:$0xf]
        %v2278 = vld [vmem:[%s2202 + $0x12c] sm:$0xf]
        %v2279 = vld [vmem:[%s2202 + $0x130] sm:$0xf]
        %v2280 = vld [vmem:[%s2202 + $0x134] sm:$0xf]
        %v2281 = vld [vmem:[%s2202 + $0x138] sm:$0xf]
        %v2282 = vld [vmem:[%s2202 + $0x13c] sm:$0xf]
        %v2283 = vld [vmem:[%s2202 + $0x140] sm:$0xf]
        %v2284 = vld [vmem:[%s2202 + $0x144] sm:$0xf]
        %v2285 = vld [vmem:[%s2202 + $0x148] sm:$0xf]
        %v2286 = vld [vmem:[%s2202 + $0x14c] sm:$0xf]
        %v2287 = vld [vmem:[%s2202 + $0x150] sm:$0xf]
        %v2288 = vld [vmem:[%s2202 + $0x154] sm:$0xf]
        %v2289 = vld [vmem:[%s2202 + $0x158] sm:$0xf]
        %v2290 = vld [vmem:[%s2202 + $0x15c] sm:$0xf]
        %v2291 = vld [vmem:[%s2202 + $0x160] sm:$0xf]
        %v2292 = vld [vmem:[%s2202 + $0x164] sm:$0xf]
        %v2293 = vld [vmem:[%s2202 + $0x168] sm:$0xf]
        %v2294 = vld [vmem:[%s2202 + $0x16c] sm:$0xf]
        %v2295 = vld [vmem:[%s2202 + $0x170] sm:$0xf]
        %v2296 = vld [vmem:[%s2202 + $0x174] sm:$0xf]
        %v2297 = vld [vmem:[%s2202 + $0x178] sm:$0xf]
        %v2298 = vld [vmem:[%s2202 + $0x17c] sm:$0xf]
        %v2299 = vld [vmem:[%s2202 + $0x180] sm:$0xf]
        %v2300 = vld [vmem:[%s2202 + $0x184] sm:$0xf]
        %v2301 = vld [vmem:[%s2202 + $0x188] sm:$0xf]
        %v2302 = vld [vmem:[%s2202 + $0x18c] sm:$0xf]
        %v2303 = vld [vmem:[%s2202 + $0x190] sm:$0xf]
        %v2304 = vld [vmem:[%s2202 + $0x194] sm:$0xf]
        %v2305 = vld [vmem:[%s2202 + $0x198] sm:$0xf]
        %v2306 = vld [vmem:[%s2202 + $0x19c] sm:$0xf]
        %v2307 = vld [vmem:[%s2202 + $0x1a0] sm:$0xf]
        %v2308 = vld [vmem:[%s2202 + $0x1a4] sm:$0xf]
        %v2309 = vld [vmem:[%s2202 + $0x1a8] sm:$0xf]
        %v2310 = vld [vmem:[%s2202 + $0x1ac] sm:$0xf]
        %v2311 = vld [vmem:[%s2202 + $0x1b0] sm:$0xf]
        %v2312 = vld [vmem:[%s2202 + $0x1b4] sm:$0xf]
        %v2313 = vld [vmem:[%s2202 + $0x1b8] sm:$0xf]
        %v2314 = vld [vmem:[%s2202 + $0x1bc] sm:$0xf]
        %v2315 = vld [vmem:[%s2202 + $0x1c0] sm:$0xf]
        %v2316 = vld [vmem:[%s2202 + $0x1c4] sm:$0xf]
        %v2317 = vld [vmem:[%s2202 + $0x1c8] sm:$0xf]
        %v2318 = vld [vmem:[%s2202 + $0x1cc] sm:$0xf]
        %v2319 = vld [vmem:[%s2202 + $0x1d0] sm:$0xf]
        %v2320 = vld [vmem:[%s2202 + $0x1d4] sm:$0xf]
        %v2321 = vld [vmem:[%s2202 + $0x1d8] sm:$0xf]
        %v2322 = vld [vmem:[%s2202 + $0x1dc] sm:$0xf]
        %v2323 = vld [vmem:[%s2202 + $0x1e0] sm:$0xf]
        %v2324 = vld [vmem:[%s2202 + $0x1e4] sm:$0xf]
        %v2325 = vld [vmem:[%s2202 + $0x1e8] sm:$0xf]
        %v2326 = vld [vmem:[%s2202 + $0x1ec] sm:$0xf]
        %v2327 = vld [vmem:[%s2202 + $0x1f0] sm:$0xf]
        %v2328 = vld [vmem:[%s2202 + $0x1f4] sm:$0xf]
        %v2329 = vld [vmem:[%s2202 + $0x1f8] sm:$0xf]
        %v2330 = vld [vmem:[%s2202 + $0x1fc] sm:$0xf]
        %s2331 = scalar_lea.vmem %s2, 16
        %v2332 = vld [vmem:[%s2331] sm:$0xf]
        %v2333 = vld [vmem:[%s2331 + $0x4] sm:$0x3]
        %v2462 = vunpack.c.l.b16 %v2203
        %v2463 = vunpack.c.l.b16 %v2204
        %v2464 = vunpack.c.l.b16 %v2205
        %v2465 = vunpack.c.l.b16 %v2206
        %v2466 = vunpack.c.l.b16 %v2207
        %v2467 = vunpack.c.l.b16 %v2208
        %v2468 = vunpack.c.l.b16 %v2209
        %v2469 = vunpack.c.l.b16 %v2210
        %v2470 = vunpack.c.l.b16 %v2211
        %v2471 = vunpack.c.l.b16 %v2212
        %v2472 = vunpack.c.l.b16 %v2213
        %v2473 = vunpack.c.l.b16 %v2214
        %v2474 = vunpack.c.l.b16 %v2215
        %v2475 = vunpack.c.l.b16 %v2216
        %v2476 = vunpack.c.l.b16 %v2217
        %v2477 = vunpack.c.l.b16 %v2218
        %v2478 = vunpack.c.l.b16 %v2219
        %v2479 = vunpack.c.l.b16 %v2220
        %v2480 = vunpack.c.l.b16 %v2221
        %v2481 = vunpack.c.l.b16 %v2222
        %v2482 = vunpack.c.l.b16 %v2223
        %v2483 = vunpack.c.l.b16 %v2224
        %v2484 = vunpack.c.l.b16 %v2225
        %v2485 = vunpack.c.l.b16 %v2226
        %v2486 = vunpack.c.l.b16 %v2227
        %v2487 = vunpack.c.l.b16 %v2228
        %v2488 = vunpack.c.l.b16 %v2229
        %v2489 = vunpack.c.l.b16 %v2230
        %v2490 = vunpack.c.l.b16 %v2231
        %v2491 = vunpack.c.l.b16 %v2232
        %v2492 = vunpack.c.l.b16 %v2233
        %v2493 = vunpack.c.l.b16 %v2234
        %v2494 = vunpack.c.l.b16 %v2235
        %v2495 = vunpack.c.l.b16 %v2236
        %v2496 = vunpack.c.l.b16 %v2237
        %v2497 = vunpack.c.l.b16 %v2238
        %v2498 = vunpack.c.l.b16 %v2239
        %v2499 = vunpack.c.l.b16 %v2240
        %v2500 = vunpack.c.l.b16 %v2241
        %v2501 = vunpack.c.l.b16 %v2242
        %v2502 = vunpack.c.l.b16 %v2243
        %v2503 = vunpack.c.l.b16 %v2244
        %v2504 = vunpack.c.l.b16 %v2245
        %v2505 = vunpack.c.l.b16 %v2246
        %v2506 = vunpack.c.l.b16 %v2247
        %v2507 = vunpack.c.l.b16 %v2248
        %v2508 = vunpack.c.l.b16 %v2249
        %v2509 = vunpack.c.l.b16 %v2250
        %v2510 = vunpack.c.l.b16 %v2251
        %v2511 = vunpack.c.l.b16 %v2252
        %v2512 = vunpack.c.l.b16 %v2253
        %v2513 = vunpack.c.l.b16 %v2254
        %v2514 = vunpack.c.l.b16 %v2255
        %v2515 = vunpack.c.l.b16 %v2256
        %v2516 = vunpack.c.l.b16 %v2257
        %v2517 = vunpack.c.l.b16 %v2258
        %v2518 = vunpack.c.l.b16 %v2259
        %v2519 = vunpack.c.l.b16 %v2260
        %v2520 = vunpack.c.l.b16 %v2261
        %v2521 = vunpack.c.l.b16 %v2262
        %v2522 = vunpack.c.l.b16 %v2263
        %v2523 = vunpack.c.l.b16 %v2264
        %v2524 = vunpack.c.l.b16 %v2265
        %v2525 = vunpack.c.l.b16 %v2266
        %v2526 = vunpack.c.l.b16 %v2267
        %v2527 = vunpack.c.l.b16 %v2268
        %v2528 = vunpack.c.l.b16 %v2269
        %v2529 = vunpack.c.l.b16 %v2270
        %v2530 = vunpack.c.l.b16 %v2271
        %v2531 = vunpack.c.l.b16 %v2272
        %v2532 = vunpack.c.l.b16 %v2273
        %v2533 = vunpack.c.l.b16 %v2274
        %v2534 = vunpack.c.l.b16 %v2275
        %v2535 = vunpack.c.l.b16 %v2276
        %v2536 = vunpack.c.l.b16 %v2277
        %v2537 = vunpack.c.l.b16 %v2278
        %v2538 = vunpack.c.l.b16 %v2279
        %v2539 = vunpack.c.l.b16 %v2280
        %v2540 = vunpack.c.l.b16 %v2281
        %v2541 = vunpack.c.l.b16 %v2282
        %v2542 = vunpack.c.l.b16 %v2283
        %v2543 = vunpack.c.l.b16 %v2284
        %v2544 = vunpack.c.l.b16 %v2285
        %v2545 = vunpack.c.l.b16 %v2286
        %v2546 = vunpack.c.l.b16 %v2287
        %v2547 = vunpack.c.l.b16 %v2288
        %v2548 = vunpack.c.l.b16 %v2289
        %v2549 = vunpack.c.l.b16 %v2290
        %v2550 = vunpack.c.l.b16 %v2291
        %v2551 = vunpack.c.l.b16 %v2292
        %v2552 = vunpack.c.l.b16 %v2293
        %v2553 = vunpack.c.l.b16 %v2294
        %v2554 = vunpack.c.l.b16 %v2295
        %v2555 = vunpack.c.l.b16 %v2296
        %v2556 = vunpack.c.l.b16 %v2297
        %v2557 = vunpack.c.l.b16 %v2298
        %v2558 = vunpack.c.l.b16 %v2299
        %v2559 = vunpack.c.l.b16 %v2300
        %v2560 = vunpack.c.l.b16 %v2301
        %v2561 = vunpack.c.l.b16 %v2302
        %v2562 = vunpack.c.l.b16 %v2303
        %v2563 = vunpack.c.l.b16 %v2304
        %v2564 = vunpack.c.l.b16 %v2305
        %v2565 = vunpack.c.l.b16 %v2306
        %v2566 = vunpack.c.l.b16 %v2307
        %v2567 = vunpack.c.l.b16 %v2308
        %v2568 = vunpack.c.l.b16 %v2309
        %v2569 = vunpack.c.l.b16 %v2310
        %v2570 = vunpack.c.l.b16 %v2311
        %v2571 = vunpack.c.l.b16 %v2312
        %v2572 = vunpack.c.l.b16 %v2313
        %v2573 = vunpack.c.l.b16 %v2314
        %v2574 = vunpack.c.l.b16 %v2315
        %v2575 = vunpack.c.l.b16 %v2316
        %v2576 = vunpack.c.l.b16 %v2317
        %v2577 = vunpack.c.l.b16 %v2318
        %v2578 = vunpack.c.l.b16 %v2319
        %v2579 = vunpack.c.l.b16 %v2320
        %v2580 = vunpack.c.l.b16 %v2321
        %v2581 = vunpack.c.l.b16 %v2322
        %v2582 = vunpack.c.l.b16 %v2323
        %v2583 = vunpack.c.l.b16 %v2324
        %v2584 = vunpack.c.l.b16 %v2325
        %v2585 = vunpack.c.l.b16 %v2326
        %v2586 = vunpack.c.l.b16 %v2327
        %v2587 = vunpack.c.l.b16 %v2328
        %v2588 = vunpack.c.l.b16 %v2329
        %v2589 = vunpack.c.l.b16 %v2330
        %v2590 = vpack.c.b16 %v2463, %v2462
        %v2591 = vpack.c.b16 %v2465, %v2464
        %v2592 = vpack.c.b16 %v2467, %v2466
        %v2593 = vpack.c.b16 %v2469, %v2468
        %v2594 = vpack.c.b16 %v2471, %v2470
        %v2595 = vpack.c.b16 %v2473, %v2472
        %v2596 = vpack.c.b16 %v2475, %v2474
        %v2597 = vpack.c.b16 %v2477, %v2476
        %v2598 = vpack.c.b16 %v2479, %v2478
        %v2599 = vpack.c.b16 %v2481, %v2480
        %v2600 = vpack.c.b16 %v2483, %v2482
        %v2601 = vpack.c.b16 %v2485, %v2484
        %v2602 = vpack.c.b16 %v2487, %v2486
        %v2603 = vpack.c.b16 %v2489, %v2488
        %v2604 = vpack.c.b16 %v2491, %v2490
        %v2605 = vpack.c.b16 %v2493, %v2492
        %v2606 = vpack.c.b16 %v2495, %v2494
        %v2607 = vpack.c.b16 %v2497, %v2496
        %v2608 = vpack.c.b16 %v2499, %v2498
        %v2609 = vpack.c.b16 %v2501, %v2500
        %v2610 = vpack.c.b16 %v2503, %v2502
        %v2611 = vpack.c.b16 %v2505, %v2504
        %v2612 = vpack.c.b16 %v2507, %v2506
        %v2613 = vpack.c.b16 %v2509, %v2508
        %v2614 = vpack.c.b16 %v2511, %v2510
        %v2615 = vpack.c.b16 %v2513, %v2512
        %v2616 = vpack.c.b16 %v2515, %v2514
        %v2617 = vpack.c.b16 %v2517, %v2516
        %v2618 = vpack.c.b16 %v2519, %v2518
        %v2619 = vpack.c.b16 %v2521, %v2520
        %v2620 = vpack.c.b16 %v2523, %v2522
        %v2621 = vpack.c.b16 %v2525, %v2524
        %v2622 = vpack.c.b16 %v2527, %v2526
        %v2623 = vpack.c.b16 %v2529, %v2528
        %v2624 = vpack.c.b16 %v2531, %v2530
        %v2625 = vpack.c.b16 %v2533, %v2532
        %v2626 = vpack.c.b16 %v2535, %v2534
        %v2627 = vpack.c.b16 %v2537, %v2536
        %v2628 = vpack.c.b16 %v2539, %v2538
        %v2629 = vpack.c.b16 %v2541, %v2540
        %v2630 = vpack.c.b16 %v2543, %v2542
        %v2631 = vpack.c.b16 %v2545, %v2544
        %v2632 = vpack.c.b16 %v2547, %v2546
        %v2633 = vpack.c.b16 %v2549, %v2548
        %v2634 = vpack.c.b16 %v2551, %v2550
        %v2635 = vpack.c.b16 %v2553, %v2552
        %v2636 = vpack.c.b16 %v2555, %v2554
        %v2637 = vpack.c.b16 %v2557, %v2556
        %v2638 = vpack.c.b16 %v2559, %v2558
        %v2639 = vpack.c.b16 %v2561, %v2560
        %v2640 = vpack.c.b16 %v2563, %v2562
        %v2641 = vpack.c.b16 %v2565, %v2564
        %v2642 = vpack.c.b16 %v2567, %v2566
        %v2643 = vpack.c.b16 %v2569, %v2568
        %v2644 = vpack.c.b16 %v2571, %v2570
        %v2645 = vpack.c.b16 %v2573, %v2572
        %v2646 = vpack.c.b16 %v2575, %v2574
        %v2647 = vpack.c.b16 %v2577, %v2576
        %v2648 = vpack.c.b16 %v2579, %v2578
        %v2649 = vpack.c.b16 %v2581, %v2580
        %v2650 = vpack.c.b16 %v2583, %v2582
        %v2651 = vpack.c.b16 %v2585, %v2584
        %v2652 = vpack.c.b16 %v2587, %v2586
        %v2653 = vpack.c.b16 %v2589, %v2588
        %v2656 = vunpack.c.l.b16 %v2332
        %v2657 = vunpack.c.l.b16 %v2333
        %v2658 = vpack.c.b16 %v2657, %v2656
        %v2660 = vsel %vm824, %v2590, 0
        %v2663 = vsel %vm824, %v2591, 0
        %v2666 = vsel %vm824, %v2592, 0
        %v2669 = vsel %vm824, %v2593, 0
        %v2672 = vsel %vm824, %v2594, 0
        %v2675 = vsel %vm824, %v2595, 0
        %v2678 = vsel %vm824, %v2596, 0
        %v2681 = vsel %vm824, %v2597, 0
        %v2684 = vsel %vm824, %v2598, 0
        %v2687 = vsel %vm824, %v2599, 0
        %v2690 = vsel %vm824, %v2600, 0
        %v2693 = vsel %vm824, %v2601, 0
        %v2696 = vsel %vm824, %v2602, 0
        %v2699 = vsel %vm824, %v2603, 0
        %v2702 = vsel %vm824, %v2604, 0
        %v2705 = vsel %vm824, %v2605, 0
        %v2708 = vsel %vm824, %v2606, 0
        %v2711 = vsel %vm824, %v2607, 0
        %v2714 = vsel %vm824, %v2608, 0
        %v2717 = vsel %vm824, %v2609, 0
        %v2720 = vsel %vm824, %v2610, 0
        %v2723 = vsel %vm824, %v2611, 0
        %v2726 = vsel %vm824, %v2612, 0
        %v2729 = vsel %vm824, %v2613, 0
        %v2732 = vsel %vm824, %v2614, 0
        %v2735 = vsel %vm824, %v2615, 0
        %v2738 = vsel %vm824, %v2616, 0
        %v2741 = vsel %vm824, %v2617, 0
        %v2744 = vsel %vm824, %v2618, 0
        %v2747 = vsel %vm824, %v2619, 0
        %v2750 = vsel %vm824, %v2620, 0
        %v2753 = vsel %vm824, %v2621, 0
        %v2756 = vsel %vm824, %v2622, 0
        %v2759 = vsel %vm824, %v2623, 0
        %v2762 = vsel %vm824, %v2624, 0
        %v2765 = vsel %vm824, %v2625, 0
        %v2768 = vsel %vm824, %v2626, 0
        %v2771 = vsel %vm824, %v2627, 0
        %v2774 = vsel %vm824, %v2628, 0
        %v2777 = vsel %vm824, %v2629, 0
        %v2780 = vsel %vm824, %v2630, 0
        %v2783 = vsel %vm824, %v2631, 0
        %v2786 = vsel %vm824, %v2632, 0
        %v2789 = vsel %vm824, %v2633, 0
        %v2792 = vsel %vm824, %v2634, 0
        %v2795 = vsel %vm824, %v2635, 0
        %v2798 = vsel %vm824, %v2636, 0
        %v2801 = vsel %vm824, %v2637, 0
        %v2804 = vsel %vm824, %v2638, 0
        %v2807 = vsel %vm824, %v2639, 0
        %v2810 = vsel %vm824, %v2640, 0
        %v2813 = vsel %vm824, %v2641, 0
        %v2816 = vsel %vm824, %v2642, 0
        %v2819 = vsel %vm824, %v2643, 0
        %v2822 = vsel %vm824, %v2644, 0
        %v2825 = vsel %vm824, %v2645, 0
        %v2828 = vsel %vm824, %v2646, 0
        %v2831 = vsel %vm824, %v2647, 0
        %v2834 = vsel %vm824, %v2648, 0
        %v2837 = vsel %vm824, %v2649, 0
        %v2840 = vsel %vm824, %v2650, 0
        %v2843 = vsel %vm824, %v2651, 0
        %v2846 = vsel %vm824, %v2652, 0
        %v2849 = vsel %vm824, %v2653, 0
        %v2852 = vsel %vm1017, %v2658, 0
        %2854 = vmatpush.bf16.msra.mxu0 0
        %2855 = vmatpush.bf16.msra.mxu0 0
        %2856 = vmatpush.bf16.msra.mxu0 0
        %2857 = vmatpush.bf16.msra.mxu0 0
        %2858 = vmatpush.bf16.msra.mxu0 0
        %2859 = vmatpush.bf16.msra.mxu0 0
        %2860 = vmatpush.bf16.msra.mxu0 0
        %2861 = vmatpush.bf16.msra.mxu0 %v2852
        %2862 = vmatmul.bf16.gmra.mxu0 %v2660
        %v2863 = vpop.f32.mrf.mxu0
        %v2864 = vadd.f32 0.0, %v2863
        %v2865 = vpop.f32.mrf.mxu0
        %v2866 = vadd.f32 0.0, %v2865
        %2867 = vmatmul.bf16.gmra.mxu0 %v2663
        %v2868 = vpop.f32.mrf.mxu0
        %v2869 = vadd.f32 0.0, %v2868
        %v2870 = vpop.f32.mrf.mxu0
        %v2871 = vadd.f32 0.0, %v2870
        %2872 = vmatmul.bf16.gmra.mxu0 %v2666
        %v2873 = vpop.f32.mrf.mxu0
        %v2874 = vadd.f32 0.0, %v2873
        %v2875 = vpop.f32.mrf.mxu0
        %v2876 = vadd.f32 0.0, %v2875
        %2877 = vmatmul.bf16.gmra.mxu0 %v2669
        %v2878 = vpop.f32.mrf.mxu0
        %v2879 = vadd.f32 0.0, %v2878
        %v2880 = vpop.f32.mrf.mxu0
        %v2881 = vadd.f32 0.0, %v2880
        %2882 = vmatmul.bf16.gmra.mxu0 %v2672
        %v2883 = vpop.f32.mrf.mxu0
        %v2884 = vadd.f32 0.0, %v2883
        %v2885 = vpop.f32.mrf.mxu0
        %v2886 = vadd.f32 0.0, %v2885
        %2887 = vmatmul.bf16.gmra.mxu0 %v2675
        %v2888 = vpop.f32.mrf.mxu0
        %v2889 = vadd.f32 0.0, %v2888
        %v2890 = vpop.f32.mrf.mxu0
        %v2891 = vadd.f32 0.0, %v2890
        %2892 = vmatmul.bf16.gmra.mxu0 %v2678
        %v2893 = vpop.f32.mrf.mxu0
        %v2894 = vadd.f32 0.0, %v2893
        %v2895 = vpop.f32.mrf.mxu0
        %v2896 = vadd.f32 0.0, %v2895
        %2897 = vmatmul.bf16.gmra.mxu0 %v2681
        %v2898 = vpop.f32.mrf.mxu0
        %v2899 = vadd.f32 0.0, %v2898
        %v2900 = vpop.f32.mrf.mxu0
        %v2901 = vadd.f32 0.0, %v2900
        %2902 = vmatmul.bf16.gmra.mxu0 %v2684
        %v2903 = vpop.f32.mrf.mxu0
        %v2904 = vadd.f32 0.0, %v2903
        %v2905 = vpop.f32.mrf.mxu0
        %v2906 = vadd.f32 0.0, %v2905
        %2907 = vmatmul.bf16.gmra.mxu0 %v2687
        %v2908 = vpop.f32.mrf.mxu0
        %v2909 = vadd.f32 0.0, %v2908
        %v2910 = vpop.f32.mrf.mxu0
        %v2911 = vadd.f32 0.0, %v2910
        %2912 = vmatmul.bf16.gmra.mxu0 %v2690
        %v2913 = vpop.f32.mrf.mxu0
        %v2914 = vadd.f32 0.0, %v2913
        %v2915 = vpop.f32.mrf.mxu0
        %v2916 = vadd.f32 0.0, %v2915
        %2917 = vmatmul.bf16.gmra.mxu0 %v2693
        %v2918 = vpop.f32.mrf.mxu0
        %v2919 = vadd.f32 0.0, %v2918
        %v2920 = vpop.f32.mrf.mxu0
        %v2921 = vadd.f32 0.0, %v2920
        %2922 = vmatmul.bf16.gmra.mxu0 %v2696
        %v2923 = vpop.f32.mrf.mxu0
        %v2924 = vadd.f32 0.0, %v2923
        %v2925 = vpop.f32.mrf.mxu0
        %v2926 = vadd.f32 0.0, %v2925
        %2927 = vmatmul.bf16.gmra.mxu0 %v2699
        %v2928 = vpop.f32.mrf.mxu0
        %v2929 = vadd.f32 0.0, %v2928
        %v2930 = vpop.f32.mrf.mxu0
        %v2931 = vadd.f32 0.0, %v2930
        %2932 = vmatmul.bf16.gmra.mxu0 %v2702
        %v2933 = vpop.f32.mrf.mxu0
        %v2934 = vadd.f32 0.0, %v2933
        %v2935 = vpop.f32.mrf.mxu0
        %v2936 = vadd.f32 0.0, %v2935
        %2937 = vmatmul.bf16.gmra.mxu0 %v2705
        %v2938 = vpop.f32.mrf.mxu0
        %v2939 = vadd.f32 0.0, %v2938
        %v2940 = vpop.f32.mrf.mxu0
        %v2941 = vadd.f32 0.0, %v2940
        %2942 = vmatmul.bf16.gmra.mxu0 %v2708
        %v2943 = vpop.f32.mrf.mxu0
        %v2944 = vadd.f32 0.0, %v2943
        %v2945 = vpop.f32.mrf.mxu0
        %v2946 = vadd.f32 0.0, %v2945
        %2947 = vmatmul.bf16.gmra.mxu0 %v2711
        %v2948 = vpop.f32.mrf.mxu0
        %v2949 = vadd.f32 0.0, %v2948
        %v2950 = vpop.f32.mrf.mxu0
        %v2951 = vadd.f32 0.0, %v2950
        %2952 = vmatmul.bf16.gmra.mxu0 %v2714
        %v2953 = vpop.f32.mrf.mxu0
        %v2954 = vadd.f32 0.0, %v2953
        %v2955 = vpop.f32.mrf.mxu0
        %v2956 = vadd.f32 0.0, %v2955
        %2957 = vmatmul.bf16.gmra.mxu0 %v2717
        %v2958 = vpop.f32.mrf.mxu0
        %v2959 = vadd.f32 0.0, %v2958
        %v2960 = vpop.f32.mrf.mxu0
        %v2961 = vadd.f32 0.0, %v2960
        %2962 = vmatmul.bf16.gmra.mxu0 %v2720
        %v2963 = vpop.f32.mrf.mxu0
        %v2964 = vadd.f32 0.0, %v2963
        %v2965 = vpop.f32.mrf.mxu0
        %v2966 = vadd.f32 0.0, %v2965
        %2967 = vmatmul.bf16.gmra.mxu0 %v2723
        %v2968 = vpop.f32.mrf.mxu0
        %v2969 = vadd.f32 0.0, %v2968
        %v2970 = vpop.f32.mrf.mxu0
        %v2971 = vadd.f32 0.0, %v2970
        %2972 = vmatmul.bf16.gmra.mxu0 %v2726
        %v2973 = vpop.f32.mrf.mxu0
        %v2974 = vadd.f32 0.0, %v2973
        %v2975 = vpop.f32.mrf.mxu0
        %v2976 = vadd.f32 0.0, %v2975
        %2977 = vmatmul.bf16.gmra.mxu0 %v2729
        %v2978 = vpop.f32.mrf.mxu0
        %v2979 = vadd.f32 0.0, %v2978
        %v2980 = vpop.f32.mrf.mxu0
        %v2981 = vadd.f32 0.0, %v2980
        %2982 = vmatmul.bf16.gmra.mxu0 %v2732
        %v2983 = vpop.f32.mrf.mxu0
        %v2984 = vadd.f32 0.0, %v2983
        %v2985 = vpop.f32.mrf.mxu0
        %v2986 = vadd.f32 0.0, %v2985
        %2987 = vmatmul.bf16.gmra.mxu0 %v2735
        %v2988 = vpop.f32.mrf.mxu0
        %v2989 = vadd.f32 0.0, %v2988
        %v2990 = vpop.f32.mrf.mxu0
        %v2991 = vadd.f32 0.0, %v2990
        %2992 = vmatmul.bf16.gmra.mxu0 %v2738
        %v2993 = vpop.f32.mrf.mxu0
        %v2994 = vadd.f32 0.0, %v2993
        %v2995 = vpop.f32.mrf.mxu0
        %v2996 = vadd.f32 0.0, %v2995
        %2997 = vmatmul.bf16.gmra.mxu0 %v2741
        %v2998 = vpop.f32.mrf.mxu0
        %v2999 = vadd.f32 0.0, %v2998
        %v3000 = vpop.f32.mrf.mxu0
        %v3001 = vadd.f32 0.0, %v3000
        %3002 = vmatmul.bf16.gmra.mxu0 %v2744
        %v3003 = vpop.f32.mrf.mxu0
        %v3004 = vadd.f32 0.0, %v3003
        %v3005 = vpop.f32.mrf.mxu0
        %v3006 = vadd.f32 0.0, %v3005
        %3007 = vmatmul.bf16.gmra.mxu0 %v2747
        %v3008 = vpop.f32.mrf.mxu0
        %v3009 = vadd.f32 0.0, %v3008
        %v3010 = vpop.f32.mrf.mxu0
        %v3011 = vadd.f32 0.0, %v3010
        %3012 = vmatmul.bf16.gmra.mxu0 %v2750
        %v3013 = vpop.f32.mrf.mxu0
        %v3014 = vadd.f32 0.0, %v3013
        %v3015 = vpop.f32.mrf.mxu0
        %v3016 = vadd.f32 0.0, %v3015
        %3017 = vmatmul.bf16.gmra.mxu0 %v2753
        %v3018 = vpop.f32.mrf.mxu0
        %v3019 = vadd.f32 0.0, %v3018
        %v3020 = vpop.f32.mrf.mxu0
        %v3021 = vadd.f32 0.0, %v3020
        %3022 = vmatmul.bf16.gmra.mxu0 %v2756
        %v3023 = vpop.f32.mrf.mxu0
        %v3024 = vadd.f32 0.0, %v3023
        %v3025 = vpop.f32.mrf.mxu0
        %v3026 = vadd.f32 0.0, %v3025
        %3027 = vmatmul.bf16.gmra.mxu0 %v2759
        %v3028 = vpop.f32.mrf.mxu0
        %v3029 = vadd.f32 0.0, %v3028
        %v3030 = vpop.f32.mrf.mxu0
        %v3031 = vadd.f32 0.0, %v3030
        %3032 = vmatmul.bf16.gmra.mxu0 %v2762
        %v3033 = vpop.f32.mrf.mxu0
        %v3034 = vadd.f32 0.0, %v3033
        %v3035 = vpop.f32.mrf.mxu0
        %v3036 = vadd.f32 0.0, %v3035
        %3037 = vmatmul.bf16.gmra.mxu0 %v2765
        %v3038 = vpop.f32.mrf.mxu0
        %v3039 = vadd.f32 0.0, %v3038
        %v3040 = vpop.f32.mrf.mxu0
        %v3041 = vadd.f32 0.0, %v3040
        %3042 = vmatmul.bf16.gmra.mxu0 %v2768
        %v3043 = vpop.f32.mrf.mxu0
        %v3044 = vadd.f32 0.0, %v3043
        %v3045 = vpop.f32.mrf.mxu0
        %v3046 = vadd.f32 0.0, %v3045
        %3047 = vmatmul.bf16.gmra.mxu0 %v2771
        %v3048 = vpop.f32.mrf.mxu0
        %v3049 = vadd.f32 0.0, %v3048
        %v3050 = vpop.f32.mrf.mxu0
        %v3051 = vadd.f32 0.0, %v3050
        %3052 = vmatmul.bf16.gmra.mxu0 %v2774
        %v3053 = vpop.f32.mrf.mxu0
        %v3054 = vadd.f32 0.0, %v3053
        %v3055 = vpop.f32.mrf.mxu0
        %v3056 = vadd.f32 0.0, %v3055
        %3057 = vmatmul.bf16.gmra.mxu0 %v2777
        %v3058 = vpop.f32.mrf.mxu0
        %v3059 = vadd.f32 0.0, %v3058
        %v3060 = vpop.f32.mrf.mxu0
        %v3061 = vadd.f32 0.0, %v3060
        %3062 = vmatmul.bf16.gmra.mxu0 %v2780
        %v3063 = vpop.f32.mrf.mxu0
        %v3064 = vadd.f32 0.0, %v3063
        %v3065 = vpop.f32.mrf.mxu0
        %v3066 = vadd.f32 0.0, %v3065
        %3067 = vmatmul.bf16.gmra.mxu0 %v2783
        %v3068 = vpop.f32.mrf.mxu0
        %v3069 = vadd.f32 0.0, %v3068
        %v3070 = vpop.f32.mrf.mxu0
        %v3071 = vadd.f32 0.0, %v3070
        %3072 = vmatmul.bf16.gmra.mxu0 %v2786
        %v3073 = vpop.f32.mrf.mxu0
        %v3074 = vadd.f32 0.0, %v3073
        %v3075 = vpop.f32.mrf.mxu0
        %v3076 = vadd.f32 0.0, %v3075
        %3077 = vmatmul.bf16.gmra.mxu0 %v2789
        %v3078 = vpop.f32.mrf.mxu0
        %v3079 = vadd.f32 0.0, %v3078
        %v3080 = vpop.f32.mrf.mxu0
        %v3081 = vadd.f32 0.0, %v3080
        %3082 = vmatmul.bf16.gmra.mxu0 %v2792
        %v3083 = vpop.f32.mrf.mxu0
        %v3084 = vadd.f32 0.0, %v3083
        %v3085 = vpop.f32.mrf.mxu0
        %v3086 = vadd.f32 0.0, %v3085
        %3087 = vmatmul.bf16.gmra.mxu0 %v2795
        %v3088 = vpop.f32.mrf.mxu0
        %v3089 = vadd.f32 0.0, %v3088
        %v3090 = vpop.f32.mrf.mxu0
        %v3091 = vadd.f32 0.0, %v3090
        %3092 = vmatmul.bf16.gmra.mxu0 %v2798
        %v3093 = vpop.f32.mrf.mxu0
        %v3094 = vadd.f32 0.0, %v3093
        %v3095 = vpop.f32.mrf.mxu0
        %v3096 = vadd.f32 0.0, %v3095
        %3097 = vmatmul.bf16.gmra.mxu0 %v2801
        %v3098 = vpop.f32.mrf.mxu0
        %v3099 = vadd.f32 0.0, %v3098
        %v3100 = vpop.f32.mrf.mxu0
        %v3101 = vadd.f32 0.0, %v3100
        %3102 = vmatmul.bf16.gmra.mxu0 %v2804
        %v3103 = vpop.f32.mrf.mxu0
        %v3104 = vadd.f32 0.0, %v3103
        %v3105 = vpop.f32.mrf.mxu0
        %v3106 = vadd.f32 0.0, %v3105
        %3107 = vmatmul.bf16.gmra.mxu0 %v2807
        %v3108 = vpop.f32.mrf.mxu0
        %v3109 = vadd.f32 0.0, %v3108
        %v3110 = vpop.f32.mrf.mxu0
        %v3111 = vadd.f32 0.0, %v3110
        %3112 = vmatmul.bf16.gmra.mxu0 %v2810
        %v3113 = vpop.f32.mrf.mxu0
        %v3114 = vadd.f32 0.0, %v3113
        %v3115 = vpop.f32.mrf.mxu0
        %v3116 = vadd.f32 0.0, %v3115
        %3117 = vmatmul.bf16.gmra.mxu0 %v2813
        %v3118 = vpop.f32.mrf.mxu0
        %v3119 = vadd.f32 0.0, %v3118
        %v3120 = vpop.f32.mrf.mxu0
        %v3121 = vadd.f32 0.0, %v3120
        %3122 = vmatmul.bf16.gmra.mxu0 %v2816
        %v3123 = vpop.f32.mrf.mxu0
        %v3124 = vadd.f32 0.0, %v3123
        %v3125 = vpop.f32.mrf.mxu0
        %v3126 = vadd.f32 0.0, %v3125
        %3127 = vmatmul.bf16.gmra.mxu0 %v2819
        %v3128 = vpop.f32.mrf.mxu0
        %v3129 = vadd.f32 0.0, %v3128
        %v3130 = vpop.f32.mrf.mxu0
        %v3131 = vadd.f32 0.0, %v3130
        %3132 = vmatmul.bf16.gmra.mxu0 %v2822
        %v3133 = vpop.f32.mrf.mxu0
        %v3134 = vadd.f32 0.0, %v3133
        %v3135 = vpop.f32.mrf.mxu0
        %v3136 = vadd.f32 0.0, %v3135
        %3137 = vmatmul.bf16.gmra.mxu0 %v2825
        %v3138 = vpop.f32.mrf.mxu0
        %v3139 = vadd.f32 0.0, %v3138
        %v3140 = vpop.f32.mrf.mxu0
        %v3141 = vadd.f32 0.0, %v3140
        %3142 = vmatmul.bf16.gmra.mxu0 %v2828
        %v3143 = vpop.f32.mrf.mxu0
        %v3144 = vadd.f32 0.0, %v3143
        %v3145 = vpop.f32.mrf.mxu0
        %v3146 = vadd.f32 0.0, %v3145
        %3147 = vmatmul.bf16.gmra.mxu0 %v2831
        %v3148 = vpop.f32.mrf.mxu0
        %v3149 = vadd.f32 0.0, %v3148
        %v3150 = vpop.f32.mrf.mxu0
        %v3151 = vadd.f32 0.0, %v3150
        %3152 = vmatmul.bf16.gmra.mxu0 %v2834
        %v3153 = vpop.f32.mrf.mxu0
        %v3154 = vadd.f32 0.0, %v3153
        %v3155 = vpop.f32.mrf.mxu0
        %v3156 = vadd.f32 0.0, %v3155
        %3157 = vmatmul.bf16.gmra.mxu0 %v2837
        %v3158 = vpop.f32.mrf.mxu0
        %v3159 = vadd.f32 0.0, %v3158
        %v3160 = vpop.f32.mrf.mxu0
        %v3161 = vadd.f32 0.0, %v3160
        %3162 = vmatmul.bf16.gmra.mxu0 %v2840
        %v3163 = vpop.f32.mrf.mxu0
        %v3164 = vadd.f32 0.0, %v3163
        %v3165 = vpop.f32.mrf.mxu0
        %v3166 = vadd.f32 0.0, %v3165
        %3167 = vmatmul.bf16.gmra.mxu0 %v2843
        %v3168 = vpop.f32.mrf.mxu0
        %v3169 = vadd.f32 0.0, %v3168
        %v3170 = vpop.f32.mrf.mxu0
        %v3171 = vadd.f32 0.0, %v3170
        %3172 = vmatmul.bf16.gmra.mxu0 %v2846
        %v3173 = vpop.f32.mrf.mxu0
        %v3174 = vadd.f32 0.0, %v3173
        %v3175 = vpop.f32.mrf.mxu0
        %v3176 = vadd.f32 0.0, %v3175
        %3177 = vmatmul.bf16.gmra.mxu0 %v2849
        %v3178 = vpop.f32.mrf.mxu0
        %v3179 = vadd.f32 0.0, %v3178
        %v3180 = vpop.f32.mrf.mxu0
        %v3181 = vadd.f32 0.0, %v3180
        %3182 = vdwg.mxu0
        %v3183 = vadd.f32 %v1880, %v2864
        %v3184 = vadd.f32 %v1882, %v2866
        %v3185 = vadd.f32 %v1885, %v2869
        %v3186 = vadd.f32 %v1887, %v2871
        %v3187 = vadd.f32 %v1890, %v2874
        %v3188 = vadd.f32 %v1892, %v2876
        %v3189 = vadd.f32 %v1895, %v2879
        %v3190 = vadd.f32 %v1897, %v2881
        %v3191 = vadd.f32 %v1900, %v2884
        %v3192 = vadd.f32 %v1902, %v2886
        %v3193 = vadd.f32 %v1905, %v2889
        %v3194 = vadd.f32 %v1907, %v2891
        %v3195 = vadd.f32 %v1910, %v2894
        %v3196 = vadd.f32 %v1912, %v2896
        %v3197 = vadd.f32 %v1915, %v2899
        %v3198 = vadd.f32 %v1917, %v2901
        %v3199 = vadd.f32 %v1920, %v2904
        %v3200 = vadd.f32 %v1922, %v2906
        %v3201 = vadd.f32 %v1925, %v2909
        %v3202 = vadd.f32 %v1927, %v2911
        %v3203 = vadd.f32 %v1930, %v2914
        %v3204 = vadd.f32 %v1932, %v2916
        %v3205 = vadd.f32 %v1935, %v2919
        %v3206 = vadd.f32 %v1937, %v2921
        %v3207 = vadd.f32 %v1940, %v2924
        %v3208 = vadd.f32 %v1942, %v2926
        %v3209 = vadd.f32 %v1945, %v2929
        %v3210 = vadd.f32 %v1947, %v2931
        %v3211 = vadd.f32 %v1950, %v2934
        %v3212 = vadd.f32 %v1952, %v2936
        %v3213 = vadd.f32 %v1955, %v2939
        %v3214 = vadd.f32 %v1957, %v2941
        %v3215 = vadd.f32 %v1960, %v2944
        %v3216 = vadd.f32 %v1962, %v2946
        %v3217 = vadd.f32 %v1965, %v2949
        %v3218 = vadd.f32 %v1967, %v2951
        %v3219 = vadd.f32 %v1970, %v2954
        %v3220 = vadd.f32 %v1972, %v2956
        %v3221 = vadd.f32 %v1975, %v2959
        %v3222 = vadd.f32 %v1977, %v2961
        %v3223 = vadd.f32 %v1980, %v2964
        %v3224 = vadd.f32 %v1982, %v2966
        %v3225 = vadd.f32 %v1985, %v2969
        %v3226 = vadd.f32 %v1987, %v2971
        %v3227 = vadd.f32 %v1990, %v2974
        %v3228 = vadd.f32 %v1992, %v2976
        %v3229 = vadd.f32 %v1995, %v2979
        %v3230 = vadd.f32 %v1997, %v2981
        %v3231 = vadd.f32 %v2000, %v2984
        %v3232 = vadd.f32 %v2002, %v2986
        %v3233 = vadd.f32 %v2005, %v2989
        %v3234 = vadd.f32 %v2007, %v2991
        %v3235 = vadd.f32 %v2010, %v2994
        %v3236 = vadd.f32 %v2012, %v2996
        %v3237 = vadd.f32 %v2015, %v2999
        %v3238 = vadd.f32 %v2017, %v3001
        %v3239 = vadd.f32 %v2020, %v3004
        %v3240 = vadd.f32 %v2022, %v3006
        %v3241 = vadd.f32 %v2025, %v3009
        %v3242 = vadd.f32 %v2027, %v3011
        %v3243 = vadd.f32 %v2030, %v3014
        %v3244 = vadd.f32 %v2032, %v3016
        %v3245 = vadd.f32 %v2035, %v3019
        %v3246 = vadd.f32 %v2037, %v3021
        %v3247 = vadd.f32 %v2040, %v3024
        %v3248 = vadd.f32 %v2042, %v3026
        %v3249 = vadd.f32 %v2045, %v3029
        %v3250 = vadd.f32 %v2047, %v3031
        %v3251 = vadd.f32 %v2050, %v3034
        %v3252 = vadd.f32 %v2052, %v3036
        %v3253 = vadd.f32 %v2055, %v3039
        %v3254 = vadd.f32 %v2057, %v3041
        %v3255 = vadd.f32 %v2060, %v3044
        %v3256 = vadd.f32 %v2062, %v3046
        %v3257 = vadd.f32 %v2065, %v3049
        %v3258 = vadd.f32 %v2067, %v3051
        %v3259 = vadd.f32 %v2070, %v3054
        %v3260 = vadd.f32 %v2072, %v3056
        %v3261 = vadd.f32 %v2075, %v3059
        %v3262 = vadd.f32 %v2077, %v3061
        %v3263 = vadd.f32 %v2080, %v3064
        %v3264 = vadd.f32 %v2082, %v3066
        %v3265 = vadd.f32 %v2085, %v3069
        %v3266 = vadd.f32 %v2087, %v3071
        %v3267 = vadd.f32 %v2090, %v3074
        %v3268 = vadd.f32 %v2092, %v3076
        %v3269 = vadd.f32 %v2095, %v3079
        %v3270 = vadd.f32 %v2097, %v3081
        %v3271 = vadd.f32 %v2100, %v3084
        %v3272 = vadd.f32 %v2102, %v3086
        %v3273 = vadd.f32 %v2105, %v3089
        %v3274 = vadd.f32 %v2107, %v3091
        %v3275 = vadd.f32 %v2110, %v3094
        %v3276 = vadd.f32 %v2112, %v3096
        %v3277 = vadd.f32 %v2115, %v3099
        %v3278 = vadd.f32 %v2117, %v3101
        %v3279 = vadd.f32 %v2120, %v3104
        %v3280 = vadd.f32 %v2122, %v3106
        %v3281 = vadd.f32 %v2125, %v3109
        %v3282 = vadd.f32 %v2127, %v3111
        %v3283 = vadd.f32 %v2130, %v3114
        %v3284 = vadd.f32 %v2132, %v3116
        %v3285 = vadd.f32 %v2135, %v3119
        %v3286 = vadd.f32 %v2137, %v3121
        %v3287 = vadd.f32 %v2140, %v3124
        %v3288 = vadd.f32 %v2142, %v3126
        %v3289 = vadd.f32 %v2145, %v3129
        %v3290 = vadd.f32 %v2147, %v3131
        %v3291 = vadd.f32 %v2150, %v3134
        %v3292 = vadd.f32 %v2152, %v3136
        %v3293 = vadd.f32 %v2155, %v3139
        %v3294 = vadd.f32 %v2157, %v3141
        %v3295 = vadd.f32 %v2160, %v3144
        %v3296 = vadd.f32 %v2162, %v3146
        %v3297 = vadd.f32 %v2165, %v3149
        %v3298 = vadd.f32 %v2167, %v3151
        %v3299 = vadd.f32 %v2170, %v3154
        %v3300 = vadd.f32 %v2172, %v3156
        %v3301 = vadd.f32 %v2175, %v3159
        %v3302 = vadd.f32 %v2177, %v3161
        %v3303 = vadd.f32 %v2180, %v3164
        %v3304 = vadd.f32 %v2182, %v3166
        %v3305 = vadd.f32 %v2185, %v3169
        %v3306 = vadd.f32 %v2187, %v3171
        %v3307 = vadd.f32 %v2190, %v3174
        %v3308 = vadd.f32 %v2192, %v3176
        %v3309 = vadd.f32 %v2195, %v3179
        %v3310 = vadd.f32 %v2197, %v3181
        %s3311 = smul.addr %s2200, 4
        %s3312 = scalar_lea.vmem %s229, %s3311
        %v3313 = vld [vmem:[%s3312] sm:$0xf]
        %v3314 = vld [vmem:[%s3312 + $0x4] sm:$0xf]
        %v3315 = vld [vmem:[%s3312 + $0x8] sm:$0xf]
        %v3316 = vld [vmem:[%s3312 + $0xc] sm:$0xf]
        %v3317 = vld [vmem:[%s3312 + $0x10] sm:$0xf]
        %v3318 = vld [vmem:[%s3312 + $0x14] sm:$0xf]
        %v3319 = vld [vmem:[%s3312 + $0x18] sm:$0xf]
        %v3320 = vld [vmem:[%s3312 + $0x1c] sm:$0xf]
        %v3321 = vld [vmem:[%s3312 + $0x20] sm:$0xf]
        %v3322 = vld [vmem:[%s3312 + $0x24] sm:$0xf]
        %v3323 = vld [vmem:[%s3312 + $0x28] sm:$0xf]
        %v3324 = vld [vmem:[%s3312 + $0x2c] sm:$0xf]
        %v3325 = vld [vmem:[%s3312 + $0x30] sm:$0xf]
        %v3326 = vld [vmem:[%s3312 + $0x34] sm:$0xf]
        %v3327 = vld [vmem:[%s3312 + $0x38] sm:$0xf]
        %v3328 = vld [vmem:[%s3312 + $0x3c] sm:$0xf]
        %v3329 = vld [vmem:[%s3312 + $0x40] sm:$0xf]
        %v3330 = vld [vmem:[%s3312 + $0x44] sm:$0xf]
        %v3331 = vld [vmem:[%s3312 + $0x48] sm:$0xf]
        %v3332 = vld [vmem:[%s3312 + $0x4c] sm:$0xf]
        %v3333 = vld [vmem:[%s3312 + $0x50] sm:$0xf]
        %v3334 = vld [vmem:[%s3312 + $0x54] sm:$0xf]
        %v3335 = vld [vmem:[%s3312 + $0x58] sm:$0xf]
        %v3336 = vld [vmem:[%s3312 + $0x5c] sm:$0xf]
        %v3337 = vld [vmem:[%s3312 + $0x60] sm:$0xf]
        %v3338 = vld [vmem:[%s3312 + $0x64] sm:$0xf]
        %v3339 = vld [vmem:[%s3312 + $0x68] sm:$0xf]
        %v3340 = vld [vmem:[%s3312 + $0x6c] sm:$0xf]
        %v3341 = vld [vmem:[%s3312 + $0x70] sm:$0xf]
        %v3342 = vld [vmem:[%s3312 + $0x74] sm:$0xf]
        %v3343 = vld [vmem:[%s3312 + $0x78] sm:$0xf]
        %v3344 = vld [vmem:[%s3312 + $0x7c] sm:$0xf]
        %v3345 = vld [vmem:[%s3312 + $0x80] sm:$0xf]
        %v3346 = vld [vmem:[%s3312 + $0x84] sm:$0xf]
        %v3347 = vld [vmem:[%s3312 + $0x88] sm:$0xf]
        %v3348 = vld [vmem:[%s3312 + $0x8c] sm:$0xf]
        %v3349 = vld [vmem:[%s3312 + $0x90] sm:$0xf]
        %v3350 = vld [vmem:[%s3312 + $0x94] sm:$0xf]
        %v3351 = vld [vmem:[%s3312 + $0x98] sm:$0xf]
        %v3352 = vld [vmem:[%s3312 + $0x9c] sm:$0xf]
        %v3353 = vld [vmem:[%s3312 + $0xa0] sm:$0xf]
        %v3354 = vld [vmem:[%s3312 + $0xa4] sm:$0xf]
        %v3355 = vld [vmem:[%s3312 + $0xa8] sm:$0xf]
        %v3356 = vld [vmem:[%s3312 + $0xac] sm:$0xf]
        %v3357 = vld [vmem:[%s3312 + $0xb0] sm:$0xf]
        %v3358 = vld [vmem:[%s3312 + $0xb4] sm:$0xf]
        %v3359 = vld [vmem:[%s3312 + $0xb8] sm:$0xf]
        %v3360 = vld [vmem:[%s3312 + $0xbc] sm:$0xf]
        %v3361 = vld [vmem:[%s3312 + $0xc0] sm:$0xf]
        %v3362 = vld [vmem:[%s3312 + $0xc4] sm:$0xf]
        %v3363 = vld [vmem:[%s3312 + $0xc8] sm:$0xf]
        %v3364 = vld [vmem:[%s3312 + $0xcc] sm:$0xf]
        %v3365 = vld [vmem:[%s3312 + $0xd0] sm:$0xf]
        %v3366 = vld [vmem:[%s3312 + $0xd4] sm:$0xf]
        %v3367 = vld [vmem:[%s3312 + $0xd8] sm:$0xf]
        %v3368 = vld [vmem:[%s3312 + $0xdc] sm:$0xf]
        %v3369 = vld [vmem:[%s3312 + $0xe0] sm:$0xf]
        %v3370 = vld [vmem:[%s3312 + $0xe4] sm:$0xf]
        %v3371 = vld [vmem:[%s3312 + $0xe8] sm:$0xf]
        %v3372 = vld [vmem:[%s3312 + $0xec] sm:$0xf]
        %v3373 = vld [vmem:[%s3312 + $0xf0] sm:$0xf]
        %v3374 = vld [vmem:[%s3312 + $0xf4] sm:$0xf]
        %v3375 = vld [vmem:[%s3312 + $0xf8] sm:$0xf]
        %v3376 = vld [vmem:[%s3312 + $0xfc] sm:$0xf]
        %v3377 = vld [vmem:[%s3312 + $0x100] sm:$0xf]
        %v3378 = vld [vmem:[%s3312 + $0x104] sm:$0xf]
        %v3379 = vld [vmem:[%s3312 + $0x108] sm:$0xf]
        %v3380 = vld [vmem:[%s3312 + $0x10c] sm:$0xf]
        %v3381 = vld [vmem:[%s3312 + $0x110] sm:$0xf]
        %v3382 = vld [vmem:[%s3312 + $0x114] sm:$0xf]
        %v3383 = vld [vmem:[%s3312 + $0x118] sm:$0xf]
        %v3384 = vld [vmem:[%s3312 + $0x11c] sm:$0xf]
        %v3385 = vld [vmem:[%s3312 + $0x120] sm:$0xf]
        %v3386 = vld [vmem:[%s3312 + $0x124] sm:$0xf]
        %v3387 = vld [vmem:[%s3312 + $0x128] sm:$0xf]
        %v3388 = vld [vmem:[%s3312 + $0x12c] sm:$0xf]
        %v3389 = vld [vmem:[%s3312 + $0x130] sm:$0xf]
        %v3390 = vld [vmem:[%s3312 + $0x134] sm:$0xf]
        %v3391 = vld [vmem:[%s3312 + $0x138] sm:$0xf]
        %v3392 = vld [vmem:[%s3312 + $0x13c] sm:$0xf]
        %v3393 = vld [vmem:[%s3312 + $0x140] sm:$0xf]
        %v3394 = vld [vmem:[%s3312 + $0x144] sm:$0xf]
        %v3395 = vld [vmem:[%s3312 + $0x148] sm:$0xf]
        %v3396 = vld [vmem:[%s3312 + $0x14c] sm:$0xf]
        %v3397 = vld [vmem:[%s3312 + $0x150] sm:$0xf]
        %v3398 = vld [vmem:[%s3312 + $0x154] sm:$0xf]
        %v3399 = vld [vmem:[%s3312 + $0x158] sm:$0xf]
        %v3400 = vld [vmem:[%s3312 + $0x15c] sm:$0xf]
        %v3401 = vld [vmem:[%s3312 + $0x160] sm:$0xf]
        %v3402 = vld [vmem:[%s3312 + $0x164] sm:$0xf]
        %v3403 = vld [vmem:[%s3312 + $0x168] sm:$0xf]
        %v3404 = vld [vmem:[%s3312 + $0x16c] sm:$0xf]
        %v3405 = vld [vmem:[%s3312 + $0x170] sm:$0xf]
        %v3406 = vld [vmem:[%s3312 + $0x174] sm:$0xf]
        %v3407 = vld [vmem:[%s3312 + $0x178] sm:$0xf]
        %v3408 = vld [vmem:[%s3312 + $0x17c] sm:$0xf]
        %v3409 = vld [vmem:[%s3312 + $0x180] sm:$0xf]
        %v3410 = vld [vmem:[%s3312 + $0x184] sm:$0xf]
        %v3411 = vld [vmem:[%s3312 + $0x188] sm:$0xf]
        %v3412 = vld [vmem:[%s3312 + $0x18c] sm:$0xf]
        %v3413 = vld [vmem:[%s3312 + $0x190] sm:$0xf]
        %v3414 = vld [vmem:[%s3312 + $0x194] sm:$0xf]
        %v3415 = vld [vmem:[%s3312 + $0x198] sm:$0xf]
        %v3416 = vld [vmem:[%s3312 + $0x19c] sm:$0xf]
        %v3417 = vld [vmem:[%s3312 + $0x1a0] sm:$0xf]
        %v3418 = vld [vmem:[%s3312 + $0x1a4] sm:$0xf]
        %v3419 = vld [vmem:[%s3312 + $0x1a8] sm:$0xf]
        %v3420 = vld [vmem:[%s3312 + $0x1ac] sm:$0xf]
        %v3421 = vld [vmem:[%s3312 + $0x1b0] sm:$0xf]
        %v3422 = vld [vmem:[%s3312 + $0x1b4] sm:$0xf]
        %v3423 = vld [vmem:[%s3312 + $0x1b8] sm:$0xf]
        %v3424 = vld [vmem:[%s3312 + $0x1bc] sm:$0xf]
        %v3425 = vld [vmem:[%s3312 + $0x1c0] sm:$0xf]
        %v3426 = vld [vmem:[%s3312 + $0x1c4] sm:$0xf]
        %v3427 = vld [vmem:[%s3312 + $0x1c8] sm:$0xf]
        %v3428 = vld [vmem:[%s3312 + $0x1cc] sm:$0xf]
        %v3429 = vld [vmem:[%s3312 + $0x1d0] sm:$0xf]
        %v3430 = vld [vmem:[%s3312 + $0x1d4] sm:$0xf]
        %v3431 = vld [vmem:[%s3312 + $0x1d8] sm:$0xf]
        %v3432 = vld [vmem:[%s3312 + $0x1dc] sm:$0xf]
        %v3433 = vld [vmem:[%s3312 + $0x1e0] sm:$0xf]
        %v3434 = vld [vmem:[%s3312 + $0x1e4] sm:$0xf]
        %v3435 = vld [vmem:[%s3312 + $0x1e8] sm:$0xf]
        %v3436 = vld [vmem:[%s3312 + $0x1ec] sm:$0xf]
        %v3437 = vld [vmem:[%s3312 + $0x1f0] sm:$0xf]
        %v3438 = vld [vmem:[%s3312 + $0x1f4] sm:$0xf]
        %v3439 = vld [vmem:[%s3312 + $0x1f8] sm:$0xf]
        %v3440 = vld [vmem:[%s3312 + $0x1fc] sm:$0xf]
        %s3441 = scalar_lea.vmem %s2, 24
        %v3442 = vld [vmem:[%s3441] sm:$0xf]
        %v3443 = vld [vmem:[%s3441 + $0x4] sm:$0x3]
        %v3572 = vunpack.c.l.b16 %v3313
        %v3573 = vunpack.c.l.b16 %v3314
        %v3574 = vunpack.c.l.b16 %v3315
        %v3575 = vunpack.c.l.b16 %v3316
        %v3576 = vunpack.c.l.b16 %v3317
        %v3577 = vunpack.c.l.b16 %v3318
        %v3578 = vunpack.c.l.b16 %v3319
        %v3579 = vunpack.c.l.b16 %v3320
        %v3580 = vunpack.c.l.b16 %v3321
        %v3581 = vunpack.c.l.b16 %v3322
        %v3582 = vunpack.c.l.b16 %v3323
        %v3583 = vunpack.c.l.b16 %v3324
        %v3584 = vunpack.c.l.b16 %v3325
        %v3585 = vunpack.c.l.b16 %v3326
        %v3586 = vunpack.c.l.b16 %v3327
        %v3587 = vunpack.c.l.b16 %v3328
        %v3588 = vunpack.c.l.b16 %v3329
        %v3589 = vunpack.c.l.b16 %v3330
        %v3590 = vunpack.c.l.b16 %v3331
        %v3591 = vunpack.c.l.b16 %v3332
        %v3592 = vunpack.c.l.b16 %v3333
        %v3593 = vunpack.c.l.b16 %v3334
        %v3594 = vunpack.c.l.b16 %v3335
        %v3595 = vunpack.c.l.b16 %v3336
        %v3596 = vunpack.c.l.b16 %v3337
        %v3597 = vunpack.c.l.b16 %v3338
        %v3598 = vunpack.c.l.b16 %v3339
        %v3599 = vunpack.c.l.b16 %v3340
        %v3600 = vunpack.c.l.b16 %v3341
        %v3601 = vunpack.c.l.b16 %v3342
        %v3602 = vunpack.c.l.b16 %v3343
        %v3603 = vunpack.c.l.b16 %v3344
        %v3604 = vunpack.c.l.b16 %v3345
        %v3605 = vunpack.c.l.b16 %v3346
        %v3606 = vunpack.c.l.b16 %v3347
        %v3607 = vunpack.c.l.b16 %v3348
        %v3608 = vunpack.c.l.b16 %v3349
        %v3609 = vunpack.c.l.b16 %v3350
        %v3610 = vunpack.c.l.b16 %v3351
        %v3611 = vunpack.c.l.b16 %v3352
        %v3612 = vunpack.c.l.b16 %v3353
        %v3613 = vunpack.c.l.b16 %v3354
        %v3614 = vunpack.c.l.b16 %v3355
        %v3615 = vunpack.c.l.b16 %v3356
        %v3616 = vunpack.c.l.b16 %v3357
        %v3617 = vunpack.c.l.b16 %v3358
        %v3618 = vunpack.c.l.b16 %v3359
        %v3619 = vunpack.c.l.b16 %v3360
        %v3620 = vunpack.c.l.b16 %v3361
        %v3621 = vunpack.c.l.b16 %v3362
        %v3622 = vunpack.c.l.b16 %v3363
        %v3623 = vunpack.c.l.b16 %v3364
        %v3624 = vunpack.c.l.b16 %v3365
        %v3625 = vunpack.c.l.b16 %v3366
        %v3626 = vunpack.c.l.b16 %v3367
        %v3627 = vunpack.c.l.b16 %v3368
        %v3628 = vunpack.c.l.b16 %v3369
        %v3629 = vunpack.c.l.b16 %v3370
        %v3630 = vunpack.c.l.b16 %v3371
        %v3631 = vunpack.c.l.b16 %v3372
        %v3632 = vunpack.c.l.b16 %v3373
        %v3633 = vunpack.c.l.b16 %v3374
        %v3634 = vunpack.c.l.b16 %v3375
        %v3635 = vunpack.c.l.b16 %v3376
        %v3636 = vunpack.c.l.b16 %v3377
        %v3637 = vunpack.c.l.b16 %v3378
        %v3638 = vunpack.c.l.b16 %v3379
        %v3639 = vunpack.c.l.b16 %v3380
        %v3640 = vunpack.c.l.b16 %v3381
        %v3641 = vunpack.c.l.b16 %v3382
        %v3642 = vunpack.c.l.b16 %v3383
        %v3643 = vunpack.c.l.b16 %v3384
        %v3644 = vunpack.c.l.b16 %v3385
        %v3645 = vunpack.c.l.b16 %v3386
        %v3646 = vunpack.c.l.b16 %v3387
        %v3647 = vunpack.c.l.b16 %v3388
        %v3648 = vunpack.c.l.b16 %v3389
        %v3649 = vunpack.c.l.b16 %v3390
        %v3650 = vunpack.c.l.b16 %v3391
        %v3651 = vunpack.c.l.b16 %v3392
        %v3652 = vunpack.c.l.b16 %v3393
        %v3653 = vunpack.c.l.b16 %v3394
        %v3654 = vunpack.c.l.b16 %v3395
        %v3655 = vunpack.c.l.b16 %v3396
        %v3656 = vunpack.c.l.b16 %v3397
        %v3657 = vunpack.c.l.b16 %v3398
        %v3658 = vunpack.c.l.b16 %v3399
        %v3659 = vunpack.c.l.b16 %v3400
        %v3660 = vunpack.c.l.b16 %v3401
        %v3661 = vunpack.c.l.b16 %v3402
        %v3662 = vunpack.c.l.b16 %v3403
        %v3663 = vunpack.c.l.b16 %v3404
        %v3664 = vunpack.c.l.b16 %v3405
        %v3665 = vunpack.c.l.b16 %v3406
        %v3666 = vunpack.c.l.b16 %v3407
        %v3667 = vunpack.c.l.b16 %v3408
        %v3668 = vunpack.c.l.b16 %v3409
        %v3669 = vunpack.c.l.b16 %v3410
        %v3670 = vunpack.c.l.b16 %v3411
        %v3671 = vunpack.c.l.b16 %v3412
        %v3672 = vunpack.c.l.b16 %v3413
        %v3673 = vunpack.c.l.b16 %v3414
        %v3674 = vunpack.c.l.b16 %v3415
        %v3675 = vunpack.c.l.b16 %v3416
        %v3676 = vunpack.c.l.b16 %v3417
        %v3677 = vunpack.c.l.b16 %v3418
        %v3678 = vunpack.c.l.b16 %v3419
        %v3679 = vunpack.c.l.b16 %v3420
        %v3680 = vunpack.c.l.b16 %v3421
        %v3681 = vunpack.c.l.b16 %v3422
        %v3682 = vunpack.c.l.b16 %v3423
        %v3683 = vunpack.c.l.b16 %v3424
        %v3684 = vunpack.c.l.b16 %v3425
        %v3685 = vunpack.c.l.b16 %v3426
        %v3686 = vunpack.c.l.b16 %v3427
        %v3687 = vunpack.c.l.b16 %v3428
        %v3688 = vunpack.c.l.b16 %v3429
        %v3689 = vunpack.c.l.b16 %v3430
        %v3690 = vunpack.c.l.b16 %v3431
        %v3691 = vunpack.c.l.b16 %v3432
        %v3692 = vunpack.c.l.b16 %v3433
        %v3693 = vunpack.c.l.b16 %v3434
        %v3694 = vunpack.c.l.b16 %v3435
        %v3695 = vunpack.c.l.b16 %v3436
        %v3696 = vunpack.c.l.b16 %v3437
        %v3697 = vunpack.c.l.b16 %v3438
        %v3698 = vunpack.c.l.b16 %v3439
        %v3699 = vunpack.c.l.b16 %v3440
        %v3700 = vpack.c.b16 %v3573, %v3572
        %v3701 = vpack.c.b16 %v3575, %v3574
        %v3702 = vpack.c.b16 %v3577, %v3576
        %v3703 = vpack.c.b16 %v3579, %v3578
        %v3704 = vpack.c.b16 %v3581, %v3580
        %v3705 = vpack.c.b16 %v3583, %v3582
        %v3706 = vpack.c.b16 %v3585, %v3584
        %v3707 = vpack.c.b16 %v3587, %v3586
        %v3708 = vpack.c.b16 %v3589, %v3588
        %v3709 = vpack.c.b16 %v3591, %v3590
        %v3710 = vpack.c.b16 %v3593, %v3592
        %v3711 = vpack.c.b16 %v3595, %v3594
        %v3712 = vpack.c.b16 %v3597, %v3596
        %v3713 = vpack.c.b16 %v3599, %v3598
        %v3714 = vpack.c.b16 %v3601, %v3600
        %v3715 = vpack.c.b16 %v3603, %v3602
        %v3716 = vpack.c.b16 %v3605, %v3604
        %v3717 = vpack.c.b16 %v3607, %v3606
        %v3718 = vpack.c.b16 %v3609, %v3608
        %v3719 = vpack.c.b16 %v3611, %v3610
        %v3720 = vpack.c.b16 %v3613, %v3612
        %v3721 = vpack.c.b16 %v3615, %v3614
        %v3722 = vpack.c.b16 %v3617, %v3616
        %v3723 = vpack.c.b16 %v3619, %v3618
        %v3724 = vpack.c.b16 %v3621, %v3620
        %v3725 = vpack.c.b16 %v3623, %v3622
        %v3726 = vpack.c.b16 %v3625, %v3624
        %v3727 = vpack.c.b16 %v3627, %v3626
        %v3728 = vpack.c.b16 %v3629, %v3628
        %v3729 = vpack.c.b16 %v3631, %v3630
        %v3730 = vpack.c.b16 %v3633, %v3632
        %v3731 = vpack.c.b16 %v3635, %v3634
        %v3732 = vpack.c.b16 %v3637, %v3636
        %v3733 = vpack.c.b16 %v3639, %v3638
        %v3734 = vpack.c.b16 %v3641, %v3640
        %v3735 = vpack.c.b16 %v3643, %v3642
        %v3736 = vpack.c.b16 %v3645, %v3644
        %v3737 = vpack.c.b16 %v3647, %v3646
        %v3738 = vpack.c.b16 %v3649, %v3648
        %v3739 = vpack.c.b16 %v3651, %v3650
        %v3740 = vpack.c.b16 %v3653, %v3652
        %v3741 = vpack.c.b16 %v3655, %v3654
        %v3742 = vpack.c.b16 %v3657, %v3656
        %v3743 = vpack.c.b16 %v3659, %v3658
        %v3744 = vpack.c.b16 %v3661, %v3660
        %v3745 = vpack.c.b16 %v3663, %v3662
        %v3746 = vpack.c.b16 %v3665, %v3664
        %v3747 = vpack.c.b16 %v3667, %v3666
        %v3748 = vpack.c.b16 %v3669, %v3668
        %v3749 = vpack.c.b16 %v3671, %v3670
        %v3750 = vpack.c.b16 %v3673, %v3672
        %v3751 = vpack.c.b16 %v3675, %v3674
        %v3752 = vpack.c.b16 %v3677, %v3676
        %v3753 = vpack.c.b16 %v3679, %v3678
        %v3754 = vpack.c.b16 %v3681, %v3680
        %v3755 = vpack.c.b16 %v3683, %v3682
        %v3756 = vpack.c.b16 %v3685, %v3684
        %v3757 = vpack.c.b16 %v3687, %v3686
        %v3758 = vpack.c.b16 %v3689, %v3688
        %v3759 = vpack.c.b16 %v3691, %v3690
        %v3760 = vpack.c.b16 %v3693, %v3692
        %v3761 = vpack.c.b16 %v3695, %v3694
        %v3762 = vpack.c.b16 %v3697, %v3696
        %v3763 = vpack.c.b16 %v3699, %v3698
        %v3766 = vunpack.c.l.b16 %v3442
        %v3767 = vunpack.c.l.b16 %v3443
        %v3768 = vpack.c.b16 %v3767, %v3766
        %v3770 = vsel %vm824, %v3700, 0
        %v3773 = vsel %vm824, %v3701, 0
        %v3776 = vsel %vm824, %v3702, 0
        %v3779 = vsel %vm824, %v3703, 0
        %v3782 = vsel %vm824, %v3704, 0
        %v3785 = vsel %vm824, %v3705, 0
        %v3788 = vsel %vm824, %v3706, 0
        %v3791 = vsel %vm824, %v3707, 0
        %v3794 = vsel %vm824, %v3708, 0
        %v3797 = vsel %vm824, %v3709, 0
        %v3800 = vsel %vm824, %v3710, 0
        %v3803 = vsel %vm824, %v3711, 0
        %v3806 = vsel %vm824, %v3712, 0
        %v3809 = vsel %vm824, %v3713, 0
        %v3812 = vsel %vm824, %v3714, 0
        %v3815 = vsel %vm824, %v3715, 0
        %v3818 = vsel %vm824, %v3716, 0
        %v3821 = vsel %vm824, %v3717, 0
        %v3824 = vsel %vm824, %v3718, 0
        %v3827 = vsel %vm824, %v3719, 0
        %v3830 = vsel %vm824, %v3720, 0
        %v3833 = vsel %vm824, %v3721, 0
        %v3836 = vsel %vm824, %v3722, 0
        %v3839 = vsel %vm824, %v3723, 0
        %v3842 = vsel %vm824, %v3724, 0
        %v3845 = vsel %vm824, %v3725, 0
        %v3848 = vsel %vm824, %v3726, 0
        %v3851 = vsel %vm824, %v3727, 0
        %v3854 = vsel %vm824, %v3728, 0
        %v3857 = vsel %vm824, %v3729, 0
        %v3860 = vsel %vm824, %v3730, 0
        %v3863 = vsel %vm824, %v3731, 0
        %v3866 = vsel %vm824, %v3732, 0
        %v3869 = vsel %vm824, %v3733, 0
        %v3872 = vsel %vm824, %v3734, 0
        %v3875 = vsel %vm824, %v3735, 0
        %v3878 = vsel %vm824, %v3736, 0
        %v3881 = vsel %vm824, %v3737, 0
        %v3884 = vsel %vm824, %v3738, 0
        %v3887 = vsel %vm824, %v3739, 0
        %v3890 = vsel %vm824, %v3740, 0
        %v3893 = vsel %vm824, %v3741, 0
        %v3896 = vsel %vm824, %v3742, 0
        %v3899 = vsel %vm824, %v3743, 0
        %v3902 = vsel %vm824, %v3744, 0
        %v3905 = vsel %vm824, %v3745, 0
        %v3908 = vsel %vm824, %v3746, 0
        %v3911 = vsel %vm824, %v3747, 0
        %v3914 = vsel %vm824, %v3748, 0
        %v3917 = vsel %vm824, %v3749, 0
        %v3920 = vsel %vm824, %v3750, 0
        %v3923 = vsel %vm824, %v3751, 0
        %v3926 = vsel %vm824, %v3752, 0
        %v3929 = vsel %vm824, %v3753, 0
        %v3932 = vsel %vm824, %v3754, 0
        %v3935 = vsel %vm824, %v3755, 0
        %v3938 = vsel %vm824, %v3756, 0
        %v3941 = vsel %vm824, %v3757, 0
        %v3944 = vsel %vm824, %v3758, 0
        %v3947 = vsel %vm824, %v3759, 0
        %v3950 = vsel %vm824, %v3760, 0
        %v3953 = vsel %vm824, %v3761, 0
        %v3956 = vsel %vm824, %v3762, 0
        %v3959 = vsel %vm824, %v3763, 0
        %v3962 = vsel %vm1017, %v3768, 0
        %3964 = vmatpush.bf16.msra.mxu0 0
        %3965 = vmatpush.bf16.msra.mxu0 0
        %3966 = vmatpush.bf16.msra.mxu0 0
        %3967 = vmatpush.bf16.msra.mxu0 0
        %3968 = vmatpush.bf16.msra.mxu0 0
        %3969 = vmatpush.bf16.msra.mxu0 0
        %3970 = vmatpush.bf16.msra.mxu0 0
        %3971 = vmatpush.bf16.msra.mxu0 %v3962
        %3972 = vmatmul.bf16.gmra.mxu0 %v3770
        %v3973 = vpop.f32.mrf.mxu0
        %v3974 = vadd.f32 0.0, %v3973
        %v3975 = vpop.f32.mrf.mxu0
        %v3976 = vadd.f32 0.0, %v3975
        %3977 = vmatmul.bf16.gmra.mxu0 %v3773
        %v3978 = vpop.f32.mrf.mxu0
        %v3979 = vadd.f32 0.0, %v3978
        %v3980 = vpop.f32.mrf.mxu0
        %v3981 = vadd.f32 0.0, %v3980
        %3982 = vmatmul.bf16.gmra.mxu0 %v3776
        %v3983 = vpop.f32.mrf.mxu0
        %v3984 = vadd.f32 0.0, %v3983
        %v3985 = vpop.f32.mrf.mxu0
        %v3986 = vadd.f32 0.0, %v3985
        %3987 = vmatmul.bf16.gmra.mxu0 %v3779
        %v3988 = vpop.f32.mrf.mxu0
        %v3989 = vadd.f32 0.0, %v3988
        %v3990 = vpop.f32.mrf.mxu0
        %v3991 = vadd.f32 0.0, %v3990
        %3992 = vmatmul.bf16.gmra.mxu0 %v3782
        %v3993 = vpop.f32.mrf.mxu0
        %v3994 = vadd.f32 0.0, %v3993
        %v3995 = vpop.f32.mrf.mxu0
        %v3996 = vadd.f32 0.0, %v3995
        %3997 = vmatmul.bf16.gmra.mxu0 %v3785
        %v3998 = vpop.f32.mrf.mxu0
        %v3999 = vadd.f32 0.0, %v3998
        %v4000 = vpop.f32.mrf.mxu0
        %v4001 = vadd.f32 0.0, %v4000
        %4002 = vmatmul.bf16.gmra.mxu0 %v3788
        %v4003 = vpop.f32.mrf.mxu0
        %v4004 = vadd.f32 0.0, %v4003
        %v4005 = vpop.f32.mrf.mxu0
        %v4006 = vadd.f32 0.0, %v4005
        %4007 = vmatmul.bf16.gmra.mxu0 %v3791
        %v4008 = vpop.f32.mrf.mxu0
        %v4009 = vadd.f32 0.0, %v4008
        %v4010 = vpop.f32.mrf.mxu0
        %v4011 = vadd.f32 0.0, %v4010
        %4012 = vmatmul.bf16.gmra.mxu0 %v3794
        %v4013 = vpop.f32.mrf.mxu0
        %v4014 = vadd.f32 0.0, %v4013
        %v4015 = vpop.f32.mrf.mxu0
        %v4016 = vadd.f32 0.0, %v4015
        %4017 = vmatmul.bf16.gmra.mxu0 %v3797
        %v4018 = vpop.f32.mrf.mxu0
        %v4019 = vadd.f32 0.0, %v4018
        %v4020 = vpop.f32.mrf.mxu0
        %v4021 = vadd.f32 0.0, %v4020
        %4022 = vmatmul.bf16.gmra.mxu0 %v3800
        %v4023 = vpop.f32.mrf.mxu0
        %v4024 = vadd.f32 0.0, %v4023
        %v4025 = vpop.f32.mrf.mxu0
        %v4026 = vadd.f32 0.0, %v4025
        %4027 = vmatmul.bf16.gmra.mxu0 %v3803
        %v4028 = vpop.f32.mrf.mxu0
        %v4029 = vadd.f32 0.0, %v4028
        %v4030 = vpop.f32.mrf.mxu0
        %v4031 = vadd.f32 0.0, %v4030
        %4032 = vmatmul.bf16.gmra.mxu0 %v3806
        %v4033 = vpop.f32.mrf.mxu0
        %v4034 = vadd.f32 0.0, %v4033
        %v4035 = vpop.f32.mrf.mxu0
        %v4036 = vadd.f32 0.0, %v4035
        %4037 = vmatmul.bf16.gmra.mxu0 %v3809
        %v4038 = vpop.f32.mrf.mxu0
        %v4039 = vadd.f32 0.0, %v4038
        %v4040 = vpop.f32.mrf.mxu0
        %v4041 = vadd.f32 0.0, %v4040
        %4042 = vmatmul.bf16.gmra.mxu0 %v3812
        %v4043 = vpop.f32.mrf.mxu0
        %v4044 = vadd.f32 0.0, %v4043
        %v4045 = vpop.f32.mrf.mxu0
        %v4046 = vadd.f32 0.0, %v4045
        %4047 = vmatmul.bf16.gmra.mxu0 %v3815
        %v4048 = vpop.f32.mrf.mxu0
        %v4049 = vadd.f32 0.0, %v4048
        %v4050 = vpop.f32.mrf.mxu0
        %v4051 = vadd.f32 0.0, %v4050
        %4052 = vmatmul.bf16.gmra.mxu0 %v3818
        %v4053 = vpop.f32.mrf.mxu0
        %v4054 = vadd.f32 0.0, %v4053
        %v4055 = vpop.f32.mrf.mxu0
        %v4056 = vadd.f32 0.0, %v4055
        %4057 = vmatmul.bf16.gmra.mxu0 %v3821
        %v4058 = vpop.f32.mrf.mxu0
        %v4059 = vadd.f32 0.0, %v4058
        %v4060 = vpop.f32.mrf.mxu0
        %v4061 = vadd.f32 0.0, %v4060
        %4062 = vmatmul.bf16.gmra.mxu0 %v3824
        %v4063 = vpop.f32.mrf.mxu0
        %v4064 = vadd.f32 0.0, %v4063
        %v4065 = vpop.f32.mrf.mxu0
        %v4066 = vadd.f32 0.0, %v4065
        %4067 = vmatmul.bf16.gmra.mxu0 %v3827
        %v4068 = vpop.f32.mrf.mxu0
        %v4069 = vadd.f32 0.0, %v4068
        %v4070 = vpop.f32.mrf.mxu0
        %v4071 = vadd.f32 0.0, %v4070
        %4072 = vmatmul.bf16.gmra.mxu0 %v3830
        %v4073 = vpop.f32.mrf.mxu0
        %v4074 = vadd.f32 0.0, %v4073
        %v4075 = vpop.f32.mrf.mxu0
        %v4076 = vadd.f32 0.0, %v4075
        %4077 = vmatmul.bf16.gmra.mxu0 %v3833
        %v4078 = vpop.f32.mrf.mxu0
        %v4079 = vadd.f32 0.0, %v4078
        %v4080 = vpop.f32.mrf.mxu0
        %v4081 = vadd.f32 0.0, %v4080
        %4082 = vmatmul.bf16.gmra.mxu0 %v3836
        %v4083 = vpop.f32.mrf.mxu0
        %v4084 = vadd.f32 0.0, %v4083
        %v4085 = vpop.f32.mrf.mxu0
        %v4086 = vadd.f32 0.0, %v4085
        %4087 = vmatmul.bf16.gmra.mxu0 %v3839
        %v4088 = vpop.f32.mrf.mxu0
        %v4089 = vadd.f32 0.0, %v4088
        %v4090 = vpop.f32.mrf.mxu0
        %v4091 = vadd.f32 0.0, %v4090
        %4092 = vmatmul.bf16.gmra.mxu0 %v3842
        %v4093 = vpop.f32.mrf.mxu0
        %v4094 = vadd.f32 0.0, %v4093
        %v4095 = vpop.f32.mrf.mxu0
        %v4096 = vadd.f32 0.0, %v4095
        %4097 = vmatmul.bf16.gmra.mxu0 %v3845
        %v4098 = vpop.f32.mrf.mxu0
        %v4099 = vadd.f32 0.0, %v4098
        %v4100 = vpop.f32.mrf.mxu0
        %v4101 = vadd.f32 0.0, %v4100
        %4102 = vmatmul.bf16.gmra.mxu0 %v3848
        %v4103 = vpop.f32.mrf.mxu0
        %v4104 = vadd.f32 0.0, %v4103
        %v4105 = vpop.f32.mrf.mxu0
        %v4106 = vadd.f32 0.0, %v4105
        %4107 = vmatmul.bf16.gmra.mxu0 %v3851
        %v4108 = vpop.f32.mrf.mxu0
        %v4109 = vadd.f32 0.0, %v4108
        %v4110 = vpop.f32.mrf.mxu0
        %v4111 = vadd.f32 0.0, %v4110
        %4112 = vmatmul.bf16.gmra.mxu0 %v3854
        %v4113 = vpop.f32.mrf.mxu0
        %v4114 = vadd.f32 0.0, %v4113
        %v4115 = vpop.f32.mrf.mxu0
        %v4116 = vadd.f32 0.0, %v4115
        %4117 = vmatmul.bf16.gmra.mxu0 %v3857
        %v4118 = vpop.f32.mrf.mxu0
        %v4119 = vadd.f32 0.0, %v4118
        %v4120 = vpop.f32.mrf.mxu0
        %v4121 = vadd.f32 0.0, %v4120
        %4122 = vmatmul.bf16.gmra.mxu0 %v3860
        %v4123 = vpop.f32.mrf.mxu0
        %v4124 = vadd.f32 0.0, %v4123
        %v4125 = vpop.f32.mrf.mxu0
        %v4126 = vadd.f32 0.0, %v4125
        %4127 = vmatmul.bf16.gmra.mxu0 %v3863
        %v4128 = vpop.f32.mrf.mxu0
        %v4129 = vadd.f32 0.0, %v4128
        %v4130 = vpop.f32.mrf.mxu0
        %v4131 = vadd.f32 0.0, %v4130
        %4132 = vmatmul.bf16.gmra.mxu0 %v3866
        %v4133 = vpop.f32.mrf.mxu0
        %v4134 = vadd.f32 0.0, %v4133
        %v4135 = vpop.f32.mrf.mxu0
        %v4136 = vadd.f32 0.0, %v4135
        %4137 = vmatmul.bf16.gmra.mxu0 %v3869
        %v4138 = vpop.f32.mrf.mxu0
        %v4139 = vadd.f32 0.0, %v4138
        %v4140 = vpop.f32.mrf.mxu0
        %v4141 = vadd.f32 0.0, %v4140
        %4142 = vmatmul.bf16.gmra.mxu0 %v3872
        %v4143 = vpop.f32.mrf.mxu0
        %v4144 = vadd.f32 0.0, %v4143
        %v4145 = vpop.f32.mrf.mxu0
        %v4146 = vadd.f32 0.0, %v4145
        %4147 = vmatmul.bf16.gmra.mxu0 %v3875
        %v4148 = vpop.f32.mrf.mxu0
        %v4149 = vadd.f32 0.0, %v4148
        %v4150 = vpop.f32.mrf.mxu0
        %v4151 = vadd.f32 0.0, %v4150
        %4152 = vmatmul.bf16.gmra.mxu0 %v3878
        %v4153 = vpop.f32.mrf.mxu0
        %v4154 = vadd.f32 0.0, %v4153
        %v4155 = vpop.f32.mrf.mxu0
        %v4156 = vadd.f32 0.0, %v4155
        %4157 = vmatmul.bf16.gmra.mxu0 %v3881
        %v4158 = vpop.f32.mrf.mxu0
        %v4159 = vadd.f32 0.0, %v4158
        %v4160 = vpop.f32.mrf.mxu0
        %v4161 = vadd.f32 0.0, %v4160
        %4162 = vmatmul.bf16.gmra.mxu0 %v3884
        %v4163 = vpop.f32.mrf.mxu0
        %v4164 = vadd.f32 0.0, %v4163
        %v4165 = vpop.f32.mrf.mxu0
        %v4166 = vadd.f32 0.0, %v4165
        %4167 = vmatmul.bf16.gmra.mxu0 %v3887
        %v4168 = vpop.f32.mrf.mxu0
        %v4169 = vadd.f32 0.0, %v4168
        %v4170 = vpop.f32.mrf.mxu0
        %v4171 = vadd.f32 0.0, %v4170
        %4172 = vmatmul.bf16.gmra.mxu0 %v3890
        %v4173 = vpop.f32.mrf.mxu0
        %v4174 = vadd.f32 0.0, %v4173
        %v4175 = vpop.f32.mrf.mxu0
        %v4176 = vadd.f32 0.0, %v4175
        %4177 = vmatmul.bf16.gmra.mxu0 %v3893
        %v4178 = vpop.f32.mrf.mxu0
        %v4179 = vadd.f32 0.0, %v4178
        %v4180 = vpop.f32.mrf.mxu0
        %v4181 = vadd.f32 0.0, %v4180
        %4182 = vmatmul.bf16.gmra.mxu0 %v3896
        %v4183 = vpop.f32.mrf.mxu0
        %v4184 = vadd.f32 0.0, %v4183
        %v4185 = vpop.f32.mrf.mxu0
        %v4186 = vadd.f32 0.0, %v4185
        %4187 = vmatmul.bf16.gmra.mxu0 %v3899
        %v4188 = vpop.f32.mrf.mxu0
        %v4189 = vadd.f32 0.0, %v4188
        %v4190 = vpop.f32.mrf.mxu0
        %v4191 = vadd.f32 0.0, %v4190
        %4192 = vmatmul.bf16.gmra.mxu0 %v3902
        %v4193 = vpop.f32.mrf.mxu0
        %v4194 = vadd.f32 0.0, %v4193
        %v4195 = vpop.f32.mrf.mxu0
        %v4196 = vadd.f32 0.0, %v4195
        %4197 = vmatmul.bf16.gmra.mxu0 %v3905
        %v4198 = vpop.f32.mrf.mxu0
        %v4199 = vadd.f32 0.0, %v4198
        %v4200 = vpop.f32.mrf.mxu0
        %v4201 = vadd.f32 0.0, %v4200
        %4202 = vmatmul.bf16.gmra.mxu0 %v3908
        %v4203 = vpop.f32.mrf.mxu0
        %v4204 = vadd.f32 0.0, %v4203
        %v4205 = vpop.f32.mrf.mxu0
        %v4206 = vadd.f32 0.0, %v4205
        %4207 = vmatmul.bf16.gmra.mxu0 %v3911
        %v4208 = vpop.f32.mrf.mxu0
        %v4209 = vadd.f32 0.0, %v4208
        %v4210 = vpop.f32.mrf.mxu0
        %v4211 = vadd.f32 0.0, %v4210
        %4212 = vmatmul.bf16.gmra.mxu0 %v3914
        %v4213 = vpop.f32.mrf.mxu0
        %v4214 = vadd.f32 0.0, %v4213
        %v4215 = vpop.f32.mrf.mxu0
        %v4216 = vadd.f32 0.0, %v4215
        %4217 = vmatmul.bf16.gmra.mxu0 %v3917
        %v4218 = vpop.f32.mrf.mxu0
        %v4219 = vadd.f32 0.0, %v4218
        %v4220 = vpop.f32.mrf.mxu0
        %v4221 = vadd.f32 0.0, %v4220
        %4222 = vmatmul.bf16.gmra.mxu0 %v3920
        %v4223 = vpop.f32.mrf.mxu0
        %v4224 = vadd.f32 0.0, %v4223
        %v4225 = vpop.f32.mrf.mxu0
        %v4226 = vadd.f32 0.0, %v4225
        %4227 = vmatmul.bf16.gmra.mxu0 %v3923
        %v4228 = vpop.f32.mrf.mxu0
        %v4229 = vadd.f32 0.0, %v4228
        %v4230 = vpop.f32.mrf.mxu0
        %v4231 = vadd.f32 0.0, %v4230
        %4232 = vmatmul.bf16.gmra.mxu0 %v3926
        %v4233 = vpop.f32.mrf.mxu0
        %v4234 = vadd.f32 0.0, %v4233
        %v4235 = vpop.f32.mrf.mxu0
        %v4236 = vadd.f32 0.0, %v4235
        %4237 = vmatmul.bf16.gmra.mxu0 %v3929
        %v4238 = vpop.f32.mrf.mxu0
        %v4239 = vadd.f32 0.0, %v4238
        %v4240 = vpop.f32.mrf.mxu0
        %v4241 = vadd.f32 0.0, %v4240
        %4242 = vmatmul.bf16.gmra.mxu0 %v3932
        %v4243 = vpop.f32.mrf.mxu0
        %v4244 = vadd.f32 0.0, %v4243
        %v4245 = vpop.f32.mrf.mxu0
        %v4246 = vadd.f32 0.0, %v4245
        %4247 = vmatmul.bf16.gmra.mxu0 %v3935
        %v4248 = vpop.f32.mrf.mxu0
        %v4249 = vadd.f32 0.0, %v4248
        %v4250 = vpop.f32.mrf.mxu0
        %v4251 = vadd.f32 0.0, %v4250
        %4252 = vmatmul.bf16.gmra.mxu0 %v3938
        %v4253 = vpop.f32.mrf.mxu0
        %v4254 = vadd.f32 0.0, %v4253
        %v4255 = vpop.f32.mrf.mxu0
        %v4256 = vadd.f32 0.0, %v4255
        %4257 = vmatmul.bf16.gmra.mxu0 %v3941
        %v4258 = vpop.f32.mrf.mxu0
        %v4259 = vadd.f32 0.0, %v4258
        %v4260 = vpop.f32.mrf.mxu0
        %v4261 = vadd.f32 0.0, %v4260
        %4262 = vmatmul.bf16.gmra.mxu0 %v3944
        %v4263 = vpop.f32.mrf.mxu0
        %v4264 = vadd.f32 0.0, %v4263
        %v4265 = vpop.f32.mrf.mxu0
        %v4266 = vadd.f32 0.0, %v4265
        %4267 = vmatmul.bf16.gmra.mxu0 %v3947
        %v4268 = vpop.f32.mrf.mxu0
        %v4269 = vadd.f32 0.0, %v4268
        %v4270 = vpop.f32.mrf.mxu0
        %v4271 = vadd.f32 0.0, %v4270
        %4272 = vmatmul.bf16.gmra.mxu0 %v3950
        %v4273 = vpop.f32.mrf.mxu0
        %v4274 = vadd.f32 0.0, %v4273
        %v4275 = vpop.f32.mrf.mxu0
        %v4276 = vadd.f32 0.0, %v4275
        %4277 = vmatmul.bf16.gmra.mxu0 %v3953
        %v4278 = vpop.f32.mrf.mxu0
        %v4279 = vadd.f32 0.0, %v4278
        %v4280 = vpop.f32.mrf.mxu0
        %v4281 = vadd.f32 0.0, %v4280
        %4282 = vmatmul.bf16.gmra.mxu0 %v3956
        %v4283 = vpop.f32.mrf.mxu0
        %v4284 = vadd.f32 0.0, %v4283
        %v4285 = vpop.f32.mrf.mxu0
        %v4286 = vadd.f32 0.0, %v4285
        %4287 = vmatmul.bf16.gmra.mxu0 %v3959
        %v4288 = vpop.f32.mrf.mxu0
        %v4289 = vadd.f32 0.0, %v4288
        %v4290 = vpop.f32.mrf.mxu0
        %v4291 = vadd.f32 0.0, %v4290
        %4292 = vdwg.mxu0
        %v4293 = vadd.f32 %v3183, %v3974
        %v4294 = vadd.f32 %v3184, %v3976
        %v4295 = vadd.f32 %v3185, %v3979
        %v4296 = vadd.f32 %v3186, %v3981
        %v4297 = vadd.f32 %v3187, %v3984
        %v4298 = vadd.f32 %v3188, %v3986
        %v4299 = vadd.f32 %v3189, %v3989
        %v4300 = vadd.f32 %v3190, %v3991
        %v4301 = vadd.f32 %v3191, %v3994
        %v4302 = vadd.f32 %v3192, %v3996
        %v4303 = vadd.f32 %v3193, %v3999
        %v4304 = vadd.f32 %v3194, %v4001
        %v4305 = vadd.f32 %v3195, %v4004
        %v4306 = vadd.f32 %v3196, %v4006
        %v4307 = vadd.f32 %v3197, %v4009
        %v4308 = vadd.f32 %v3198, %v4011
        %v4309 = vadd.f32 %v3199, %v4014
        %v4310 = vadd.f32 %v3200, %v4016
        %v4311 = vadd.f32 %v3201, %v4019
        %v4312 = vadd.f32 %v3202, %v4021
        %v4313 = vadd.f32 %v3203, %v4024
        %v4314 = vadd.f32 %v3204, %v4026
        %v4315 = vadd.f32 %v3205, %v4029
        %v4316 = vadd.f32 %v3206, %v4031
        %v4317 = vadd.f32 %v3207, %v4034
        %v4318 = vadd.f32 %v3208, %v4036
        %v4319 = vadd.f32 %v3209, %v4039
        %v4320 = vadd.f32 %v3210, %v4041
        %v4321 = vadd.f32 %v3211, %v4044
        %v4322 = vadd.f32 %v3212, %v4046
        %v4323 = vadd.f32 %v3213, %v4049
        %v4324 = vadd.f32 %v3214, %v4051
        %v4325 = vadd.f32 %v3215, %v4054
        %v4326 = vadd.f32 %v3216, %v4056
        %v4327 = vadd.f32 %v3217, %v4059
        %v4328 = vadd.f32 %v3218, %v4061
        %v4329 = vadd.f32 %v3219, %v4064
        %v4330 = vadd.f32 %v3220, %v4066
        %v4331 = vadd.f32 %v3221, %v4069
        %v4332 = vadd.f32 %v3222, %v4071
        %v4333 = vadd.f32 %v3223, %v4074
        %v4334 = vadd.f32 %v3224, %v4076
        %v4335 = vadd.f32 %v3225, %v4079
        %v4336 = vadd.f32 %v3226, %v4081
        %v4337 = vadd.f32 %v3227, %v4084
        %v4338 = vadd.f32 %v3228, %v4086
        %v4339 = vadd.f32 %v3229, %v4089
        %v4340 = vadd.f32 %v3230, %v4091
        %v4341 = vadd.f32 %v3231, %v4094
        %v4342 = vadd.f32 %v3232, %v4096
        %v4343 = vadd.f32 %v3233, %v4099
        %v4344 = vadd.f32 %v3234, %v4101
        %v4345 = vadd.f32 %v3235, %v4104
        %v4346 = vadd.f32 %v3236, %v4106
        %v4347 = vadd.f32 %v3237, %v4109
        %v4348 = vadd.f32 %v3238, %v4111
        %v4349 = vadd.f32 %v3239, %v4114
        %v4350 = vadd.f32 %v3240, %v4116
        %v4351 = vadd.f32 %v3241, %v4119
        %v4352 = vadd.f32 %v3242, %v4121
        %v4353 = vadd.f32 %v3243, %v4124
        %v4354 = vadd.f32 %v3244, %v4126
        %v4355 = vadd.f32 %v3245, %v4129
        %v4356 = vadd.f32 %v3246, %v4131
        %v4357 = vadd.f32 %v3247, %v4134
        %v4358 = vadd.f32 %v3248, %v4136
        %v4359 = vadd.f32 %v3249, %v4139
        %v4360 = vadd.f32 %v3250, %v4141
        %v4361 = vadd.f32 %v3251, %v4144
        %v4362 = vadd.f32 %v3252, %v4146
        %v4363 = vadd.f32 %v3253, %v4149
        %v4364 = vadd.f32 %v3254, %v4151
        %v4365 = vadd.f32 %v3255, %v4154
        %v4366 = vadd.f32 %v3256, %v4156
        %v4367 = vadd.f32 %v3257, %v4159
        %v4368 = vadd.f32 %v3258, %v4161
        %v4369 = vadd.f32 %v3259, %v4164
        %v4370 = vadd.f32 %v3260, %v4166
        %v4371 = vadd.f32 %v3261, %v4169
        %v4372 = vadd.f32 %v3262, %v4171
        %v4373 = vadd.f32 %v3263, %v4174
        %v4374 = vadd.f32 %v3264, %v4176
        %v4375 = vadd.f32 %v3265, %v4179
        %v4376 = vadd.f32 %v3266, %v4181
        %v4377 = vadd.f32 %v3267, %v4184
        %v4378 = vadd.f32 %v3268, %v4186
        %v4379 = vadd.f32 %v3269, %v4189
        %v4380 = vadd.f32 %v3270, %v4191
        %v4381 = vadd.f32 %v3271, %v4194
        %v4382 = vadd.f32 %v3272, %v4196
        %v4383 = vadd.f32 %v3273, %v4199
        %v4384 = vadd.f32 %v3274, %v4201
        %v4385 = vadd.f32 %v3275, %v4204
        %v4386 = vadd.f32 %v3276, %v4206
        %v4387 = vadd.f32 %v3277, %v4209
        %v4388 = vadd.f32 %v3278, %v4211
        %v4389 = vadd.f32 %v3279, %v4214
        %v4390 = vadd.f32 %v3280, %v4216
        %v4391 = vadd.f32 %v3281, %v4219
        %v4392 = vadd.f32 %v3282, %v4221
        %v4393 = vadd.f32 %v3283, %v4224
        %v4394 = vadd.f32 %v3284, %v4226
        %v4395 = vadd.f32 %v3285, %v4229
        %v4396 = vadd.f32 %v3286, %v4231
        %v4397 = vadd.f32 %v3287, %v4234
        %v4398 = vadd.f32 %v3288, %v4236
        %v4399 = vadd.f32 %v3289, %v4239
        %v4400 = vadd.f32 %v3290, %v4241
        %v4401 = vadd.f32 %v3291, %v4244
        %v4402 = vadd.f32 %v3292, %v4246
        %v4403 = vadd.f32 %v3293, %v4249
        %v4404 = vadd.f32 %v3294, %v4251
        %v4405 = vadd.f32 %v3295, %v4254
        %v4406 = vadd.f32 %v3296, %v4256
        %v4407 = vadd.f32 %v3297, %v4259
        %v4408 = vadd.f32 %v3298, %v4261
        %v4409 = vadd.f32 %v3299, %v4264
        %v4410 = vadd.f32 %v3300, %v4266
        %v4411 = vadd.f32 %v3301, %v4269
        %v4412 = vadd.f32 %v3302, %v4271
        %v4413 = vadd.f32 %v3303, %v4274
        %v4414 = vadd.f32 %v3304, %v4276
        %v4415 = vadd.f32 %v3305, %v4279
        %v4416 = vadd.f32 %v3306, %v4281
        %v4417 = vadd.f32 %v3307, %v4284
        %v4418 = vadd.f32 %v3308, %v4286
        %v4419 = vadd.f32 %v3309, %v4289
        %v4420 = vadd.f32 %v3310, %v4291
        %v4421 = vld [vmem:[%s3] sm:$0x1]
        %v4423 = vperm.slane %v4421, 0
        %v4425 = vadd.f32 %v4293, %v4423
        %v4426 = vadd.f32 %v4294, %v4423
        %v4427 = vadd.f32 %v4295, %v4423
        %v4428 = vadd.f32 %v4296, %v4423
        %v4429 = vadd.f32 %v4297, %v4423
        %v4430 = vadd.f32 %v4298, %v4423
        %v4431 = vadd.f32 %v4299, %v4423
        %v4432 = vadd.f32 %v4300, %v4423
        %v4433 = vadd.f32 %v4301, %v4423
        %v4434 = vadd.f32 %v4302, %v4423
        %v4435 = vadd.f32 %v4303, %v4423
        %v4436 = vadd.f32 %v4304, %v4423
        %v4437 = vadd.f32 %v4305, %v4423
        %v4438 = vadd.f32 %v4306, %v4423
        %v4439 = vadd.f32 %v4307, %v4423
        %v4440 = vadd.f32 %v4308, %v4423
        %v4441 = vadd.f32 %v4309, %v4423
        %v4442 = vadd.f32 %v4310, %v4423
        %v4443 = vadd.f32 %v4311, %v4423
        %v4444 = vadd.f32 %v4312, %v4423
        %v4445 = vadd.f32 %v4313, %v4423
        %v4446 = vadd.f32 %v4314, %v4423
        %v4447 = vadd.f32 %v4315, %v4423
        %v4448 = vadd.f32 %v4316, %v4423
        %v4449 = vadd.f32 %v4317, %v4423
        %v4450 = vadd.f32 %v4318, %v4423
        %v4451 = vadd.f32 %v4319, %v4423
        %v4452 = vadd.f32 %v4320, %v4423
        %v4453 = vadd.f32 %v4321, %v4423
        %v4454 = vadd.f32 %v4322, %v4423
        %v4455 = vadd.f32 %v4323, %v4423
        %v4456 = vadd.f32 %v4324, %v4423
        %v4457 = vadd.f32 %v4325, %v4423
        %v4458 = vadd.f32 %v4326, %v4423
        %v4459 = vadd.f32 %v4327, %v4423
        %v4460 = vadd.f32 %v4328, %v4423
        %v4461 = vadd.f32 %v4329, %v4423
        %v4462 = vadd.f32 %v4330, %v4423
        %v4463 = vadd.f32 %v4331, %v4423
        %v4464 = vadd.f32 %v4332, %v4423
        %v4465 = vadd.f32 %v4333, %v4423
        %v4466 = vadd.f32 %v4334, %v4423
        %v4467 = vadd.f32 %v4335, %v4423
        %v4468 = vadd.f32 %v4336, %v4423
        %v4469 = vadd.f32 %v4337, %v4423
        %v4470 = vadd.f32 %v4338, %v4423
        %v4471 = vadd.f32 %v4339, %v4423
        %v4472 = vadd.f32 %v4340, %v4423
        %v4473 = vadd.f32 %v4341, %v4423
        %v4474 = vadd.f32 %v4342, %v4423
        %v4475 = vadd.f32 %v4343, %v4423
        %v4476 = vadd.f32 %v4344, %v4423
        %v4477 = vadd.f32 %v4345, %v4423
        %v4478 = vadd.f32 %v4346, %v4423
        %v4479 = vadd.f32 %v4347, %v4423
        %v4480 = vadd.f32 %v4348, %v4423
        %v4481 = vadd.f32 %v4349, %v4423
        %v4482 = vadd.f32 %v4350, %v4423
        %v4483 = vadd.f32 %v4351, %v4423
        %v4484 = vadd.f32 %v4352, %v4423
        %v4485 = vadd.f32 %v4353, %v4423
        %v4486 = vadd.f32 %v4354, %v4423
        %v4487 = vadd.f32 %v4355, %v4423
        %v4488 = vadd.f32 %v4356, %v4423
        %v4489 = vadd.f32 %v4357, %v4423
        %v4490 = vadd.f32 %v4358, %v4423
        %v4491 = vadd.f32 %v4359, %v4423
        %v4492 = vadd.f32 %v4360, %v4423
        %v4493 = vadd.f32 %v4361, %v4423
        %v4494 = vadd.f32 %v4362, %v4423
        %v4495 = vadd.f32 %v4363, %v4423
        %v4496 = vadd.f32 %v4364, %v4423
        %v4497 = vadd.f32 %v4365, %v4423
        %v4498 = vadd.f32 %v4366, %v4423
        %v4499 = vadd.f32 %v4367, %v4423
        %v4500 = vadd.f32 %v4368, %v4423
        %v4501 = vadd.f32 %v4369, %v4423
        %v4502 = vadd.f32 %v4370, %v4423
        %v4503 = vadd.f32 %v4371, %v4423
        %v4504 = vadd.f32 %v4372, %v4423
        %v4505 = vadd.f32 %v4373, %v4423
        %v4506 = vadd.f32 %v4374, %v4423
        %v4507 = vadd.f32 %v4375, %v4423
        %v4508 = vadd.f32 %v4376, %v4423
        %v4509 = vadd.f32 %v4377, %v4423
        %v4510 = vadd.f32 %v4378, %v4423
        %v4511 = vadd.f32 %v4379, %v4423
        %v4512 = vadd.f32 %v4380, %v4423
        %v4513 = vadd.f32 %v4381, %v4423
        %v4514 = vadd.f32 %v4382, %v4423
        %v4515 = vadd.f32 %v4383, %v4423
        %v4516 = vadd.f32 %v4384, %v4423
        %v4517 = vadd.f32 %v4385, %v4423
        %v4518 = vadd.f32 %v4386, %v4423
        %v4519 = vadd.f32 %v4387, %v4423
        %v4520 = vadd.f32 %v4388, %v4423
        %v4521 = vadd.f32 %v4389, %v4423
        %v4522 = vadd.f32 %v4390, %v4423
        %v4523 = vadd.f32 %v4391, %v4423
        %v4524 = vadd.f32 %v4392, %v4423
        %v4525 = vadd.f32 %v4393, %v4423
        %v4526 = vadd.f32 %v4394, %v4423
        %v4527 = vadd.f32 %v4395, %v4423
        %v4528 = vadd.f32 %v4396, %v4423
        %v4529 = vadd.f32 %v4397, %v4423
        %v4530 = vadd.f32 %v4398, %v4423
        %v4531 = vadd.f32 %v4399, %v4423
        %v4532 = vadd.f32 %v4400, %v4423
        %v4533 = vadd.f32 %v4401, %v4423
        %v4534 = vadd.f32 %v4402, %v4423
        %v4535 = vadd.f32 %v4403, %v4423
        %v4536 = vadd.f32 %v4404, %v4423
        %v4537 = vadd.f32 %v4405, %v4423
        %v4538 = vadd.f32 %v4406, %v4423
        %v4539 = vadd.f32 %v4407, %v4423
        %v4540 = vadd.f32 %v4408, %v4423
        %v4541 = vadd.f32 %v4409, %v4423
        %v4542 = vadd.f32 %v4410, %v4423
        %v4543 = vadd.f32 %v4411, %v4423
        %v4544 = vadd.f32 %v4412, %v4423
        %v4545 = vadd.f32 %v4413, %v4423
        %v4546 = vadd.f32 %v4414, %v4423
        %v4547 = vadd.f32 %v4415, %v4423
        %v4548 = vadd.f32 %v4416, %v4423
        %v4549 = vadd.f32 %v4417, %v4423
        %v4550 = vadd.f32 %v4418, %v4423
        %v4551 = vadd.f32 %v4419, %v4423
        %v4552 = vadd.f32 %v4420, %v4423
        %vm4553 = vcmask 523264
        %4554 = vst.msk [vmem:[%s219] sm:$0xff] %vm4553, %v4425
        %4555 = vst.msk [vmem:[%s219 + $0x8] sm:$0xff] %vm4553, %v4426
        %4556 = vst.msk [vmem:[%s219 + $0x10] sm:$0xff] %vm4553, %v4427
        %4557 = vst.msk [vmem:[%s219 + $0x18] sm:$0xff] %vm4553, %v4428
        %4558 = vst.msk [vmem:[%s219 + $0x20] sm:$0xff] %vm4553, %v4429
        %4559 = vst.msk [vmem:[%s219 + $0x28] sm:$0xff] %vm4553, %v4430
        %4560 = vst.msk [vmem:[%s219 + $0x30] sm:$0xff] %vm4553, %v4431
        %4561 = vst.msk [vmem:[%s219 + $0x38] sm:$0xff] %vm4553, %v4432
        %4562 = vst.msk [vmem:[%s219 + $0x40] sm:$0xff] %vm4553, %v4433
        %4563 = vst.msk [vmem:[%s219 + $0x48] sm:$0xff] %vm4553, %v4434
        %4564 = vst.msk [vmem:[%s219 + $0x50] sm:$0xff] %vm4553, %v4435
        %4565 = vst.msk [vmem:[%s219 + $0x58] sm:$0xff] %vm4553, %v4436
        %4566 = vst.msk [vmem:[%s219 + $0x60] sm:$0xff] %vm4553, %v4437
        %4567 = vst.msk [vmem:[%s219 + $0x68] sm:$0xff] %vm4553, %v4438
        %4568 = vst.msk [vmem:[%s219 + $0x70] sm:$0xff] %vm4553, %v4439
        %4569 = vst.msk [vmem:[%s219 + $0x78] sm:$0xff] %vm4553, %v4440
        %4570 = vst.msk [vmem:[%s219 + $0x80] sm:$0xff] %vm4553, %v4441
        %4571 = vst.msk [vmem:[%s219 + $0x88] sm:$0xff] %vm4553, %v4442
        %4572 = vst.msk [vmem:[%s219 + $0x90] sm:$0xff] %vm4553, %v4443
        %4573 = vst.msk [vmem:[%s219 + $0x98] sm:$0xff] %vm4553, %v4444
        %4574 = vst.msk [vmem:[%s219 + $0xa0] sm:$0xff] %vm4553, %v4445
        %4575 = vst.msk [vmem:[%s219 + $0xa8] sm:$0xff] %vm4553, %v4446
        %4576 = vst.msk [vmem:[%s219 + $0xb0] sm:$0xff] %vm4553, %v4447
        %4577 = vst.msk [vmem:[%s219 + $0xb8] sm:$0xff] %vm4553, %v4448
        %4578 = vst.msk [vmem:[%s219 + $0xc0] sm:$0xff] %vm4553, %v4449
        %4579 = vst.msk [vmem:[%s219 + $0xc8] sm:$0xff] %vm4553, %v4450
        %4580 = vst.msk [vmem:[%s219 + $0xd0] sm:$0xff] %vm4553, %v4451
        %4581 = vst.msk [vmem:[%s219 + $0xd8] sm:$0xff] %vm4553, %v4452
        %4582 = vst.msk [vmem:[%s219 + $0xe0] sm:$0xff] %vm4553, %v4453
        %4583 = vst.msk [vmem:[%s219 + $0xe8] sm:$0xff] %vm4553, %v4454
        %4584 = vst.msk [vmem:[%s219 + $0xf0] sm:$0xff] %vm4553, %v4455
        %4585 = vst.msk [vmem:[%s219 + $0xf8] sm:$0xff] %vm4553, %v4456
        %4586 = vst.msk [vmem:[%s219 + $0x100] sm:$0xff] %vm4553, %v4457
        %4587 = vst.msk [vmem:[%s219 + $0x108] sm:$0xff] %vm4553, %v4458
        %4588 = vst.msk [vmem:[%s219 + $0x110] sm:$0xff] %vm4553, %v4459
        %4589 = vst.msk [vmem:[%s219 + $0x118] sm:$0xff] %vm4553, %v4460
        %4590 = vst.msk [vmem:[%s219 + $0x120] sm:$0xff] %vm4553, %v4461
        %4591 = vst.msk [vmem:[%s219 + $0x128] sm:$0xff] %vm4553, %v4462
        %4592 = vst.msk [vmem:[%s219 + $0x130] sm:$0xff] %vm4553, %v4463
        %4593 = vst.msk [vmem:[%s219 + $0x138] sm:$0xff] %vm4553, %v4464
        %4594 = vst.msk [vmem:[%s219 + $0x140] sm:$0xff] %vm4553, %v4465
        %4595 = vst.msk [vmem:[%s219 + $0x148] sm:$0xff] %vm4553, %v4466
        %4596 = vst.msk [vmem:[%s219 + $0x150] sm:$0xff] %vm4553, %v4467
        %4597 = vst.msk [vmem:[%s219 + $0x158] sm:$0xff] %vm4553, %v4468
        %4598 = vst.msk [vmem:[%s219 + $0x160] sm:$0xff] %vm4553, %v4469
        %4599 = vst.msk [vmem:[%s219 + $0x168] sm:$0xff] %vm4553, %v4470
        %4600 = vst.msk [vmem:[%s219 + $0x170] sm:$0xff] %vm4553, %v4471
        %4601 = vst.msk [vmem:[%s219 + $0x178] sm:$0xff] %vm4553, %v4472
        %4602 = vst.msk [vmem:[%s219 + $0x180] sm:$0xff] %vm4553, %v4473
        %4603 = vst.msk [vmem:[%s219 + $0x188] sm:$0xff] %vm4553, %v4474
        %4604 = vst.msk [vmem:[%s219 + $0x190] sm:$0xff] %vm4553, %v4475
        %4605 = vst.msk [vmem:[%s219 + $0x198] sm:$0xff] %vm4553, %v4476
        %4606 = vst.msk [vmem:[%s219 + $0x1a0] sm:$0xff] %vm4553, %v4477
        %4607 = vst.msk [vmem:[%s219 + $0x1a8] sm:$0xff] %vm4553, %v4478
        %4608 = vst.msk [vmem:[%s219 + $0x1b0] sm:$0xff] %vm4553, %v4479
        %4609 = vst.msk [vmem:[%s219 + $0x1b8] sm:$0xff] %vm4553, %v4480
        %4610 = vst.msk [vmem:[%s219 + $0x1c0] sm:$0xff] %vm4553, %v4481
        %4611 = vst.msk [vmem:[%s219 + $0x1c8] sm:$0xff] %vm4553, %v4482
        %4612 = vst.msk [vmem:[%s219 + $0x1d0] sm:$0xff] %vm4553, %v4483
        %4613 = vst.msk [vmem:[%s219 + $0x1d8] sm:$0xff] %vm4553, %v4484
        %4614 = vst.msk [vmem:[%s219 + $0x1e0] sm:$0xff] %vm4553, %v4485
        %4615 = vst.msk [vmem:[%s219 + $0x1e8] sm:$0xff] %vm4553, %v4486
        %4616 = vst.msk [vmem:[%s219 + $0x1f0] sm:$0xff] %vm4553, %v4487
        %4617 = vst.msk [vmem:[%s219 + $0x1f8] sm:$0xff] %vm4553, %v4488
        %4618 = vst.msk [vmem:[%s219 + $0x200] sm:$0xff] %vm4553, %v4489
        %4619 = vst.msk [vmem:[%s219 + $0x208] sm:$0xff] %vm4553, %v4490
        %4620 = vst.msk [vmem:[%s219 + $0x210] sm:$0xff] %vm4553, %v4491
        %4621 = vst.msk [vmem:[%s219 + $0x218] sm:$0xff] %vm4553, %v4492
        %4622 = vst.msk [vmem:[%s219 + $0x220] sm:$0xff] %vm4553, %v4493
        %4623 = vst.msk [vmem:[%s219 + $0x228] sm:$0xff] %vm4553, %v4494
        %4624 = vst.msk [vmem:[%s219 + $0x230] sm:$0xff] %vm4553, %v4495
        %4625 = vst.msk [vmem:[%s219 + $0x238] sm:$0xff] %vm4553, %v4496
        %4626 = vst.msk [vmem:[%s219 + $0x240] sm:$0xff] %vm4553, %v4497
        %4627 = vst.msk [vmem:[%s219 + $0x248] sm:$0xff] %vm4553, %v4498
        %4628 = vst.msk [vmem:[%s219 + $0x250] sm:$0xff] %vm4553, %v4499
        %4629 = vst.msk [vmem:[%s219 + $0x258] sm:$0xff] %vm4553, %v4500
        %4630 = vst.msk [vmem:[%s219 + $0x260] sm:$0xff] %vm4553, %v4501
        %4631 = vst.msk [vmem:[%s219 + $0x268] sm:$0xff] %vm4553, %v4502
        %4632 = vst.msk [vmem:[%s219 + $0x270] sm:$0xff] %vm4553, %v4503
        %4633 = vst.msk [vmem:[%s219 + $0x278] sm:$0xff] %vm4553, %v4504
        %4634 = vst.msk [vmem:[%s219 + $0x280] sm:$0xff] %vm4553, %v4505
        %4635 = vst.msk [vmem:[%s219 + $0x288] sm:$0xff] %vm4553, %v4506
        %4636 = vst.msk [vmem:[%s219 + $0x290] sm:$0xff] %vm4553, %v4507
        %4637 = vst.msk [vmem:[%s219 + $0x298] sm:$0xff] %vm4553, %v4508
        %4638 = vst.msk [vmem:[%s219 + $0x2a0] sm:$0xff] %vm4553, %v4509
        %4639 = vst.msk [vmem:[%s219 + $0x2a8] sm:$0xff] %vm4553, %v4510
        %4640 = vst.msk [vmem:[%s219 + $0x2b0] sm:$0xff] %vm4553, %v4511
        %4641 = vst.msk [vmem:[%s219 + $0x2b8] sm:$0xff] %vm4553, %v4512
        %4642 = vst.msk [vmem:[%s219 + $0x2c0] sm:$0xff] %vm4553, %v4513
        %4643 = vst.msk [vmem:[%s219 + $0x2c8] sm:$0xff] %vm4553, %v4514
        %4644 = vst.msk [vmem:[%s219 + $0x2d0] sm:$0xff] %vm4553, %v4515
        %4645 = vst.msk [vmem:[%s219 + $0x2d8] sm:$0xff] %vm4553, %v4516
        %4646 = vst.msk [vmem:[%s219 + $0x2e0] sm:$0xff] %vm4553, %v4517
        %4647 = vst.msk [vmem:[%s219 + $0x2e8] sm:$0xff] %vm4553, %v4518
        %4648 = vst.msk [vmem:[%s219 + $0x2f0] sm:$0xff] %vm4553, %v4519
        %4649 = vst.msk [vmem:[%s219 + $0x2f8] sm:$0xff] %vm4553, %v4520
        %4650 = vst.msk [vmem:[%s219 + $0x300] sm:$0xff] %vm4553, %v4521
        %4651 = vst.msk [vmem:[%s219 + $0x308] sm:$0xff] %vm4553, %v4522
        %4652 = vst.msk [vmem:[%s219 + $0x310] sm:$0xff] %vm4553, %v4523
        %4653 = vst.msk [vmem:[%s219 + $0x318] sm:$0xff] %vm4553, %v4524
        %4654 = vst.msk [vmem:[%s219 + $0x320] sm:$0xff] %vm4553, %v4525
        %4655 = vst.msk [vmem:[%s219 + $0x328] sm:$0xff] %vm4553, %v4526
        %4656 = vst.msk [vmem:[%s219 + $0x330] sm:$0xff] %vm4553, %v4527
        %4657 = vst.msk [vmem:[%s219 + $0x338] sm:$0xff] %vm4553, %v4528
        %4658 = vst.msk [vmem:[%s219 + $0x340] sm:$0xff] %vm4553, %v4529
        %4659 = vst.msk [vmem:[%s219 + $0x348] sm:$0xff] %vm4553, %v4530
        %4660 = vst.msk [vmem:[%s219 + $0x350] sm:$0xff] %vm4553, %v4531
        %4661 = vst.msk [vmem:[%s219 + $0x358] sm:$0xff] %vm4553, %v4532
        %4662 = vst.msk [vmem:[%s219 + $0x360] sm:$0xff] %vm4553, %v4533
        %4663 = vst.msk [vmem:[%s219 + $0x368] sm:$0xff] %vm4553, %v4534
        %4664 = vst.msk [vmem:[%s219 + $0x370] sm:$0xff] %vm4553, %v4535
        %4665 = vst.msk [vmem:[%s219 + $0x378] sm:$0xff] %vm4553, %v4536
        %4666 = vst.msk [vmem:[%s219 + $0x380] sm:$0xff] %vm4553, %v4537
        %4667 = vst.msk [vmem:[%s219 + $0x388] sm:$0xff] %vm4553, %v4538
        %4668 = vst.msk [vmem:[%s219 + $0x390] sm:$0xff] %vm4553, %v4539
        %4669 = vst.msk [vmem:[%s219 + $0x398] sm:$0xff] %vm4553, %v4540
        %4670 = vst.msk [vmem:[%s219 + $0x3a0] sm:$0xff] %vm4553, %v4541
        %4671 = vst.msk [vmem:[%s219 + $0x3a8] sm:$0xff] %vm4553, %v4542
        %4672 = vst.msk [vmem:[%s219 + $0x3b0] sm:$0xff] %vm4553, %v4543
        %4673 = vst.msk [vmem:[%s219 + $0x3b8] sm:$0xff] %vm4553, %v4544
        %4674 = vst.msk [vmem:[%s219 + $0x3c0] sm:$0xff] %vm4553, %v4545
        %4675 = vst.msk [vmem:[%s219 + $0x3c8] sm:$0xff] %vm4553, %v4546
        %4676 = vst.msk [vmem:[%s219 + $0x3d0] sm:$0xff] %vm4553, %v4547
        %4677 = vst.msk [vmem:[%s219 + $0x3d8] sm:$0xff] %vm4553, %v4548
        %4678 = vst.msk [vmem:[%s219 + $0x3e0] sm:$0xff] %vm4553, %v4549
        %4679 = vst.msk [vmem:[%s219 + $0x3e8] sm:$0xff] %vm4553, %v4550
        %4680 = vst.msk [vmem:[%s219 + $0x3f0] sm:$0xff] %vm4553, %v4551
        %4681 = vst.msk [vmem:[%s219 + $0x3f8] sm:$0xff] %vm4553, %v4552
        %s4682 = sand.u32 %s134, 1
        %s4683 = scalar_lea.sflag [#allocation3], %s4682
        %s4684 = sand.u32 %s134, 1
        %s4685 = smul.addr %s4684, 1024
        %s4686 = scalar_lea.vmem [#allocation2], %s4685
        // Predicated region
        $region37: #{tpu_custom_call.1} parent=35 // pred_check
          %p4687 = pneg %p144
        $region38: #{tpu_custom_call.1} parent=35 // pred_check_branch
          %4689 = sbr.rel (%p4687) target = $region40
        $region39: #{tpu_custom_call.1} parent=35 // pred_region
          %s4690 = smul.u32 16, %s23
          %4692 = vsyncadd %s4683, 0
          %s4693 = smul.addr %s4690, 8
          %s4694 = smul.addr %s22, 512
          %s4695 = sadd.s32 %s4693, %s4694
          %s4696 = smul.addr %s4695, 8
          %s4697 = scalar_lea.hbm %s4, %s4696
          %s4698 = sshll.u32 %s4686, 4
          %s4699 = int_to_ptr.vmem [resolvable:$true] %s4698
          %s4700 = sshll.u32 %s4697, 4
          %s4701 = int_to_ptr.hbm [resolvable:$true] %s4700
          %4706 = dma.vmem_to_hbm [thread:$0]  %s4699, 16384, %s4701, %s4683, 128, 128, 8
        $region40: #{tpu_custom_call.1} parent=35 // pred_fallthru
          _
      $region36: #{tpu_custom_call.1} parent=5 // pred_fallthru
        _
      %p4707 = scmp.le.s32.totalorder 2, %s13
      // Predicated region
      $region41: #{tpu_custom_call.1} parent=5 // pred_check
        %p4708 = pneg %p4707
      $region42: #{tpu_custom_call.1} parent=5 // pred_check_branch
        %4710 = sbr.rel (%p4708) target = $region44
      $region43: #{tpu_custom_call.1} parent=5 // pred_region
        %s4711 = ssub.s32 %s13, 2
        // Predicated region
        $region45: #{tpu_custom_call.1} parent=43 // pred_check
          %p4712 = pneg %p150
        $region46: #{tpu_custom_call.1} parent=43 // pred_check_branch
          %4714 = sbr.rel (%p4712) target = $region48
        $region47: #{tpu_custom_call.1} parent=43 // pred_region
          %s4715 = sand.u32 %s135, 1
          %s4716 = scalar_lea.sflag [#allocation3], %s4715
          %s4717 = sand.u32 %s135, 1
          %s4718 = smul.addr %s4717, 1024
          %s4719 = scalar_lea.vmem [#allocation2], %s4718
          %4721 = dma.done %s4716, 16384
        $region48: #{tpu_custom_call.1} parent=43 // pred_fallthru
          _
      $region44: #{tpu_custom_call.1} parent=5 // pred_fallthru
        _
    $region6: #{tpu_custom_call.1} parent=1 // loop_footer
      %s17 = sadd.s32 1, %s13
    $region7: #{tpu_custom_call.1} parent=1 // loop_footer_branch
      %12 = sbr.rel target = $region3
    $region8: #{tpu_custom_call.1} parent=1 // loop_exit
      _
    %4722 = vsyncpa [#allocation3], 1
    %s4723 = scalar_lea.sflag [#allocation3], 1
    %4724 = vsyncpa %s4723, 1

</llo_original>
